<compile_context>
chip_gen: v7x
topology: tpu7x:2x2x1
jax: 0.10.0
libtpu: 0.0.40
codegen_flags: <defaults>
</compile_context>

<pallas_src>
import math

import jax
import jax.numpy as jnp
from jax.experimental import pallas as pl
from jax.experimental.pallas import tpu as pltpu  # noqa: F401  (kept for TPU-specific knobs)

# ---- hyperparameters (small shapes consistent with the module) ----
B = 2          # batch
L = 16         # spectra_length
T = 8          # bottleneck_length
DBN = 4        # bottleneck_dim
D = 32         # model_dim
H = 4          # num_heads
NL = 2         # num_layers
F = 64         # ff_dim
DH = D // H    # head dim
S = L + 1      # context length (flux tokens + phase token)
SP = 24        # context length padded to a multiple of 8 (sublane aligned)
DBN_PAD = 128  # lane-dense output width (sliced back to DBN in the wrapper)
EPS = 1e-5
NEG = -1e30    # additive mask value for padded / masked keys


# ----------------------------------------------------------------------------
# Shared math helpers (usable both inside the kernel and in the JAX reference)
# ----------------------------------------------------------------------------
def _layernorm(x, g, b):
    m = jnp.mean(x, axis=-1, keepdims=True)
    v = jnp.mean(jnp.square(x - m), axis=-1, keepdims=True)
    return (x - m) * jax.lax.rsqrt(v + EPS) * g + b


# ----------------------------------------------------------------------------
# Pallas kernel: full transformer stack + final bottleneck FC, whole batch
# ----------------------------------------------------------------------------
def encoder_kernel(x0_ref, ctx_ref, kmask_ref, wbig_ref, w2_ref, vec_ref,
                   wbn_ref, bbn_ref, out_ref):
    x0 = x0_ref[...]                                    # [T, D]
    x_flat = jnp.concatenate([x0] * B, axis=0)          # [B*T, D]
    ctx_flat = ctx_ref[...].reshape(B * SP, D)          # [B*SP, D] (aligned reshape)
    kmask = kmask_ref[...]                              # [B, T, SP] additive key mask

    h = x_flat
    for l in range(NL):                                 # static layer loop
        w_all = wbig_ref[l]                             # [D, 4D+F] packed slab
        wq = w_all[:, 0:D]                              # pre-scaled by 1/sqrt(DH)
        wkv = w_all[:, D:3 * D]                         # fused K|V projection
        wo = w_all[:, 3 * D:4 * D]
        w1 = w_all[:, 4 * D:]
        w2 = w2_ref[l]                                  # [F, D]

        vec = vec_ref[l]                                # [9, F] packed vectors
        bq = vec[0:1, :D]
        bkv = vec[1:2, :]
        bo = vec[2:3, :D]
        ln1g = vec[3:4, :D]
        ln1b = vec[4:5, :D]
        b1 = vec[5:6, :]
        b2 = vec[6:7, :D]
        ln2g = vec[7:8, :D]
        ln2b = vec[8:9, :D]

        # batched projections (one matmul each, whole batch folded into rows)
        q = jnp.dot(h, wq, preferred_element_type=jnp.float32) + bq          # [B*T, D]
        kv = jnp.dot(ctx_flat, wkv, preferred_element_type=jnp.float32) + bkv  # [B*SP, 2D]

        q3 = q.reshape(B, T, D)                         # aligned reshapes
        kv3 = kv.reshape(B, SP, 2 * D)

        attn = None
        for hd in range(H):                             # static head loop (batch-dim einsums)
            lo = hd * DH
            qh = q3[:, :, lo:lo + DH]                   # [B, T, DH]
            kh = kv3[:, :, lo:lo + DH]                  # [B, SP, DH]
            vh = kv3[:, :, D + lo:D + lo + DH]          # [B, SP, DH]

            s = jnp.einsum('btd,bsd->bts', qh, kh,
                           preferred_element_type=jnp.float32)               # [B, T, SP]
            s = s + kmask                               # padded / masked keys -> -1e30
            s = s - jnp.max(s, axis=-1, keepdims=True)
            p = jnp.exp(s)
            p = p * pl.reciprocal(jnp.sum(p, axis=-1, keepdims=True),
                                  approx=True)          # EUP reciprocal (free slot)
            o_h = jnp.einsum('bts,bsd->btd', p, vh,
                             preferred_element_type=jnp.float32)             # [B, T, DH]
            # fold the head-concat into the Wo contraction (accumulate)
            c = jnp.dot(o_h.reshape(B * T, DH), wo[lo:lo + DH, :],
                        preferred_element_type=jnp.float32)                  # [B*T, D]
            attn = c if attn is None else attn + c
        attn = attn + bo

        h = _layernorm(h + attn, ln1g, ln1b)

        ff = jnp.dot(h, w1, preferred_element_type=jnp.float32) + b1
        # TODO(synk): tanh-approx GELU (PyTorch nn.GELU default is exact erf).
        ff = jax.nn.gelu(ff)
        ff = jnp.dot(ff, w2, preferred_element_type=jnp.float32) + b2

        h = _layernorm(h + ff, ln2g, ln2b)

    y = x_flat + h                                      # x + h
    out = jnp.dot(y, wbn_ref[...], preferred_element_type=jnp.float32) + bbn_ref[...]
    out_ref[...] = out.astype(out_ref.dtype)            # lane-dense [B*T, 128] store


# ----------------------------------------------------------------------------
# Parameter packing (pure JAX, done once outside the kernel)
# ----------------------------------------------------------------------------
def pack_params(p):
    scale = 1.0 / math.sqrt(DH)
    wq_s = p['wq'] * scale                                     # fold softmax scale
    bq_s = p['bq'] * scale
    wkv = jnp.concatenate([p['wk'], p['wv']], axis=-1)         # [NL, D, 2D]
    bkv = jnp.concatenate([p['bk'], p['bv']], axis=-1)         # [NL, 2D] (= [NL, F])
    wbig = jnp.concatenate([wq_s, wkv, p['wo'], p['w1']], axis=-1)  # [NL, D, 4D+F]

    def pad_d(v):                                              # [NL, D] -> [NL, F]
        return jnp.pad(v, ((0, 0), (0, F - D)))

    vec = jnp.stack([pad_d(bq_s), bkv, pad_d(p['bo']),
                     pad_d(p['ln1g']), pad_d(p['ln1b']),
                     p['b1'], pad_d(p['b2']),
                     pad_d(p['ln2g']), pad_d(p['ln2b'])], axis=1)  # [NL, 9, F]

    wbn_pad = jnp.pad(p['wbn'], ((0, 0), (0, DBN_PAD - DBN)))  # [D, 128]
    bbn_pad = jnp.pad(p['bbn'], ((0, 0), (0, DBN_PAD - DBN)))  # [1, 128]
    return {'x0': p['initbottleneck'], 'wbig': wbig, 'w2': p['w2'],
            'vec': vec, 'wbn': wbn_pad, 'bbn': bbn_pad}


def spectra_encoder_pallas(packed, context, mask=None):
    """context: [B, S, D]; mask: optional bool [B, L], True = not measured."""
    ctx_pad = jnp.pad(context, ((0, 0), (0, SP - S), (0, 0)))   # [B, SP, D]

    keymask = jnp.full((B, SP), NEG, jnp.float32)
    keymask = keymask.at[:, :S].set(0.0)                        # real tokens attended
    if mask is not None:
        keymask = keymask.at[:, :L].set(jnp.where(mask, NEG, 0.0))
    kmask = jnp.broadcast_to(keymask[:, None, :], (B, T, SP)).astype(jnp.float32)

    out = pl.pallas_call(
        encoder_kernel,
        out_shape=jax.ShapeDtypeStruct((B * T, DBN_PAD), jnp.float32),
    )(packed['x0'], ctx_pad, kmask, packed['wbig'], packed['w2'],
      packed['vec'], packed['wbn'], packed['bbn'])
    return out[:, :DBN].reshape(B, T, DBN)


# ----------------------------------------------------------------------------
# Embedding glue (plain JAX): SinusoidalMLPPositionalEmbedding + flux Linear
# ----------------------------------------------------------------------------
def sinusoidal_features(x, dim):
    half = dim // 2
    freqs = jnp.exp(-math.log(10000.0) *
                    jnp.arange(half, dtype=jnp.float32) / half)
    args = x[..., None] * freqs
    return jnp.concatenate([jnp.sin(args), jnp.cos(args)], axis=-1)


def sin_mlp_embed(x, p):
    e = sinusoidal_features(x, D)
    e = jax.nn.gelu(e @ p['w1'] + p['b1'])
    return e @ p['w2'] + p['b2']


def build_context(params, wavelength, flux, phase):
    flux_embd = flux[:, :, None] @ params['flux_w'] + params['flux_b']   # [B,L,D]
    flux_embd = flux_embd + sin_mlp_embed(wavelength, params['wave_mlp'])
    phase_embd = sin_mlp_embed(phase, params['phase_mlp'])               # [B,1,D]
    return jnp.concatenate([flux_embd, phase_embd], axis=1)              # [B,S,D]


# ----------------------------------------------------------------------------
# Pure-JAX reference for the Pallas part (per-sample, vmapped over batch)
# ----------------------------------------------------------------------------
def _ref_sample(params, ctx, keymask_add):
    x0 = params['initbottleneck']
    h = x0
    for l in range(NL):
        q = h @ params['wq'][l] + params['bq'][l]
        k = ctx @ params['wk'][l] + params['bk'][l]
        v = ctx @ params['wv'][l] + params['bv'][l]
        heads = []
        for hd in range(H):
            sl = slice(hd * DH, (hd + 1) * DH)
            s = (q[:, sl] @ k[:, sl].T) / math.sqrt(DH) + keymask_add[None, :]
            p = jax.nn.softmax(s, axis=-1)
            heads.append(p @ v[:, sl])
        attn = jnp.concatenate(heads, axis=-1) @ params['wo'][l] + params['bo'][l]
        h = _layernorm(h + attn, params['ln1g'][l], params['ln1b'][l])
        ff = jax.nn.gelu(h @ params['w1'][l] + params['b1'][l])
        ff = ff @ params['w2'][l] + params['b2'][l]
        h = _layernorm(h + ff, params['ln2g'][l], params['ln2b'][l])
    return (x0 + h) @ params['wbn'] + params['bbn'][0]


# ----------------------------------------------------------------------------
# Deterministic parameter init (synthetic weights; shapes from __init__)
# ----------------------------------------------------------------------------
def init_params(key):
    ks = iter(jax.random.split(key, 32))

    def nrm(shape, scale=0.05):
        return scale * jax.random.normal(next(ks), shape, jnp.float32)

    def mlp_params():
        return {'w1': nrm((D, D)), 'b1': nrm((D,)),
                'w2': nrm((D, D)), 'b2': nrm((D,))}

    return {
        'initbottleneck': jax.random.normal(next(ks), (T, D), jnp.float32),
        'flux_w': nrm((1, D)), 'flux_b': nrm((D,)),
        'wave_mlp': mlp_params(), 'phase_mlp': mlp_params(),
        'wq': nrm((NL, D, D)), 'bq': nrm((NL, D)),
        'wk': nrm((NL, D, D)), 'bk': nrm((NL, D)),
        'wv': nrm((NL, D, D)), 'bv': nrm((NL, D)),
        'wo': nrm((NL, D, D)), 'bo': nrm((NL, D)),
        'ln1g': jnp.ones((NL, D), jnp.float32),
        'ln1b': jnp.zeros((NL, D), jnp.float32),
        'w1': nrm((NL, D, F)), 'b1': nrm((NL, F)),
        'w2': nrm((NL, F, D)), 'b2': nrm((NL, D)),
        'ln2g': jnp.ones((NL, D), jnp.float32),
        'ln2b': jnp.zeros((NL, D), jnp.float32),
        'wbn': nrm((D, DBN)), 'bbn': nrm((1, DBN)),
    }


if __name__ == "__main__":
    key = jax.random.PRNGKey(0)
    pkey, wkey, fkey, phkey, mkey = jax.random.split(key, 5)
    params = init_params(pkey)
    packed = pack_params(params)

    wavelength = jax.random.uniform(wkey, (B, L), jnp.float32, 0.0, 10.0)
    flux = jax.random.normal(fkey, (B, L), jnp.float32)
    phase = jax.random.uniform(phkey, (B, 1), jnp.float32, 0.0, 5.0)

    context = build_context(params, wavelength, flux, phase)      # [B, S, D]

    # --- unmasked forward ---
    out = spectra_encoder_pallas(packed, context)                 # [B, T, DBN]
    out = jax.block_until_ready(out)

    km0 = jnp.zeros((B, S), jnp.float32)
    ref = jax.vmap(lambda c, m: _ref_sample(params, c, m))(context, km0)
    assert out.shape == (B, T, DBN)
    err = float(jnp.max(jnp.abs(out - ref)))
    assert jnp.allclose(out, ref, atol=2e-3, rtol=2e-3), err

    # --- masked forward (key-padding mask over the flux tokens) ---
    mask = jax.random.bernoulli(mkey, 0.3, (B, L))
    out_m = spectra_encoder_pallas(packed, context, mask=mask)
    out_m = jax.block_until_ready(out_m)
    km = jnp.concatenate([jnp.where(mask, NEG, 0.0),
                          jnp.zeros((B, 1), jnp.float32)], axis=1)  # [B, S]
    ref_m = jax.vmap(lambda c, m: _ref_sample(params, c, m))(context, km)
    err_m = float(jnp.max(jnp.abs(out_m - ref_m)))
    assert jnp.allclose(out_m, ref_m, atol=2e-3, rtol=2e-3), err_m

    print("KERNEL_OK")
</pallas_src>

<mosaic_0001>
module attributes {stable_mosaic.version = 11 : i64} {
  func.func @encoder_kernel(%arg0: memref<8x32xf32, #tpu.memory_space<vmem>>, %arg1: memref<2x24x32xf32, #tpu.memory_space<vmem>>, %arg2: memref<2x8x24xf32, #tpu.memory_space<vmem>>, %arg3: memref<2x32x192xf32, #tpu.memory_space<vmem>>, %arg4: memref<2x64x32xf32, #tpu.memory_space<vmem>>, %arg5: memref<2x9x64xf32, #tpu.memory_space<vmem>>, %arg6: memref<32x128xf32, #tpu.memory_space<vmem>>, %arg7: memref<1x128xf32, #tpu.memory_space<vmem>>, %arg8: memref<16x128xf32, #tpu.memory_space<vmem>>) attributes {dimension_semantics = [], scalar_prefetch = 0 : i64, scratch_operands = 0 : i64, tpu.core_type = #tpu.core_type<tc>} {
    %c0 = arith.constant 0 : index
    %c0_0 = arith.constant 0 : index
    %0 = vector.load %arg0[%c0, %c0_0] : memref<8x32xf32, #tpu.memory_space<vmem>>, vector<8x32xf32>
    %1 = tpu.concatenate %0, %0 in 0 : vector<8x32xf32>, vector<8x32xf32> -> vector<16x32xf32>
    %c0_1 = arith.constant 0 : index
    %c0_2 = arith.constant 0 : index
    %c0_3 = arith.constant 0 : index
    %2 = vector.load %arg1[%c0_1, %c0_2, %c0_3] : memref<2x24x32xf32, #tpu.memory_space<vmem>>, vector<2x24x32xf32>
    %3 = vector.shape_cast %2 : vector<2x24x32xf32> to vector<48x32xf32>
    %c0_4 = arith.constant 0 : index
    %c0_5 = arith.constant 0 : index
    %c0_6 = arith.constant 0 : index
    %4 = vector.load %arg2[%c0_4, %c0_5, %c0_6] : memref<2x8x24xf32, #tpu.memory_space<vmem>>, vector<2x8x24xf32>
    %c0_7 = arith.constant 0 : index
    %c0_8 = arith.constant 0 : index
    %c0_9 = arith.constant 0 : index
    %5 = vector.load %arg3[%c0_7, %c0_8, %c0_9] : memref<2x32x192xf32, #tpu.memory_space<vmem>>, vector<1x32x192xf32>
    %6 = vector.shape_cast %5 : vector<1x32x192xf32> to vector<32x192xf32>
    %7 = vector.extract_strided_slice %6 {offsets = [0, 0], sizes = [32, 32], strides = [1, 1]} : vector<32x192xf32> to vector<32x32xf32>
    %8 = vector.extract_strided_slice %6 {offsets = [0, 32], sizes = [32, 64], strides = [1, 1]} : vector<32x192xf32> to vector<32x64xf32>
    %9 = vector.extract_strided_slice %6 {offsets = [0, 96], sizes = [32, 32], strides = [1, 1]} : vector<32x192xf32> to vector<32x32xf32>
    %10 = vector.extract_strided_slice %6 {offsets = [0, 128], sizes = [32, 64], strides = [1, 1]} : vector<32x192xf32> to vector<32x64xf32>
    %c0_10 = arith.constant 0 : index
    %c0_11 = arith.constant 0 : index
    %c0_12 = arith.constant 0 : index
    %11 = vector.load %arg4[%c0_10, %c0_11, %c0_12] : memref<2x64x32xf32, #tpu.memory_space<vmem>>, vector<1x64x32xf32>
    %12 = vector.shape_cast %11 : vector<1x64x32xf32> to vector<64x32xf32>
    %c0_13 = arith.constant 0 : index
    %c0_14 = arith.constant 0 : index
    %c0_15 = arith.constant 0 : index
    %13 = vector.load %arg5[%c0_13, %c0_14, %c0_15] : memref<2x9x64xf32, #tpu.memory_space<vmem>>, vector<1x9x64xf32>
    %14 = vector.shape_cast %13 : vector<1x9x64xf32> to vector<9x64xf32>
    %15 = vector.extract_strided_slice %14 {offsets = [0, 0], sizes = [1, 32], strides = [1, 1]} : vector<9x64xf32> to vector<1x32xf32>
    %16 = vector.extract_strided_slice %14 {offsets = [1, 0], sizes = [1, 64], strides = [1, 1]} : vector<9x64xf32> to vector<1x64xf32>
    %17 = vector.extract_strided_slice %14 {offsets = [2, 0], sizes = [1, 32], strides = [1, 1]} : vector<9x64xf32> to vector<1x32xf32>
    %18 = vector.extract_strided_slice %14 {offsets = [3, 0], sizes = [1, 32], strides = [1, 1]} : vector<9x64xf32> to vector<1x32xf32>
    %19 = vector.extract_strided_slice %14 {offsets = [4, 0], sizes = [1, 32], strides = [1, 1]} : vector<9x64xf32> to vector<1x32xf32>
    %20 = vector.extract_strided_slice %14 {offsets = [5, 0], sizes = [1, 64], strides = [1, 1]} : vector<9x64xf32> to vector<1x64xf32>
    %21 = vector.extract_strided_slice %14 {offsets = [6, 0], sizes = [1, 32], strides = [1, 1]} : vector<9x64xf32> to vector<1x32xf32>
    %22 = vector.extract_strided_slice %14 {offsets = [7, 0], sizes = [1, 32], strides = [1, 1]} : vector<9x64xf32> to vector<1x32xf32>
    %23 = vector.extract_strided_slice %14 {offsets = [8, 0], sizes = [1, 32], strides = [1, 1]} : vector<9x64xf32> to vector<1x32xf32>
    %cst = arith.constant dense<0.000000e+00> : vector<16x32xf32>
    %24 = tpu.matmul %1, %7, %cst {dimension_numbers = #tpu.dot_dimension_numbers<[1], [0], [0], [1], [0, 0, 1, 1], [], []>} : vector<16x32xf32>, vector<32x32xf32>, vector<16x32xf32> -> vector<16x32xf32>
    %25 = vector.broadcast %15 : vector<1x32xf32> to vector<16x32xf32>
    %26 = arith.addf %24, %25 : vector<16x32xf32>
    %cst_16 = arith.constant dense<0.000000e+00> : vector<48x64xf32>
    %27 = tpu.matmul %3, %8, %cst_16 {dimension_numbers = #tpu.dot_dimension_numbers<[1], [0], [0], [1], [0, 0, 1, 1], [], []>} : vector<48x32xf32>, vector<32x64xf32>, vector<48x64xf32> -> vector<48x64xf32>
    %28 = vector.broadcast %16 : vector<1x64xf32> to vector<48x64xf32>
    %29 = arith.addf %27, %28 : vector<48x64xf32>
    %30 = vector.shape_cast %26 : vector<16x32xf32> to vector<2x8x32xf32>
    %31 = vector.shape_cast %29 : vector<48x64xf32> to vector<2x24x64xf32>
    %32 = vector.extract_strided_slice %30 {offsets = [0, 0, 0], sizes = [2, 8, 8], strides = [1, 1, 1]} : vector<2x8x32xf32> to vector<2x8x8xf32>
    %33 = vector.extract_strided_slice %31 {offsets = [0, 0, 0], sizes = [2, 24, 8], strides = [1, 1, 1]} : vector<2x24x64xf32> to vector<2x24x8xf32>
    %34 = vector.extract_strided_slice %31 {offsets = [0, 0, 32], sizes = [2, 24, 8], strides = [1, 1, 1]} : vector<2x24x64xf32> to vector<2x24x8xf32>
    "tpu.trace_start"() <{level = 10 : i32, message = "btd,bsd->bts"}> : () -> ()
    %cst_17 = arith.constant dense<0.000000e+00> : vector<2x8x24xf32>
    %35 = tpu.matmul %32, %33, %cst_17 {dimension_numbers = #tpu.dot_dimension_numbers<[2], [2], [1], [1], [0, 0, 0, 1, 1, 1], [0], [0]>} : vector<2x8x8xf32>, vector<2x24x8xf32>, vector<2x8x24xf32> -> vector<2x8x24xf32>
    "tpu.trace_stop"() : () -> ()
    %36 = arith.addf %35, %4 : vector<2x8x24xf32>
    %cst_18 = arith.constant dense<0xFF800000> : vector<2x8xf32>
    %37 = vector.multi_reduction <maximumf>, %36, %cst_18 [2] : vector<2x8x24xf32> to vector<2x8xf32>
    %38 = vector.shape_cast %37 : vector<2x8xf32> to vector<2x8x1xf32>
    %39 = vector.broadcast %38 : vector<2x8x1xf32> to vector<2x8x24xf32>
    %40 = arith.subf %36, %39 : vector<2x8x24xf32>
    %41 = math.exp %40 : vector<2x8x24xf32>
    %cst_19 = arith.constant dense<0.000000e+00> : vector<2x8xf32>
    %42 = vector.multi_reduction <add>, %41, %cst_19 [2] : vector<2x8x24xf32> to vector<2x8xf32>
    %43 = vector.shape_cast %42 : vector<2x8xf32> to vector<2x8x1xf32>
    %44 = tpu.reciprocal %43 {approx = true} : vector<2x8x1xf32> -> vector<2x8x1xf32>
    %45 = vector.broadcast %44 : vector<2x8x1xf32> to vector<2x8x24xf32>
    %46 = arith.mulf %41, %45 : vector<2x8x24xf32>
    "tpu.trace_start"() <{level = 10 : i32, message = "bts,bsd->btd"}> : () -> ()
    %cst_20 = arith.constant dense<0.000000e+00> : vector<2x8x8xf32>
    %47 = tpu.matmul %46, %34, %cst_20 {dimension_numbers = #tpu.dot_dimension_numbers<[2], [1], [1], [2], [0, 0, 0, 1, 1, 2], [0], [0]>} : vector<2x8x24xf32>, vector<2x24x8xf32>, vector<2x8x8xf32> -> vector<2x8x8xf32>
    "tpu.trace_stop"() : () -> ()
    %48 = vector.shape_cast %47 : vector<2x8x8xf32> to vector<16x8xf32>
    %49 = vector.extract_strided_slice %9 {offsets = [0, 0], sizes = [8, 32], strides = [1, 1]} : vector<32x32xf32> to vector<8x32xf32>
    %cst_21 = arith.constant dense<0.000000e+00> : vector<16x32xf32>
    %50 = tpu.matmul %48, %49, %cst_21 {dimension_numbers = #tpu.dot_dimension_numbers<[1], [0], [0], [1], [0, 0, 1, 1], [], []>} : vector<16x8xf32>, vector<8x32xf32>, vector<16x32xf32> -> vector<16x32xf32>
    %51 = vector.extract_strided_slice %30 {offsets = [0, 0, 8], sizes = [2, 8, 8], strides = [1, 1, 1]} : vector<2x8x32xf32> to vector<2x8x8xf32>
    %52 = vector.extract_strided_slice %31 {offsets = [0, 0, 8], sizes = [2, 24, 8], strides = [1, 1, 1]} : vector<2x24x64xf32> to vector<2x24x8xf32>
    %53 = vector.extract_strided_slice %31 {offsets = [0, 0, 40], sizes = [2, 24, 8], strides = [1, 1, 1]} : vector<2x24x64xf32> to vector<2x24x8xf32>
    "tpu.trace_start"() <{level = 10 : i32, message = "btd,bsd->bts"}> : () -> ()
    %cst_22 = arith.constant dense<0.000000e+00> : vector<2x8x24xf32>
    %54 = tpu.matmul %51, %52, %cst_22 {dimension_numbers = #tpu.dot_dimension_numbers<[2], [2], [1], [1], [0, 0, 0, 1, 1, 1], [0], [0]>} : vector<2x8x8xf32>, vector<2x24x8xf32>, vector<2x8x24xf32> -> vector<2x8x24xf32>
    "tpu.trace_stop"() : () -> ()
    %55 = arith.addf %54, %4 : vector<2x8x24xf32>
    %cst_23 = arith.constant dense<0xFF800000> : vector<2x8xf32>
    %56 = vector.multi_reduction <maximumf>, %55, %cst_23 [2] : vector<2x8x24xf32> to vector<2x8xf32>
    %57 = vector.shape_cast %56 : vector<2x8xf32> to vector<2x8x1xf32>
    %58 = vector.broadcast %57 : vector<2x8x1xf32> to vector<2x8x24xf32>
    %59 = arith.subf %55, %58 : vector<2x8x24xf32>
    %60 = math.exp %59 : vector<2x8x24xf32>
    %cst_24 = arith.constant dense<0.000000e+00> : vector<2x8xf32>
    %61 = vector.multi_reduction <add>, %60, %cst_24 [2] : vector<2x8x24xf32> to vector<2x8xf32>
    %62 = vector.shape_cast %61 : vector<2x8xf32> to vector<2x8x1xf32>
    %63 = tpu.reciprocal %62 {approx = true} : vector<2x8x1xf32> -> vector<2x8x1xf32>
    %64 = vector.broadcast %63 : vector<2x8x1xf32> to vector<2x8x24xf32>
    %65 = arith.mulf %60, %64 : vector<2x8x24xf32>
    "tpu.trace_start"() <{level = 10 : i32, message = "bts,bsd->btd"}> : () -> ()
    %cst_25 = arith.constant dense<0.000000e+00> : vector<2x8x8xf32>
    %66 = tpu.matmul %65, %53, %cst_25 {dimension_numbers = #tpu.dot_dimension_numbers<[2], [1], [1], [2], [0, 0, 0, 1, 1, 2], [0], [0]>} : vector<2x8x24xf32>, vector<2x24x8xf32>, vector<2x8x8xf32> -> vector<2x8x8xf32>
    "tpu.trace_stop"() : () -> ()
    %67 = vector.shape_cast %66 : vector<2x8x8xf32> to vector<16x8xf32>
    %68 = vector.extract_strided_slice %9 {offsets = [8, 0], sizes = [8, 32], strides = [1, 1]} : vector<32x32xf32> to vector<8x32xf32>
    %cst_26 = arith.constant dense<0.000000e+00> : vector<16x32xf32>
    %69 = tpu.matmul %67, %68, %cst_26 {dimension_numbers = #tpu.dot_dimension_numbers<[1], [0], [0], [1], [0, 0, 1, 1], [], []>} : vector<16x8xf32>, vector<8x32xf32>, vector<16x32xf32> -> vector<16x32xf32>
    %70 = arith.addf %50, %69 : vector<16x32xf32>
    %71 = vector.extract_strided_slice %30 {offsets = [0, 0, 16], sizes = [2, 8, 8], strides = [1, 1, 1]} : vector<2x8x32xf32> to vector<2x8x8xf32>
    %72 = vector.extract_strided_slice %31 {offsets = [0, 0, 16], sizes = [2, 24, 8], strides = [1, 1, 1]} : vector<2x24x64xf32> to vector<2x24x8xf32>
    %73 = vector.extract_strided_slice %31 {offsets = [0, 0, 48], sizes = [2, 24, 8], strides = [1, 1, 1]} : vector<2x24x64xf32> to vector<2x24x8xf32>
    "tpu.trace_start"() <{level = 10 : i32, message = "btd,bsd->bts"}> : () -> ()
    %cst_27 = arith.constant dense<0.000000e+00> : vector<2x8x24xf32>
    %74 = tpu.matmul %71, %72, %cst_27 {dimension_numbers = #tpu.dot_dimension_numbers<[2], [2], [1], [1], [0, 0, 0, 1, 1, 1], [0], [0]>} : vector<2x8x8xf32>, vector<2x24x8xf32>, vector<2x8x24xf32> -> vector<2x8x24xf32>
    "tpu.trace_stop"() : () -> ()
    %75 = arith.addf %74, %4 : vector<2x8x24xf32>
    %cst_28 = arith.constant dense<0xFF800000> : vector<2x8xf32>
    %76 = vector.multi_reduction <maximumf>, %75, %cst_28 [2] : vector<2x8x24xf32> to vector<2x8xf32>
    %77 = vector.shape_cast %76 : vector<2x8xf32> to vector<2x8x1xf32>
    %78 = vector.broadcast %77 : vector<2x8x1xf32> to vector<2x8x24xf32>
    %79 = arith.subf %75, %78 : vector<2x8x24xf32>
    %80 = math.exp %79 : vector<2x8x24xf32>
    %cst_29 = arith.constant dense<0.000000e+00> : vector<2x8xf32>
    %81 = vector.multi_reduction <add>, %80, %cst_29 [2] : vector<2x8x24xf32> to vector<2x8xf32>
    %82 = vector.shape_cast %81 : vector<2x8xf32> to vector<2x8x1xf32>
    %83 = tpu.reciprocal %82 {approx = true} : vector<2x8x1xf32> -> vector<2x8x1xf32>
    %84 = vector.broadcast %83 : vector<2x8x1xf32> to vector<2x8x24xf32>
    %85 = arith.mulf %80, %84 : vector<2x8x24xf32>
    "tpu.trace_start"() <{level = 10 : i32, message = "bts,bsd->btd"}> : () -> ()
    %cst_30 = arith.constant dense<0.000000e+00> : vector<2x8x8xf32>
    %86 = tpu.matmul %85, %73, %cst_30 {dimension_numbers = #tpu.dot_dimension_numbers<[2], [1], [1], [2], [0, 0, 0, 1, 1, 2], [0], [0]>} : vector<2x8x24xf32>, vector<2x24x8xf32>, vector<2x8x8xf32> -> vector<2x8x8xf32>
    "tpu.trace_stop"() : () -> ()
    %87 = vector.shape_cast %86 : vector<2x8x8xf32> to vector<16x8xf32>
    %88 = vector.extract_strided_slice %9 {offsets = [16, 0], sizes = [8, 32], strides = [1, 1]} : vector<32x32xf32> to vector<8x32xf32>
    %cst_31 = arith.constant dense<0.000000e+00> : vector<16x32xf32>
    %89 = tpu.matmul %87, %88, %cst_31 {dimension_numbers = #tpu.dot_dimension_numbers<[1], [0], [0], [1], [0, 0, 1, 1], [], []>} : vector<16x8xf32>, vector<8x32xf32>, vector<16x32xf32> -> vector<16x32xf32>
    %90 = arith.addf %70, %89 : vector<16x32xf32>
    %91 = vector.extract_strided_slice %30 {offsets = [0, 0, 24], sizes = [2, 8, 8], strides = [1, 1, 1]} : vector<2x8x32xf32> to vector<2x8x8xf32>
    %92 = vector.extract_strided_slice %31 {offsets = [0, 0, 24], sizes = [2, 24, 8], strides = [1, 1, 1]} : vector<2x24x64xf32> to vector<2x24x8xf32>
    %93 = vector.extract_strided_slice %31 {offsets = [0, 0, 56], sizes = [2, 24, 8], strides = [1, 1, 1]} : vector<2x24x64xf32> to vector<2x24x8xf32>
    "tpu.trace_start"() <{level = 10 : i32, message = "btd,bsd->bts"}> : () -> ()
    %cst_32 = arith.constant dense<0.000000e+00> : vector<2x8x24xf32>
    %94 = tpu.matmul %91, %92, %cst_32 {dimension_numbers = #tpu.dot_dimension_numbers<[2], [2], [1], [1], [0, 0, 0, 1, 1, 1], [0], [0]>} : vector<2x8x8xf32>, vector<2x24x8xf32>, vector<2x8x24xf32> -> vector<2x8x24xf32>
    "tpu.trace_stop"() : () -> ()
    %95 = arith.addf %94, %4 : vector<2x8x24xf32>
    %cst_33 = arith.constant dense<0xFF800000> : vector<2x8xf32>
    %96 = vector.multi_reduction <maximumf>, %95, %cst_33 [2] : vector<2x8x24xf32> to vector<2x8xf32>
    %97 = vector.shape_cast %96 : vector<2x8xf32> to vector<2x8x1xf32>
    %98 = vector.broadcast %97 : vector<2x8x1xf32> to vector<2x8x24xf32>
    %99 = arith.subf %95, %98 : vector<2x8x24xf32>
    %100 = math.exp %99 : vector<2x8x24xf32>
    %cst_34 = arith.constant dense<0.000000e+00> : vector<2x8xf32>
    %101 = vector.multi_reduction <add>, %100, %cst_34 [2] : vector<2x8x24xf32> to vector<2x8xf32>
    %102 = vector.shape_cast %101 : vector<2x8xf32> to vector<2x8x1xf32>
    %103 = tpu.reciprocal %102 {approx = true} : vector<2x8x1xf32> -> vector<2x8x1xf32>
    %104 = vector.broadcast %103 : vector<2x8x1xf32> to vector<2x8x24xf32>
    %105 = arith.mulf %100, %104 : vector<2x8x24xf32>
    "tpu.trace_start"() <{level = 10 : i32, message = "bts,bsd->btd"}> : () -> ()
    %cst_35 = arith.constant dense<0.000000e+00> : vector<2x8x8xf32>
    %106 = tpu.matmul %105, %93, %cst_35 {dimension_numbers = #tpu.dot_dimension_numbers<[2], [1], [1], [2], [0, 0, 0, 1, 1, 2], [0], [0]>} : vector<2x8x24xf32>, vector<2x24x8xf32>, vector<2x8x8xf32> -> vector<2x8x8xf32>
    "tpu.trace_stop"() : () -> ()
    %107 = vector.shape_cast %106 : vector<2x8x8xf32> to vector<16x8xf32>
    %108 = vector.extract_strided_slice %9 {offsets = [24, 0], sizes = [8, 32], strides = [1, 1]} : vector<32x32xf32> to vector<8x32xf32>
    %cst_36 = arith.constant dense<0.000000e+00> : vector<16x32xf32>
    %109 = tpu.matmul %107, %108, %cst_36 {dimension_numbers = #tpu.dot_dimension_numbers<[1], [0], [0], [1], [0, 0, 1, 1], [], []>} : vector<16x8xf32>, vector<8x32xf32>, vector<16x32xf32> -> vector<16x32xf32>
    %110 = arith.addf %90, %109 : vector<16x32xf32>
    %111 = vector.broadcast %17 : vector<1x32xf32> to vector<16x32xf32>
    %112 = arith.addf %110, %111 : vector<16x32xf32>
    %113 = arith.addf %1, %112 : vector<16x32xf32>
    %cst_37 = arith.constant dense<0.000000e+00> : vector<16xf32>
    %114 = vector.multi_reduction <add>, %113, %cst_37 [1] : vector<16x32xf32> to vector<16xf32>
    %115 = vector.shape_cast %114 : vector<16xf32> to vector<16x1xf32>
    %cst_38 = arith.constant 3.200000e+01 : f32
    %116 = vector.broadcast %cst_38 : f32 to vector<16x1xf32>
    %117 = arith.divf %115, %116 : vector<16x1xf32>
    %118 = vector.broadcast %117 : vector<16x1xf32> to vector<16x32xf32>
    %119 = arith.subf %113, %118 : vector<16x32xf32>
    %120 = arith.mulf %119, %119 : vector<16x32xf32>
    %cst_39 = arith.constant dense<0.000000e+00> : vector<16xf32>
    %121 = vector.multi_reduction <add>, %120, %cst_39 [1] : vector<16x32xf32> to vector<16xf32>
    %122 = vector.shape_cast %121 : vector<16xf32> to vector<16x1xf32>
    %cst_40 = arith.constant 3.200000e+01 : f32
    %123 = vector.broadcast %cst_40 : f32 to vector<16x1xf32>
    %124 = arith.divf %122, %123 : vector<16x1xf32>
    %125 = vector.broadcast %117 : vector<16x1xf32> to vector<16x32xf32>
    %126 = arith.subf %113, %125 : vector<16x32xf32>
    %cst_41 = arith.constant 9.99999974E-6 : f32
    %127 = vector.broadcast %cst_41 : f32 to vector<16x1xf32>
    %128 = arith.addf %124, %127 : vector<16x1xf32>
    %129 = math.rsqrt %128 : vector<16x1xf32>
    %130 = vector.broadcast %129 : vector<16x1xf32> to vector<16x32xf32>
    %131 = arith.mulf %126, %130 : vector<16x32xf32>
    %132 = vector.broadcast %18 : vector<1x32xf32> to vector<16x32xf32>
    %133 = arith.mulf %131, %132 : vector<16x32xf32>
    %134 = vector.broadcast %19 : vector<1x32xf32> to vector<16x32xf32>
    %135 = arith.addf %133, %134 : vector<16x32xf32>
    %cst_42 = arith.constant dense<0.000000e+00> : vector<16x64xf32>
    %136 = tpu.matmul %135, %10, %cst_42 {dimension_numbers = #tpu.dot_dimension_numbers<[1], [0], [0], [1], [0, 0, 1, 1], [], []>} : vector<16x32xf32>, vector<32x64xf32>, vector<16x64xf32> -> vector<16x64xf32>
    %137 = vector.broadcast %20 : vector<1x64xf32> to vector<16x64xf32>
    %138 = arith.addf %136, %137 : vector<16x64xf32>
    %139 = arith.mulf %138, %138 : vector<16x64xf32>
    %140 = arith.mulf %138, %139 : vector<16x64xf32>
    %cst_43 = arith.constant 4.471500e-02 : f32
    %141 = vector.broadcast %cst_43 : f32 to vector<16x64xf32>
    %142 = arith.mulf %141, %140 : vector<16x64xf32>
    %143 = arith.addf %138, %142 : vector<16x64xf32>
    %cst_44 = arith.constant 0.797884583 : f32
    %144 = vector.broadcast %cst_44 : f32 to vector<16x64xf32>
    %145 = arith.mulf %144, %143 : vector<16x64xf32>
    %146 = math.tanh %145 : vector<16x64xf32>
    %cst_45 = arith.constant 1.000000e+00 : f32
    %147 = vector.broadcast %cst_45 : f32 to vector<16x64xf32>
    %148 = arith.addf %147, %146 : vector<16x64xf32>
    %cst_46 = arith.constant 5.000000e-01 : f32
    %149 = vector.broadcast %cst_46 : f32 to vector<16x64xf32>
    %150 = arith.mulf %149, %148 : vector<16x64xf32>
    %151 = arith.mulf %138, %150 : vector<16x64xf32>
    %cst_47 = arith.constant dense<0.000000e+00> : vector<16x32xf32>
    %152 = tpu.matmul %151, %12, %cst_47 {dimension_numbers = #tpu.dot_dimension_numbers<[1], [0], [0], [1], [0, 0, 1, 1], [], []>} : vector<16x64xf32>, vector<64x32xf32>, vector<16x32xf32> -> vector<16x32xf32>
    %153 = vector.broadcast %21 : vector<1x32xf32> to vector<16x32xf32>
    %154 = arith.addf %152, %153 : vector<16x32xf32>
    %155 = arith.addf %135, %154 : vector<16x32xf32>
    %cst_48 = arith.constant dense<0.000000e+00> : vector<16xf32>
    %156 = vector.multi_reduction <add>, %155, %cst_48 [1] : vector<16x32xf32> to vector<16xf32>
    %157 = vector.shape_cast %156 : vector<16xf32> to vector<16x1xf32>
    %cst_49 = arith.constant 3.200000e+01 : f32
    %158 = vector.broadcast %cst_49 : f32 to vector<16x1xf32>
    %159 = arith.divf %157, %158 : vector<16x1xf32>
    %160 = vector.broadcast %159 : vector<16x1xf32> to vector<16x32xf32>
    %161 = arith.subf %155, %160 : vector<16x32xf32>
    %162 = arith.mulf %161, %161 : vector<16x32xf32>
    %cst_50 = arith.constant dense<0.000000e+00> : vector<16xf32>
    %163 = vector.multi_reduction <add>, %162, %cst_50 [1] : vector<16x32xf32> to vector<16xf32>
    %164 = vector.shape_cast %163 : vector<16xf32> to vector<16x1xf32>
    %cst_51 = arith.constant 3.200000e+01 : f32
    %165 = vector.broadcast %cst_51 : f32 to vector<16x1xf32>
    %166 = arith.divf %164, %165 : vector<16x1xf32>
    %167 = vector.broadcast %159 : vector<16x1xf32> to vector<16x32xf32>
    %168 = arith.subf %155, %167 : vector<16x32xf32>
    %cst_52 = arith.constant 9.99999974E-6 : f32
    %169 = vector.broadcast %cst_52 : f32 to vector<16x1xf32>
    %170 = arith.addf %166, %169 : vector<16x1xf32>
    %171 = math.rsqrt %170 : vector<16x1xf32>
    %172 = vector.broadcast %171 : vector<16x1xf32> to vector<16x32xf32>
    %173 = arith.mulf %168, %172 : vector<16x32xf32>
    %174 = vector.broadcast %22 : vector<1x32xf32> to vector<16x32xf32>
    %175 = arith.mulf %173, %174 : vector<16x32xf32>
    %176 = vector.broadcast %23 : vector<1x32xf32> to vector<16x32xf32>
    %177 = arith.addf %175, %176 : vector<16x32xf32>
    %c1 = arith.constant 1 : index
    %c0_53 = arith.constant 0 : index
    %c0_54 = arith.constant 0 : index
    %178 = vector.load %arg3[%c1, %c0_53, %c0_54] : memref<2x32x192xf32, #tpu.memory_space<vmem>>, vector<1x32x192xf32>
    %179 = vector.shape_cast %178 : vector<1x32x192xf32> to vector<32x192xf32>
    %180 = vector.extract_strided_slice %179 {offsets = [0, 0], sizes = [32, 32], strides = [1, 1]} : vector<32x192xf32> to vector<32x32xf32>
    %181 = vector.extract_strided_slice %179 {offsets = [0, 32], sizes = [32, 64], strides = [1, 1]} : vector<32x192xf32> to vector<32x64xf32>
    %182 = vector.extract_strided_slice %179 {offsets = [0, 96], sizes = [32, 32], strides = [1, 1]} : vector<32x192xf32> to vector<32x32xf32>
    %183 = vector.extract_strided_slice %179 {offsets = [0, 128], sizes = [32, 64], strides = [1, 1]} : vector<32x192xf32> to vector<32x64xf32>
    %c1_55 = arith.constant 1 : index
    %c0_56 = arith.constant 0 : index
    %c0_57 = arith.constant 0 : index
    %184 = vector.load %arg4[%c1_55, %c0_56, %c0_57] : memref<2x64x32xf32, #tpu.memory_space<vmem>>, vector<1x64x32xf32>
    %185 = vector.shape_cast %184 : vector<1x64x32xf32> to vector<64x32xf32>
    %c1_58 = arith.constant 1 : index
    %c0_59 = arith.constant 0 : index
    %c0_60 = arith.constant 0 : index
    %186 = vector.load %arg5[%c1_58, %c0_59, %c0_60] : memref<2x9x64xf32, #tpu.memory_space<vmem>>, vector<1x9x64xf32>
    %187 = vector.shape_cast %186 : vector<1x9x64xf32> to vector<9x64xf32>
    %188 = vector.extract_strided_slice %187 {offsets = [0, 0], sizes = [1, 32], strides = [1, 1]} : vector<9x64xf32> to vector<1x32xf32>
    %189 = vector.extract_strided_slice %187 {offsets = [1, 0], sizes = [1, 64], strides = [1, 1]} : vector<9x64xf32> to vector<1x64xf32>
    %190 = vector.extract_strided_slice %187 {offsets = [2, 0], sizes = [1, 32], strides = [1, 1]} : vector<9x64xf32> to vector<1x32xf32>
    %191 = vector.extract_strided_slice %187 {offsets = [3, 0], sizes = [1, 32], strides = [1, 1]} : vector<9x64xf32> to vector<1x32xf32>
    %192 = vector.extract_strided_slice %187 {offsets = [4, 0], sizes = [1, 32], strides = [1, 1]} : vector<9x64xf32> to vector<1x32xf32>
    %193 = vector.extract_strided_slice %187 {offsets = [5, 0], sizes = [1, 64], strides = [1, 1]} : vector<9x64xf32> to vector<1x64xf32>
    %194 = vector.extract_strided_slice %187 {offsets = [6, 0], sizes = [1, 32], strides = [1, 1]} : vector<9x64xf32> to vector<1x32xf32>
    %195 = vector.extract_strided_slice %187 {offsets = [7, 0], sizes = [1, 32], strides = [1, 1]} : vector<9x64xf32> to vector<1x32xf32>
    %196 = vector.extract_strided_slice %187 {offsets = [8, 0], sizes = [1, 32], strides = [1, 1]} : vector<9x64xf32> to vector<1x32xf32>
    %cst_61 = arith.constant dense<0.000000e+00> : vector<16x32xf32>
    %197 = tpu.matmul %177, %180, %cst_61 {dimension_numbers = #tpu.dot_dimension_numbers<[1], [0], [0], [1], [0, 0, 1, 1], [], []>} : vector<16x32xf32>, vector<32x32xf32>, vector<16x32xf32> -> vector<16x32xf32>
    %198 = vector.broadcast %188 : vector<1x32xf32> to vector<16x32xf32>
    %199 = arith.addf %197, %198 : vector<16x32xf32>
    %cst_62 = arith.constant dense<0.000000e+00> : vector<48x64xf32>
    %200 = tpu.matmul %3, %181, %cst_62 {dimension_numbers = #tpu.dot_dimension_numbers<[1], [0], [0], [1], [0, 0, 1, 1], [], []>} : vector<48x32xf32>, vector<32x64xf32>, vector<48x64xf32> -> vector<48x64xf32>
    %201 = vector.broadcast %189 : vector<1x64xf32> to vector<48x64xf32>
    %202 = arith.addf %200, %201 : vector<48x64xf32>
    %203 = vector.shape_cast %199 : vector<16x32xf32> to vector<2x8x32xf32>
    %204 = vector.shape_cast %202 : vector<48x64xf32> to vector<2x24x64xf32>
    %205 = vector.extract_strided_slice %203 {offsets = [0, 0, 0], sizes = [2, 8, 8], strides = [1, 1, 1]} : vector<2x8x32xf32> to vector<2x8x8xf32>
    %206 = vector.extract_strided_slice %204 {offsets = [0, 0, 0], sizes = [2, 24, 8], strides = [1, 1, 1]} : vector<2x24x64xf32> to vector<2x24x8xf32>
    %207 = vector.extract_strided_slice %204 {offsets = [0, 0, 32], sizes = [2, 24, 8], strides = [1, 1, 1]} : vector<2x24x64xf32> to vector<2x24x8xf32>
    "tpu.trace_start"() <{level = 10 : i32, message = "btd,bsd->bts"}> : () -> ()
    %cst_63 = arith.constant dense<0.000000e+00> : vector<2x8x24xf32>
    %208 = tpu.matmul %205, %206, %cst_63 {dimension_numbers = #tpu.dot_dimension_numbers<[2], [2], [1], [1], [0, 0, 0, 1, 1, 1], [0], [0]>} : vector<2x8x8xf32>, vector<2x24x8xf32>, vector<2x8x24xf32> -> vector<2x8x24xf32>
    "tpu.trace_stop"() : () -> ()
    %209 = arith.addf %208, %4 : vector<2x8x24xf32>
    %cst_64 = arith.constant dense<0xFF800000> : vector<2x8xf32>
    %210 = vector.multi_reduction <maximumf>, %209, %cst_64 [2] : vector<2x8x24xf32> to vector<2x8xf32>
    %211 = vector.shape_cast %210 : vector<2x8xf32> to vector<2x8x1xf32>
    %212 = vector.broadcast %211 : vector<2x8x1xf32> to vector<2x8x24xf32>
    %213 = arith.subf %209, %212 : vector<2x8x24xf32>
    %214 = math.exp %213 : vector<2x8x24xf32>
    %cst_65 = arith.constant dense<0.000000e+00> : vector<2x8xf32>
    %215 = vector.multi_reduction <add>, %214, %cst_65 [2] : vector<2x8x24xf32> to vector<2x8xf32>
    %216 = vector.shape_cast %215 : vector<2x8xf32> to vector<2x8x1xf32>
    %217 = tpu.reciprocal %216 {approx = true} : vector<2x8x1xf32> -> vector<2x8x1xf32>
    %218 = vector.broadcast %217 : vector<2x8x1xf32> to vector<2x8x24xf32>
    %219 = arith.mulf %214, %218 : vector<2x8x24xf32>
    "tpu.trace_start"() <{level = 10 : i32, message = "bts,bsd->btd"}> : () -> ()
    %cst_66 = arith.constant dense<0.000000e+00> : vector<2x8x8xf32>
    %220 = tpu.matmul %219, %207, %cst_66 {dimension_numbers = #tpu.dot_dimension_numbers<[2], [1], [1], [2], [0, 0, 0, 1, 1, 2], [0], [0]>} : vector<2x8x24xf32>, vector<2x24x8xf32>, vector<2x8x8xf32> -> vector<2x8x8xf32>
    "tpu.trace_stop"() : () -> ()
    %221 = vector.shape_cast %220 : vector<2x8x8xf32> to vector<16x8xf32>
    %222 = vector.extract_strided_slice %182 {offsets = [0, 0], sizes = [8, 32], strides = [1, 1]} : vector<32x32xf32> to vector<8x32xf32>
    %cst_67 = arith.constant dense<0.000000e+00> : vector<16x32xf32>
    %223 = tpu.matmul %221, %222, %cst_67 {dimension_numbers = #tpu.dot_dimension_numbers<[1], [0], [0], [1], [0, 0, 1, 1], [], []>} : vector<16x8xf32>, vector<8x32xf32>, vector<16x32xf32> -> vector<16x32xf32>
    %224 = vector.extract_strided_slice %203 {offsets = [0, 0, 8], sizes = [2, 8, 8], strides = [1, 1, 1]} : vector<2x8x32xf32> to vector<2x8x8xf32>
    %225 = vector.extract_strided_slice %204 {offsets = [0, 0, 8], sizes = [2, 24, 8], strides = [1, 1, 1]} : vector<2x24x64xf32> to vector<2x24x8xf32>
    %226 = vector.extract_strided_slice %204 {offsets = [0, 0, 40], sizes = [2, 24, 8], strides = [1, 1, 1]} : vector<2x24x64xf32> to vector<2x24x8xf32>
    "tpu.trace_start"() <{level = 10 : i32, message = "btd,bsd->bts"}> : () -> ()
    %cst_68 = arith.constant dense<0.000000e+00> : vector<2x8x24xf32>
    %227 = tpu.matmul %224, %225, %cst_68 {dimension_numbers = #tpu.dot_dimension_numbers<[2], [2], [1], [1], [0, 0, 0, 1, 1, 1], [0], [0]>} : vector<2x8x8xf32>, vector<2x24x8xf32>, vector<2x8x24xf32> -> vector<2x8x24xf32>
    "tpu.trace_stop"() : () -> ()
    %228 = arith.addf %227, %4 : vector<2x8x24xf32>
    %cst_69 = arith.constant dense<0xFF800000> : vector<2x8xf32>
    %229 = vector.multi_reduction <maximumf>, %228, %cst_69 [2] : vector<2x8x24xf32> to vector<2x8xf32>
    %230 = vector.shape_cast %229 : vector<2x8xf32> to vector<2x8x1xf32>
    %231 = vector.broadcast %230 : vector<2x8x1xf32> to vector<2x8x24xf32>
    %232 = arith.subf %228, %231 : vector<2x8x24xf32>
    %233 = math.exp %232 : vector<2x8x24xf32>
    %cst_70 = arith.constant dense<0.000000e+00> : vector<2x8xf32>
    %234 = vector.multi_reduction <add>, %233, %cst_70 [2] : vector<2x8x24xf32> to vector<2x8xf32>
    %235 = vector.shape_cast %234 : vector<2x8xf32> to vector<2x8x1xf32>
    %236 = tpu.reciprocal %235 {approx = true} : vector<2x8x1xf32> -> vector<2x8x1xf32>
    %237 = vector.broadcast %236 : vector<2x8x1xf32> to vector<2x8x24xf32>
    %238 = arith.mulf %233, %237 : vector<2x8x24xf32>
    "tpu.trace_start"() <{level = 10 : i32, message = "bts,bsd->btd"}> : () -> ()
    %cst_71 = arith.constant dense<0.000000e+00> : vector<2x8x8xf32>
    %239 = tpu.matmul %238, %226, %cst_71 {dimension_numbers = #tpu.dot_dimension_numbers<[2], [1], [1], [2], [0, 0, 0, 1, 1, 2], [0], [0]>} : vector<2x8x24xf32>, vector<2x24x8xf32>, vector<2x8x8xf32> -> vector<2x8x8xf32>
    "tpu.trace_stop"() : () -> ()
    %240 = vector.shape_cast %239 : vector<2x8x8xf32> to vector<16x8xf32>
    %241 = vector.extract_strided_slice %182 {offsets = [8, 0], sizes = [8, 32], strides = [1, 1]} : vector<32x32xf32> to vector<8x32xf32>
    %cst_72 = arith.constant dense<0.000000e+00> : vector<16x32xf32>
    %242 = tpu.matmul %240, %241, %cst_72 {dimension_numbers = #tpu.dot_dimension_numbers<[1], [0], [0], [1], [0, 0, 1, 1], [], []>} : vector<16x8xf32>, vector<8x32xf32>, vector<16x32xf32> -> vector<16x32xf32>
    %243 = arith.addf %223, %242 : vector<16x32xf32>
    %244 = vector.extract_strided_slice %203 {offsets = [0, 0, 16], sizes = [2, 8, 8], strides = [1, 1, 1]} : vector<2x8x32xf32> to vector<2x8x8xf32>
    %245 = vector.extract_strided_slice %204 {offsets = [0, 0, 16], sizes = [2, 24, 8], strides = [1, 1, 1]} : vector<2x24x64xf32> to vector<2x24x8xf32>
    %246 = vector.extract_strided_slice %204 {offsets = [0, 0, 48], sizes = [2, 24, 8], strides = [1, 1, 1]} : vector<2x24x64xf32> to vector<2x24x8xf32>
    "tpu.trace_start"() <{level = 10 : i32, message = "btd,bsd->bts"}> : () -> ()
    %cst_73 = arith.constant dense<0.000000e+00> : vector<2x8x24xf32>
    %247 = tpu.matmul %244, %245, %cst_73 {dimension_numbers = #tpu.dot_dimension_numbers<[2], [2], [1], [1], [0, 0, 0, 1, 1, 1], [0], [0]>} : vector<2x8x8xf32>, vector<2x24x8xf32>, vector<2x8x24xf32> -> vector<2x8x24xf32>
    "tpu.trace_stop"() : () -> ()
    %248 = arith.addf %247, %4 : vector<2x8x24xf32>
    %cst_74 = arith.constant dense<0xFF800000> : vector<2x8xf32>
    %249 = vector.multi_reduction <maximumf>, %248, %cst_74 [2] : vector<2x8x24xf32> to vector<2x8xf32>
    %250 = vector.shape_cast %249 : vector<2x8xf32> to vector<2x8x1xf32>
    %251 = vector.broadcast %250 : vector<2x8x1xf32> to vector<2x8x24xf32>
    %252 = arith.subf %248, %251 : vector<2x8x24xf32>
    %253 = math.exp %252 : vector<2x8x24xf32>
    %cst_75 = arith.constant dense<0.000000e+00> : vector<2x8xf32>
    %254 = vector.multi_reduction <add>, %253, %cst_75 [2] : vector<2x8x24xf32> to vector<2x8xf32>
    %255 = vector.shape_cast %254 : vector<2x8xf32> to vector<2x8x1xf32>
    %256 = tpu.reciprocal %255 {approx = true} : vector<2x8x1xf32> -> vector<2x8x1xf32>
    %257 = vector.broadcast %256 : vector<2x8x1xf32> to vector<2x8x24xf32>
    %258 = arith.mulf %253, %257 : vector<2x8x24xf32>
    "tpu.trace_start"() <{level = 10 : i32, message = "bts,bsd->btd"}> : () -> ()
    %cst_76 = arith.constant dense<0.000000e+00> : vector<2x8x8xf32>
    %259 = tpu.matmul %258, %246, %cst_76 {dimension_numbers = #tpu.dot_dimension_numbers<[2], [1], [1], [2], [0, 0, 0, 1, 1, 2], [0], [0]>} : vector<2x8x24xf32>, vector<2x24x8xf32>, vector<2x8x8xf32> -> vector<2x8x8xf32>
    "tpu.trace_stop"() : () -> ()
    %260 = vector.shape_cast %259 : vector<2x8x8xf32> to vector<16x8xf32>
    %261 = vector.extract_strided_slice %182 {offsets = [16, 0], sizes = [8, 32], strides = [1, 1]} : vector<32x32xf32> to vector<8x32xf32>
    %cst_77 = arith.constant dense<0.000000e+00> : vector<16x32xf32>
    %262 = tpu.matmul %260, %261, %cst_77 {dimension_numbers = #tpu.dot_dimension_numbers<[1], [0], [0], [1], [0, 0, 1, 1], [], []>} : vector<16x8xf32>, vector<8x32xf32>, vector<16x32xf32> -> vector<16x32xf32>
    %263 = arith.addf %243, %262 : vector<16x32xf32>
    %264 = vector.extract_strided_slice %203 {offsets = [0, 0, 24], sizes = [2, 8, 8], strides = [1, 1, 1]} : vector<2x8x32xf32> to vector<2x8x8xf32>
    %265 = vector.extract_strided_slice %204 {offsets = [0, 0, 24], sizes = [2, 24, 8], strides = [1, 1, 1]} : vector<2x24x64xf32> to vector<2x24x8xf32>
    %266 = vector.extract_strided_slice %204 {offsets = [0, 0, 56], sizes = [2, 24, 8], strides = [1, 1, 1]} : vector<2x24x64xf32> to vector<2x24x8xf32>
    "tpu.trace_start"() <{level = 10 : i32, message = "btd,bsd->bts"}> : () -> ()
    %cst_78 = arith.constant dense<0.000000e+00> : vector<2x8x24xf32>
    %267 = tpu.matmul %264, %265, %cst_78 {dimension_numbers = #tpu.dot_dimension_numbers<[2], [2], [1], [1], [0, 0, 0, 1, 1, 1], [0], [0]>} : vector<2x8x8xf32>, vector<2x24x8xf32>, vector<2x8x24xf32> -> vector<2x8x24xf32>
    "tpu.trace_stop"() : () -> ()
    %268 = arith.addf %267, %4 : vector<2x8x24xf32>
    %cst_79 = arith.constant dense<0xFF800000> : vector<2x8xf32>
    %269 = vector.multi_reduction <maximumf>, %268, %cst_79 [2] : vector<2x8x24xf32> to vector<2x8xf32>
    %270 = vector.shape_cast %269 : vector<2x8xf32> to vector<2x8x1xf32>
    %271 = vector.broadcast %270 : vector<2x8x1xf32> to vector<2x8x24xf32>
    %272 = arith.subf %268, %271 : vector<2x8x24xf32>
    %273 = math.exp %272 : vector<2x8x24xf32>
    %cst_80 = arith.constant dense<0.000000e+00> : vector<2x8xf32>
    %274 = vector.multi_reduction <add>, %273, %cst_80 [2] : vector<2x8x24xf32> to vector<2x8xf32>
    %275 = vector.shape_cast %274 : vector<2x8xf32> to vector<2x8x1xf32>
    %276 = tpu.reciprocal %275 {approx = true} : vector<2x8x1xf32> -> vector<2x8x1xf32>
    %277 = vector.broadcast %276 : vector<2x8x1xf32> to vector<2x8x24xf32>
    %278 = arith.mulf %273, %277 : vector<2x8x24xf32>
    "tpu.trace_start"() <{level = 10 : i32, message = "bts,bsd->btd"}> : () -> ()
    %cst_81 = arith.constant dense<0.000000e+00> : vector<2x8x8xf32>
    %279 = tpu.matmul %278, %266, %cst_81 {dimension_numbers = #tpu.dot_dimension_numbers<[2], [1], [1], [2], [0, 0, 0, 1, 1, 2], [0], [0]>} : vector<2x8x24xf32>, vector<2x24x8xf32>, vector<2x8x8xf32> -> vector<2x8x8xf32>
    "tpu.trace_stop"() : () -> ()
    %280 = vector.shape_cast %279 : vector<2x8x8xf32> to vector<16x8xf32>
    %281 = vector.extract_strided_slice %182 {offsets = [24, 0], sizes = [8, 32], strides = [1, 1]} : vector<32x32xf32> to vector<8x32xf32>
    %cst_82 = arith.constant dense<0.000000e+00> : vector<16x32xf32>
    %282 = tpu.matmul %280, %281, %cst_82 {dimension_numbers = #tpu.dot_dimension_numbers<[1], [0], [0], [1], [0, 0, 1, 1], [], []>} : vector<16x8xf32>, vector<8x32xf32>, vector<16x32xf32> -> vector<16x32xf32>
    %283 = arith.addf %263, %282 : vector<16x32xf32>
    %284 = vector.broadcast %190 : vector<1x32xf32> to vector<16x32xf32>
    %285 = arith.addf %283, %284 : vector<16x32xf32>
    %286 = arith.addf %177, %285 : vector<16x32xf32>
    %cst_83 = arith.constant dense<0.000000e+00> : vector<16xf32>
    %287 = vector.multi_reduction <add>, %286, %cst_83 [1] : vector<16x32xf32> to vector<16xf32>
    %288 = vector.shape_cast %287 : vector<16xf32> to vector<16x1xf32>
    %cst_84 = arith.constant 3.200000e+01 : f32
    %289 = vector.broadcast %cst_84 : f32 to vector<16x1xf32>
    %290 = arith.divf %288, %289 : vector<16x1xf32>
    %291 = vector.broadcast %290 : vector<16x1xf32> to vector<16x32xf32>
    %292 = arith.subf %286, %291 : vector<16x32xf32>
    %293 = arith.mulf %292, %292 : vector<16x32xf32>
    %cst_85 = arith.constant dense<0.000000e+00> : vector<16xf32>
    %294 = vector.multi_reduction <add>, %293, %cst_85 [1] : vector<16x32xf32> to vector<16xf32>
    %295 = vector.shape_cast %294 : vector<16xf32> to vector<16x1xf32>
    %cst_86 = arith.constant 3.200000e+01 : f32
    %296 = vector.broadcast %cst_86 : f32 to vector<16x1xf32>
    %297 = arith.divf %295, %296 : vector<16x1xf32>
    %298 = vector.broadcast %290 : vector<16x1xf32> to vector<16x32xf32>
    %299 = arith.subf %286, %298 : vector<16x32xf32>
    %cst_87 = arith.constant 9.99999974E-6 : f32
    %300 = vector.broadcast %cst_87 : f32 to vector<16x1xf32>
    %301 = arith.addf %297, %300 : vector<16x1xf32>
    %302 = math.rsqrt %301 : vector<16x1xf32>
    %303 = vector.broadcast %302 : vector<16x1xf32> to vector<16x32xf32>
    %304 = arith.mulf %299, %303 : vector<16x32xf32>
    %305 = vector.broadcast %191 : vector<1x32xf32> to vector<16x32xf32>
    %306 = arith.mulf %304, %305 : vector<16x32xf32>
    %307 = vector.broadcast %192 : vector<1x32xf32> to vector<16x32xf32>
    %308 = arith.addf %306, %307 : vector<16x32xf32>
    %cst_88 = arith.constant dense<0.000000e+00> : vector<16x64xf32>
    %309 = tpu.matmul %308, %183, %cst_88 {dimension_numbers = #tpu.dot_dimension_numbers<[1], [0], [0], [1], [0, 0, 1, 1], [], []>} : vector<16x32xf32>, vector<32x64xf32>, vector<16x64xf32> -> vector<16x64xf32>
    %310 = vector.broadcast %193 : vector<1x64xf32> to vector<16x64xf32>
    %311 = arith.addf %309, %310 : vector<16x64xf32>
    %312 = arith.mulf %311, %311 : vector<16x64xf32>
    %313 = arith.mulf %311, %312 : vector<16x64xf32>
    %cst_89 = arith.constant 4.471500e-02 : f32
    %314 = vector.broadcast %cst_89 : f32 to vector<16x64xf32>
    %315 = arith.mulf %314, %313 : vector<16x64xf32>
    %316 = arith.addf %311, %315 : vector<16x64xf32>
    %cst_90 = arith.constant 0.797884583 : f32
    %317 = vector.broadcast %cst_90 : f32 to vector<16x64xf32>
    %318 = arith.mulf %317, %316 : vector<16x64xf32>
    %319 = math.tanh %318 : vector<16x64xf32>
    %cst_91 = arith.constant 1.000000e+00 : f32
    %320 = vector.broadcast %cst_91 : f32 to vector<16x64xf32>
    %321 = arith.addf %320, %319 : vector<16x64xf32>
    %cst_92 = arith.constant 5.000000e-01 : f32
    %322 = vector.broadcast %cst_92 : f32 to vector<16x64xf32>
    %323 = arith.mulf %322, %321 : vector<16x64xf32>
    %324 = arith.mulf %311, %323 : vector<16x64xf32>
    %cst_93 = arith.constant dense<0.000000e+00> : vector<16x32xf32>
    %325 = tpu.matmul %324, %185, %cst_93 {dimension_numbers = #tpu.dot_dimension_numbers<[1], [0], [0], [1], [0, 0, 1, 1], [], []>} : vector<16x64xf32>, vector<64x32xf32>, vector<16x32xf32> -> vector<16x32xf32>
    %326 = vector.broadcast %194 : vector<1x32xf32> to vector<16x32xf32>
    %327 = arith.addf %325, %326 : vector<16x32xf32>
    %328 = arith.addf %308, %327 : vector<16x32xf32>
    %cst_94 = arith.constant dense<0.000000e+00> : vector<16xf32>
    %329 = vector.multi_reduction <add>, %328, %cst_94 [1] : vector<16x32xf32> to vector<16xf32>
    %330 = vector.shape_cast %329 : vector<16xf32> to vector<16x1xf32>
    %cst_95 = arith.constant 3.200000e+01 : f32
    %331 = vector.broadcast %cst_95 : f32 to vector<16x1xf32>
    %332 = arith.divf %330, %331 : vector<16x1xf32>
    %333 = vector.broadcast %332 : vector<16x1xf32> to vector<16x32xf32>
    %334 = arith.subf %328, %333 : vector<16x32xf32>
    %335 = arith.mulf %334, %334 : vector<16x32xf32>
    %cst_96 = arith.constant dense<0.000000e+00> : vector<16xf32>
    %336 = vector.multi_reduction <add>, %335, %cst_96 [1] : vector<16x32xf32> to vector<16xf32>
    %337 = vector.shape_cast %336 : vector<16xf32> to vector<16x1xf32>
    %cst_97 = arith.constant 3.200000e+01 : f32
    %338 = vector.broadcast %cst_97 : f32 to vector<16x1xf32>
    %339 = arith.divf %337, %338 : vector<16x1xf32>
    %340 = vector.broadcast %332 : vector<16x1xf32> to vector<16x32xf32>
    %341 = arith.subf %328, %340 : vector<16x32xf32>
    %cst_98 = arith.constant 9.99999974E-6 : f32
    %342 = vector.broadcast %cst_98 : f32 to vector<16x1xf32>
    %343 = arith.addf %339, %342 : vector<16x1xf32>
    %344 = math.rsqrt %343 : vector<16x1xf32>
    %345 = vector.broadcast %344 : vector<16x1xf32> to vector<16x32xf32>
    %346 = arith.mulf %341, %345 : vector<16x32xf32>
    %347 = vector.broadcast %195 : vector<1x32xf32> to vector<16x32xf32>
    %348 = arith.mulf %346, %347 : vector<16x32xf32>
    %349 = vector.broadcast %196 : vector<1x32xf32> to vector<16x32xf32>
    %350 = arith.addf %348, %349 : vector<16x32xf32>
    %351 = arith.addf %1, %350 : vector<16x32xf32>
    %c0_99 = arith.constant 0 : index
    %c0_100 = arith.constant 0 : index
    %352 = vector.load %arg6[%c0_99, %c0_100] : memref<32x128xf32, #tpu.memory_space<vmem>>, vector<32x128xf32>
    %cst_101 = arith.constant dense<0.000000e+00> : vector<16x128xf32>
    %353 = tpu.matmul %351, %352, %cst_101 {dimension_numbers = #tpu.dot_dimension_numbers<[1], [0], [0], [1], [0, 0, 1, 1], [], []>} : vector<16x32xf32>, vector<32x128xf32>, vector<16x128xf32> -> vector<16x128xf32>
    %c0_102 = arith.constant 0 : index
    %c0_103 = arith.constant 0 : index
    %354 = vector.load %arg7[%c0_102, %c0_103] : memref<1x128xf32, #tpu.memory_space<vmem>>, vector<1x128xf32>
    %355 = vector.broadcast %354 : vector<1x128xf32> to vector<16x128xf32>
    %356 = arith.addf %353, %355 : vector<16x128xf32>
    %c0_104 = arith.constant 0 : index
    %c0_105 = arith.constant 0 : index
    %357 = vector.load %arg8[%c0_104, %c0_105] : memref<16x128xf32, #tpu.memory_space<vmem>>, vector<16x128xf32>
    tpu.vector_store %arg8[%c0_104, %c0_105], %356 {strides = array<i32>} : memref<16x128xf32, #tpu.memory_space<vmem>>, vector<16x128xf32>,
    return
  }
}

</mosaic_0001>

<llo_original>
// kernel: tpu_custom_call.1
$region0: #{tpu_custom_call.1}
  #allocation0 [shape = 'u32[]', space=smem, size = 0x4, offset = 0x4, fixed_abs, tag = 'smem constant byte address 0x4 - core index']
  #allocation1 [shape = 'u32[144,128]{1,0:T(1,128)}', space=vmem, size = 0x12000, scoped, tag = 'internal scratch']
  %s0 = inlined_call_operand.hbm [shape: f32[8,32], index: 0, kind: input, shape index: {}]
  %s1 = inlined_call_operand.vmem [shape: f32[2,24,32], index: 1, kind: input, shape index: {}]
  %s2 = inlined_call_operand.vmem [shape: f32[2,8,24], index: 2, kind: input, shape index: {}]
  %s3 = inlined_call_operand.vmem [shape: f32[2,32,192], index: 3, kind: input, shape index: {}]
  %s4 = inlined_call_operand.vmem [shape: f32[2,64,32], index: 4, kind: input, shape index: {}]
  %s5 = inlined_call_operand.vmem [shape: f32[2,9,64], index: 5, kind: input, shape index: {}]
  %s6 = inlined_call_operand.hbm [shape: f32[32,128], index: 6, kind: input, shape index: {}]
  %s7 = inlined_call_operand.vmem [shape: f32[1,128], index: 7, kind: input, shape index: {}]
  %s8 = inlined_call_operand.hbm [shape: f32[16,128], index: 8, kind: output, shape index: {}]
  %s9 = sld [smem:[#allocation0]]
  $region50: #{tpu_custom_call.1} parent=0
    _
  %s11 = ssub.s32 1, %s9
  %s12 = scalar_select 0, %s11, %s9
  $region1: #{tpu_custom_call.1} parent=0
    #allocation2 [shape = 'u8[4096]{0}', space=vmem, size = 0x1000, scoped, tag = 'input window, operand 0, single buffered']
    #allocation3 [shape = 's32[1]{0}', space=sflag, size = 0x4, scoped, tag = 'scoped memory for tpu_custom_call.1']
    #allocation4 [shape = 's32[1]{0}', space=sflag, size = 0x4, scoped, tag = 'scoped memory for tpu_custom_call.1']
    #allocation5 [shape = 'u8[16384]{0}', space=vmem, size = 0x4000, scoped, tag = 'input window, operand 6, single buffered']
    #allocation6 [shape = 's32[1]{0}', space=sflag, size = 0x4, scoped, tag = 'scoped memory for tpu_custom_call.1']
    #allocation7 [shape = 'u8[8192]{0}', space=vmem, size = 0x2000, scoped, tag = 'output window, operand 0, single buffered']
    %13 = vsyncpa [#allocation3], 0
    %14 = vsyncpa [#allocation6], 0
    %15 = vsyncpa [#allocation4], 0
    // Predicated region
    $region2: #{tpu_custom_call.1} parent=1 // pred_check
      _
    $region3: #{tpu_custom_call.1} parent=1 // pred_check_branch
      %17 = sbr.rel (0) target = $region5
    $region4: #{tpu_custom_call.1} parent=1 // pred_region
      %s19 = ssub.s32 128, 128
      %20 = vsyncadd [#allocation3], %s19
      %s22 = sshll.u32 [#allocation2], 4
      %s23 = int_to_ptr.vmem [resolvable:$true] %s22
      %25 = dma.hbm_to_vmem [thread:$0]  %s0, 128, %s23, [#allocation3]
    $region5: #{tpu_custom_call.1} parent=1 // pred_fallthru
      _
    // Predicated region
    $region6: #{tpu_custom_call.1} parent=1 // pred_check
      _
    $region7: #{tpu_custom_call.1} parent=1 // pred_check_branch
      %27 = sbr.rel (0) target = $region9
    $region8: #{tpu_custom_call.1} parent=1 // pred_region
      _
    $region9: #{tpu_custom_call.1} parent=1 // pred_fallthru
      _
    // Predicated region
    $region10: #{tpu_custom_call.1} parent=1 // pred_check
      _
    $region11: #{tpu_custom_call.1} parent=1 // pred_check_branch
      %29 = sbr.rel (0) target = $region13
    $region12: #{tpu_custom_call.1} parent=1 // pred_region
      _
    $region13: #{tpu_custom_call.1} parent=1 // pred_fallthru
      _
    // Predicated region
    $region14: #{tpu_custom_call.1} parent=1 // pred_check
      _
    $region15: #{tpu_custom_call.1} parent=1 // pred_check_branch
      %31 = sbr.rel (0) target = $region17
    $region16: #{tpu_custom_call.1} parent=1 // pred_region
      _
    $region17: #{tpu_custom_call.1} parent=1 // pred_fallthru
      _
    // Predicated region
    $region18: #{tpu_custom_call.1} parent=1 // pred_check
      _
    $region19: #{tpu_custom_call.1} parent=1 // pred_check_branch
      %33 = sbr.rel (0) target = $region21
    $region20: #{tpu_custom_call.1} parent=1 // pred_region
      _
    $region21: #{tpu_custom_call.1} parent=1 // pred_fallthru
      _
    // Predicated region
    $region22: #{tpu_custom_call.1} parent=1 // pred_check
      _
    $region23: #{tpu_custom_call.1} parent=1 // pred_check_branch
      %35 = sbr.rel (0) target = $region25
    $region24: #{tpu_custom_call.1} parent=1 // pred_region
      _
    $region25: #{tpu_custom_call.1} parent=1 // pred_fallthru
      _
    // Predicated region
    $region26: #{tpu_custom_call.1} parent=1 // pred_check
      _
    $region27: #{tpu_custom_call.1} parent=1 // pred_check_branch
      %37 = sbr.rel (0) target = $region29
    $region28: #{tpu_custom_call.1} parent=1 // pred_region
      %s39 = ssub.s32 512, 512
      %40 = vsyncadd [#allocation6], %s39
      %s41 = sshll.u32 [#allocation5], 4
      %s42 = int_to_ptr.vmem [resolvable:$true] %s41
      %47 = dma.hbm_to_vmem [thread:$0]  %s6, 512, %s42, [#allocation6], 128, 128, 8
    $region29: #{tpu_custom_call.1} parent=1 // pred_fallthru
      _
    // Predicated region
    $region30: #{tpu_custom_call.1} parent=1 // pred_check
      _
    $region31: #{tpu_custom_call.1} parent=1 // pred_check_branch
      %49 = sbr.rel (0) target = $region33
    $region32: #{tpu_custom_call.1} parent=1 // pred_region
      _
    $region33: #{tpu_custom_call.1} parent=1 // pred_fallthru
      _
    // Predicated region
    $region34: #{tpu_custom_call.1} parent=1 // pred_check
      _
    $region35: #{tpu_custom_call.1} parent=1 // pred_check_branch
      %51 = sbr.rel (0) target = $region37
    $region36: #{tpu_custom_call.1} parent=1 // pred_region
      %52 = dma.done [#allocation3], 128
    $region37: #{tpu_custom_call.1} parent=1 // pred_fallthru
      _
    // Predicated region
    $region38: #{tpu_custom_call.1} parent=1 // pred_check
      _
    $region39: #{tpu_custom_call.1} parent=1 // pred_check_branch
      %54 = sbr.rel (0) target = $region41
    $region40: #{tpu_custom_call.1} parent=1 // pred_region
      %55 = dma.done [#allocation6], 512
    $region41: #{tpu_custom_call.1} parent=1 // pred_fallthru
      _
    %v56 = vld [vmem:[#allocation2] sm:$0xff]
    %v57 = vld [vmem:[%s1] sm:$0xff]
    %v58 = vld [vmem:[%s1 + $0x8] sm:$0xff]
    %v59 = vld [vmem:[%s1 + $0x10] sm:$0xff]
    %v60 = vld [vmem:[%s1 + $0x18] sm:$0xff]
    %v61 = vld [vmem:[%s1 + $0x20] sm:$0xff]
    %v62 = vld [vmem:[%s1 + $0x28] sm:$0xff]
    %v63 = vld [vmem:[%s2] sm:$0xff]
    %v64 = vld [vmem:[%s2 + $0x8] sm:$0xff]
    %v65 = vld [vmem:[%s3] sm:$0xff]
    %v66 = vld [vmem:[%s3 + $0x8] sm:$0xff]
    %v67 = vld [vmem:[%s3 + $0x10] sm:$0xff]
    %v68 = vld [vmem:[%s3 + $0x18] sm:$0xff]
    %v69 = vld [vmem:[%s3 + $0x20] sm:$0xff]
    %v70 = vld [vmem:[%s3 + $0x28] sm:$0xff]
    %v71 = vld [vmem:[%s3 + $0x30] sm:$0xff]
    %v72 = vld [vmem:[%s3 + $0x38] sm:$0xff]
    %v73 = vld [vmem:[%s4] sm:$0xff]
    %v74 = vld [vmem:[%s4 + $0x8] sm:$0xff]
    %v75 = vld [vmem:[%s4 + $0x10] sm:$0xff]
    %v76 = vld [vmem:[%s4 + $0x18] sm:$0xff]
    %v77 = vld [vmem:[%s4 + $0x20] sm:$0xff]
    %v78 = vld [vmem:[%s4 + $0x28] sm:$0xff]
    %v79 = vld [vmem:[%s4 + $0x30] sm:$0xff]
    %v80 = vld [vmem:[%s4 + $0x38] sm:$0xff]
    %v81 = vld [vmem:[%s5] sm:$0xff]
    %v82 = vld [vmem:[%s5 + $0x8] sm:$0x1]
    %v83 = vlaneseq
    %v84 = vshrl.u32 %v83, 7
    %v85 = vsub.s32 0, %v84
    %v86 = vrot.slane %v81, %v85
    %vm87 = vcmask 261120
    %v89 = vsel %vm87, %v56, 0
    %91 = vmatprep.subr.mxu0 0.0
    %92 = vmatpush1.msra.mxu0 %v65
    %93 = vmatprep.subr.mxu0 0.0
    %94 = vmatpush1.msra.mxu0 %v67
    %95 = vmatprep.subr.mxu0 0.0
    %96 = vmatpush1.msra.mxu0 %v69
    %97 = vmatprep.subr.mxu0 0.0
    %98 = vmatpush1.msra.mxu0 %v71
    %99 = vmatprep.subr.mxu0 0.0
    %100 = vmatpush1.msra.mxu0 0.0
    %101 = vmatprep.subr.mxu0 0.0
    %102 = vmatpush1.msra.mxu0 0.0
    %103 = vmatprep.subr.mxu0 0.0
    %104 = vmatpush1.msra.mxu0 0.0
    %105 = vmatprep.subr.mxu0 0.0
    %106 = vmatpush1.msra.mxu0 0.0
    %107 = vmatprep.subr.mxu0 0.0
    %108 = vmatpush1.msra.mxu0 0.0
    %109 = vmatprep.subr.mxu0 0.0
    %110 = vmatpush1.msra.mxu0 0.0
    %111 = vmatprep.subr.mxu0 0.0
    %112 = vmatpush1.msra.mxu0 0.0
    %113 = vmatprep.subr.mxu0 0.0
    %114 = vmatpush1.msra.mxu0 0.0
    %115 = vmatprep.subr.mxu0 0.0
    %116 = vmatpush1.msra.mxu0 0.0
    %117 = vmatprep.subr.mxu0 0.0
    %118 = vmatpush1.msra.mxu0 0.0
    %119 = vmatprep.subr.mxu0 0.0
    %120 = vmatpush1.msra.mxu0 0.0
    %121 = vmatprep.subr.mxu0 0.0
    %122 = vmatpush1.msra.mxu0 0.0
    %123 = vmatprep.subr.mxu0 0.0
    %124 = vmatpush1.msra.mxu0 0.0
    %125 = vmatprep.subr.mxu0 0.0
    %126 = vmatpush1.msra.mxu0 0.0
    %127 = vmatprep.subr.mxu0 0.0
    %128 = vmatpush1.msra.mxu0 0.0
    %129 = vmatprep.subr.mxu0 0.0
    %130 = vmatpush1.msra.mxu0 0.0
    %131 = vmatprep.subr.mxu0 0.0
    %132 = vmatpush1.msra.mxu0 0.0
    %133 = vmatprep.subr.mxu0 0.0
    %134 = vmatpush1.msra.mxu0 0.0
    %135 = vmatprep.subr.mxu0 0.0
    %136 = vmatpush1.msra.mxu0 0.0
    %137 = vmatprep.subr.mxu0 0.0
    %138 = vmatpush1.msra.mxu0 0.0
    %139 = vmatprep.subr.mxu0 0.0
    %140 = vmatpush1.msra.mxu0 0.0
    %141 = vmatprep.subr.mxu0 0.0
    %142 = vmatpush1.msra.mxu0 0.0
    %143 = vmatprep.subr.mxu0 0.0
    %144 = vmatpush1.msra.mxu0 0.0
    %145 = vmatprep.subr.mxu0 0.0
    %146 = vmatpush1.msra.mxu0 0.0
    %147 = vmatprep.subr.mxu0 0.0
    %148 = vmatpush1.msra.mxu0 0.0
    %149 = vmatprep.subr.mxu0 0.0
    %150 = vmatpush1.msra.mxu0 0.0
    %151 = vmatprep.subr.mxu0 0.0
    %152 = vmatpush1.msra.mxu0 0.0
    %153 = vmatprep.subr.mxu0 0.0
    %154 = vmatpush1.msra.mxu0 0.0
    %155 = vmatprep.mubr.f32.mxu0 0.0
    %156 = vmatmul.mubr.f32.gmra.mrb[0].mxu0 %v89
    %v157 = vpop.f32.mrb[0].mxu0
    %v158 = vadd.f32 %v86, %v157
    %v159 = vpop.f32.mrb[0].mxu0
    %160 = vmatprep.mubr.f32.mxu0 0.0
    %161 = vmatmul.mubr.f32.gmra.mrb[0].mxu0 %v89
    %v162 = vpop.f32.mrb[0].mxu0
    %v163 = vadd.f32 %v86, %v162
    %v164 = vpop.f32.mrb[0].mxu0
    %165 = vdwg.mxu0
    %v166 = vlaneseq
    %v167 = vshrl.u32 %v166, 7
    %v168 = vsub.s32 1, %v167
    %v169 = vrot.slane %v81, %v168
    %174 = vrot.lane.b32.xlu0 %v65, 96
    %v175 = vpop.permute.xlu0 %174
    %176 = vrot.lane.b32.xlu0 %v67, 96
    %v177 = vpop.permute.xlu0 %176
    %178 = vrot.lane.b32.xlu0 %v69, 96
    %v179 = vpop.permute.xlu0 %178
    %180 = vrot.lane.b32.xlu0 %v71, 96
    %v181 = vpop.permute.xlu0 %180
    %v187 = vsel %vm87, %v57, 0
    %v190 = vsel %vm87, %v58, 0
    %v193 = vsel %vm87, %v59, 0
    %v196 = vsel %vm87, %v60, 0
    %v199 = vsel %vm87, %v61, 0
    %v202 = vsel %vm87, %v62, 0
    %204 = vmatprep.subr.mxu0 0.0
    %205 = vmatpush1.msra.mxu0 %v175
    %206 = vmatprep.subr.mxu0 0.0
    %207 = vmatpush1.msra.mxu0 %v177
    %208 = vmatprep.subr.mxu0 0.0
    %209 = vmatpush1.msra.mxu0 %v179
    %210 = vmatprep.subr.mxu0 0.0
    %211 = vmatpush1.msra.mxu0 %v181
    %212 = vmatprep.subr.mxu0 0.0
    %213 = vmatpush1.msra.mxu0 0.0
    %214 = vmatprep.subr.mxu0 0.0
    %215 = vmatpush1.msra.mxu0 0.0
    %216 = vmatprep.subr.mxu0 0.0
    %217 = vmatpush1.msra.mxu0 0.0
    %218 = vmatprep.subr.mxu0 0.0
    %219 = vmatpush1.msra.mxu0 0.0
    %220 = vmatprep.subr.mxu0 0.0
    %221 = vmatpush1.msra.mxu0 0.0
    %222 = vmatprep.subr.mxu0 0.0
    %223 = vmatpush1.msra.mxu0 0.0
    %224 = vmatprep.subr.mxu0 0.0
    %225 = vmatpush1.msra.mxu0 0.0
    %226 = vmatprep.subr.mxu0 0.0
    %227 = vmatpush1.msra.mxu0 0.0
    %228 = vmatprep.subr.mxu0 0.0
    %229 = vmatpush1.msra.mxu0 0.0
    %230 = vmatprep.subr.mxu0 0.0
    %231 = vmatpush1.msra.mxu0 0.0
    %232 = vmatprep.subr.mxu0 0.0
    %233 = vmatpush1.msra.mxu0 0.0
    %234 = vmatprep.subr.mxu0 0.0
    %235 = vmatpush1.msra.mxu0 0.0
    %236 = vmatprep.subr.mxu0 0.0
    %237 = vmatpush1.msra.mxu0 0.0
    %238 = vmatprep.subr.mxu0 0.0
    %239 = vmatpush1.msra.mxu0 0.0
    %240 = vmatprep.subr.mxu0 0.0
    %241 = vmatpush1.msra.mxu0 0.0
    %242 = vmatprep.subr.mxu0 0.0
    %243 = vmatpush1.msra.mxu0 0.0
    %244 = vmatprep.subr.mxu0 0.0
    %245 = vmatpush1.msra.mxu0 0.0
    %246 = vmatprep.subr.mxu0 0.0
    %247 = vmatpush1.msra.mxu0 0.0
    %248 = vmatprep.subr.mxu0 0.0
    %249 = vmatpush1.msra.mxu0 0.0
    %250 = vmatprep.subr.mxu0 0.0
    %251 = vmatpush1.msra.mxu0 0.0
    %252 = vmatprep.subr.mxu0 0.0
    %253 = vmatpush1.msra.mxu0 0.0
    %254 = vmatprep.subr.mxu0 0.0
    %255 = vmatpush1.msra.mxu0 0.0
    %256 = vmatprep.subr.mxu0 0.0
    %257 = vmatpush1.msra.mxu0 0.0
    %258 = vmatprep.subr.mxu0 0.0
    %259 = vmatpush1.msra.mxu0 0.0
    %260 = vmatprep.subr.mxu0 0.0
    %261 = vmatpush1.msra.mxu0 0.0
    %262 = vmatprep.subr.mxu0 0.0
    %263 = vmatpush1.msra.mxu0 0.0
    %264 = vmatprep.subr.mxu0 0.0
    %265 = vmatpush1.msra.mxu0 0.0
    %266 = vmatprep.subr.mxu0 0.0
    %267 = vmatpush1.msra.mxu0 0.0
    %268 = vmatprep.mubr.f32.mxu0 0.0
    %269 = vmatmul.mubr.f32.gmra.mrb[0].mxu0 %v187
    %v270 = vpop.f32.mrb[0].mxu0
    %v271 = vadd.f32 %v169, %v270
    %v272 = vpop.f32.mrb[0].mxu0
    %273 = vmatprep.mubr.f32.mxu0 0.0
    %274 = vmatmul.mubr.f32.gmra.mrb[0].mxu0 %v190
    %v275 = vpop.f32.mrb[0].mxu0
    %v276 = vadd.f32 %v169, %v275
    %v277 = vpop.f32.mrb[0].mxu0
    %278 = vmatprep.mubr.f32.mxu0 0.0
    %279 = vmatmul.mubr.f32.gmra.mrb[0].mxu0 %v193
    %v280 = vpop.f32.mrb[0].mxu0
    %v281 = vadd.f32 %v169, %v280
    %v282 = vpop.f32.mrb[0].mxu0
    %283 = vmatprep.mubr.f32.mxu0 0.0
    %284 = vmatmul.mubr.f32.gmra.mrb[0].mxu0 %v196
    %v285 = vpop.f32.mrb[0].mxu0
    %v286 = vadd.f32 %v169, %v285
    %v287 = vpop.f32.mrb[0].mxu0
    %288 = vmatprep.mubr.f32.mxu0 0.0
    %289 = vmatmul.mubr.f32.gmra.mrb[0].mxu0 %v199
    %v290 = vpop.f32.mrb[0].mxu0
    %v291 = vadd.f32 %v169, %v290
    %v292 = vpop.f32.mrb[0].mxu0
    %293 = vmatprep.mubr.f32.mxu0 0.0
    %294 = vmatmul.mubr.f32.gmra.mrb[0].mxu0 %v202
    %v295 = vpop.f32.mrb[0].mxu0
    %v296 = vadd.f32 %v169, %v295
    %v297 = vpop.f32.mrb[0].mxu0
    %298 = vdwg.mxu0
    %vm299 = vcmask 64512
    %v301 = vsel %vm299, %v158, 0
    %v304 = vsel %vm299, %v271, 0
    %v307 = vsel %vm299, %v276, 0
    %v310 = vsel %vm299, %v281, 0
    %312 = vmatprep.subr.mxu0 0.0
    %313 = vmatpush1.xpose.msra.mxu0 %v304
    %314 = vmatprep.subr.mxu0 0.0
    %315 = vmatpush1.xpose.msra.mxu0 %v307
    %316 = vmatprep.subr.mxu0 0.0
    %317 = vmatpush1.xpose.msra.mxu0 %v310
    %318 = vmatprep.subr.mxu0 0.0
    %319 = vmatpush1.xpose.msra.mxu0 0.0
    %320 = vmatprep.subr.mxu0 0.0
    %321 = vmatpush1.xpose.msra.mxu0 0.0
    %322 = vmatprep.subr.mxu0 0.0
    %323 = vmatpush1.xpose.msra.mxu0 0.0
    %324 = vmatprep.subr.mxu0 0.0
    %325 = vmatpush1.xpose.msra.mxu0 0.0
    %326 = vmatprep.subr.mxu0 0.0
    %327 = vmatpush1.xpose.msra.mxu0 0.0
    %328 = vmatprep.subr.mxu0 0.0
    %329 = vmatpush1.xpose.msra.mxu0 0.0
    %330 = vmatprep.subr.mxu0 0.0
    %331 = vmatpush1.xpose.msra.mxu0 0.0
    %332 = vmatprep.subr.mxu0 0.0
    %333 = vmatpush1.xpose.msra.mxu0 0.0
    %334 = vmatprep.subr.mxu0 0.0
    %335 = vmatpush1.xpose.msra.mxu0 0.0
    %336 = vmatprep.subr.mxu0 0.0
    %337 = vmatpush1.xpose.msra.mxu0 0.0
    %338 = vmatprep.subr.mxu0 0.0
    %339 = vmatpush1.xpose.msra.mxu0 0.0
    %340 = vmatprep.subr.mxu0 0.0
    %341 = vmatpush1.xpose.msra.mxu0 0.0
    %342 = vmatprep.subr.mxu0 0.0
    %343 = vmatpush1.xpose.msra.mxu0 0.0
    %344 = vmatprep.subr.mxu0 0.0
    %345 = vmatpush1.xpose.msra.mxu0 0.0
    %346 = vmatprep.subr.mxu0 0.0
    %347 = vmatpush1.xpose.msra.mxu0 0.0
    %348 = vmatprep.subr.mxu0 0.0
    %349 = vmatpush1.xpose.msra.mxu0 0.0
    %350 = vmatprep.subr.mxu0 0.0
    %351 = vmatpush1.xpose.msra.mxu0 0.0
    %352 = vmatprep.subr.mxu0 0.0
    %353 = vmatpush1.xpose.msra.mxu0 0.0
    %354 = vmatprep.subr.mxu0 0.0
    %355 = vmatpush1.xpose.msra.mxu0 0.0
    %356 = vmatprep.subr.mxu0 0.0
    %357 = vmatpush1.xpose.msra.mxu0 0.0
    %358 = vmatprep.subr.mxu0 0.0
    %359 = vmatpush1.xpose.msra.mxu0 0.0
    %360 = vmatprep.subr.mxu0 0.0
    %361 = vmatpush1.xpose.msra.mxu0 0.0
    %362 = vmatprep.subr.mxu0 0.0
    %363 = vmatpush1.xpose.msra.mxu0 0.0
    %364 = vmatprep.subr.mxu0 0.0
    %365 = vmatpush1.xpose.msra.mxu0 0.0
    %366 = vmatprep.subr.mxu0 0.0
    %367 = vmatpush1.xpose.msra.mxu0 0.0
    %368 = vmatprep.subr.mxu0 0.0
    %369 = vmatpush1.xpose.msra.mxu0 0.0
    %370 = vmatprep.subr.mxu0 0.0
    %371 = vmatpush1.xpose.msra.mxu0 0.0
    %372 = vmatprep.subr.mxu0 0.0
    %373 = vmatpush1.xpose.msra.mxu0 0.0
    %374 = vmatprep.subr.mxu0 0.0
    %375 = vmatpush1.xpose.msra.mxu0 0.0
    %376 = vmatprep.mubr.f32.mxu0 0.0
    %377 = vmatmul.mubr.f32.gmra.mrb[0].mxu0 %v301
    %v378 = vpop.f32.mrb[0].mxu0
    %v379 = vadd.f32 %v63, %v378
    %v380 = vpop.f32.mrb[0].mxu0
    %381 = vdwg.mxu0
    %v383 = vsel %vm299, %v163, 0
    %v386 = vsel %vm299, %v286, 0
    %v389 = vsel %vm299, %v291, 0
    %v392 = vsel %vm299, %v296, 0
    %394 = vmatprep.subr.mxu0 0.0
    %395 = vmatpush1.xpose.msra.mxu0 %v386
    %396 = vmatprep.subr.mxu0 0.0
    %397 = vmatpush1.xpose.msra.mxu0 %v389
    %398 = vmatprep.subr.mxu0 0.0
    %399 = vmatpush1.xpose.msra.mxu0 %v392
    %400 = vmatprep.subr.mxu0 0.0
    %401 = vmatpush1.xpose.msra.mxu0 0.0
    %402 = vmatprep.subr.mxu0 0.0
    %403 = vmatpush1.xpose.msra.mxu0 0.0
    %404 = vmatprep.subr.mxu0 0.0
    %405 = vmatpush1.xpose.msra.mxu0 0.0
    %406 = vmatprep.subr.mxu0 0.0
    %407 = vmatpush1.xpose.msra.mxu0 0.0
    %408 = vmatprep.subr.mxu0 0.0
    %409 = vmatpush1.xpose.msra.mxu0 0.0
    %410 = vmatprep.subr.mxu0 0.0
    %411 = vmatpush1.xpose.msra.mxu0 0.0
    %412 = vmatprep.subr.mxu0 0.0
    %413 = vmatpush1.xpose.msra.mxu0 0.0
    %414 = vmatprep.subr.mxu0 0.0
    %415 = vmatpush1.xpose.msra.mxu0 0.0
    %416 = vmatprep.subr.mxu0 0.0
    %417 = vmatpush1.xpose.msra.mxu0 0.0
    %418 = vmatprep.subr.mxu0 0.0
    %419 = vmatpush1.xpose.msra.mxu0 0.0
    %420 = vmatprep.subr.mxu0 0.0
    %421 = vmatpush1.xpose.msra.mxu0 0.0
    %422 = vmatprep.subr.mxu0 0.0
    %423 = vmatpush1.xpose.msra.mxu0 0.0
    %424 = vmatprep.subr.mxu0 0.0
    %425 = vmatpush1.xpose.msra.mxu0 0.0
    %426 = vmatprep.subr.mxu0 0.0
    %427 = vmatpush1.xpose.msra.mxu0 0.0
    %428 = vmatprep.subr.mxu0 0.0
    %429 = vmatpush1.xpose.msra.mxu0 0.0
    %430 = vmatprep.subr.mxu0 0.0
    %431 = vmatpush1.xpose.msra.mxu0 0.0
    %432 = vmatprep.subr.mxu0 0.0
    %433 = vmatpush1.xpose.msra.mxu0 0.0
    %434 = vmatprep.subr.mxu0 0.0
    %435 = vmatpush1.xpose.msra.mxu0 0.0
    %436 = vmatprep.subr.mxu0 0.0
    %437 = vmatpush1.xpose.msra.mxu0 0.0
    %438 = vmatprep.subr.mxu0 0.0
    %439 = vmatpush1.xpose.msra.mxu0 0.0
    %440 = vmatprep.subr.mxu0 0.0
    %441 = vmatpush1.xpose.msra.mxu0 0.0
    %442 = vmatprep.subr.mxu0 0.0
    %443 = vmatpush1.xpose.msra.mxu0 0.0
    %444 = vmatprep.subr.mxu0 0.0
    %445 = vmatpush1.xpose.msra.mxu0 0.0
    %446 = vmatprep.subr.mxu0 0.0
    %447 = vmatpush1.xpose.msra.mxu0 0.0
    %448 = vmatprep.subr.mxu0 0.0
    %449 = vmatpush1.xpose.msra.mxu0 0.0
    %450 = vmatprep.subr.mxu0 0.0
    %451 = vmatpush1.xpose.msra.mxu0 0.0
    %452 = vmatprep.subr.mxu0 0.0
    %453 = vmatpush1.xpose.msra.mxu0 0.0
    %454 = vmatprep.subr.mxu0 0.0
    %455 = vmatpush1.xpose.msra.mxu0 0.0
    %456 = vmatprep.subr.mxu0 0.0
    %457 = vmatpush1.xpose.msra.mxu0 0.0
    %458 = vmatprep.mubr.f32.mxu0 0.0
    %459 = vmatmul.mubr.f32.gmra.mrb[0].mxu0 %v383
    %v460 = vpop.f32.mrb[0].mxu0
    %v461 = vadd.f32 %v64, %v460
    %v462 = vpop.f32.mrb[0].mxu0
    %463 = vdwg.mxu0
    %vm464 = vcmask 195584
    %v465 = vsel %vm464, %v379, -inf
    %466 = vmax.xlane.f32.xlu0 %v465
    %v467 = vpop.xlane.xlu0 %466
    %v468 = vsel %vm464, %v461, -inf
    %469 = vmax.xlane.f32.xlu0 %v468
    %v470 = vpop.xlane.xlu0 %469
    %v471 = vsub.f32 %v379, %v467
    %v472 = vsub.f32 %v461, %v470
    %v473 = vmul.f32 %v471, 1.442695
    %v474 = vpow.pop %v473
    %v475 = vmul.f32 %v472, 1.442695
    %v476 = vpow.pop %v475
    %v477 = vsel %vm464, %v474, 0.0
    %478 = vadd.xlane.f32.xlu0 %v477
    %v479 = vpop.xlane.xlu0 %478
    %v480 = vsel %vm464, %v476, 0.0
    %481 = vadd.xlane.f32.xlu0 %v480
    %v482 = vpop.xlane.xlu0 %481
    %v483 = vrcp.pop %v479
    %v484 = vrcp.pop %v482
    %v485 = vmul.f32 %v474, %v483
    %v486 = vmul.f32 %v476, %v484
    %487 = vrot.lane.b32.xlu0 %v271, 96
    %v488 = vpop.permute.xlu0 %487
    %489 = vrot.lane.b32.xlu0 %v276, 96
    %v490 = vpop.permute.xlu0 %489
    %491 = vrot.lane.b32.xlu0 %v281, 96
    %v492 = vpop.permute.xlu0 %491
    %v497 = vsel %vm464, %v485, 0
    %499 = vmatprep.subr.mxu0 0.0
    %500 = vmatpush1.msra.mxu0 %v488
    %501 = vmatprep.subr.mxu0 0.0
    %502 = vmatpush1.msra.mxu0 %v490
    %503 = vmatprep.subr.mxu0 0.0
    %504 = vmatpush1.msra.mxu0 %v492
    %505 = vmatprep.subr.mxu0 0.0
    %506 = vmatpush1.msra.mxu0 0.0
    %507 = vmatprep.subr.mxu0 0.0
    %508 = vmatpush1.msra.mxu0 0.0
    %509 = vmatprep.subr.mxu0 0.0
    %510 = vmatpush1.msra.mxu0 0.0
    %511 = vmatprep.subr.mxu0 0.0
    %512 = vmatpush1.msra.mxu0 0.0
    %513 = vmatprep.subr.mxu0 0.0
    %514 = vmatpush1.msra.mxu0 0.0
    %515 = vmatprep.subr.mxu0 0.0
    %516 = vmatpush1.msra.mxu0 0.0
    %517 = vmatprep.subr.mxu0 0.0
    %518 = vmatpush1.msra.mxu0 0.0
    %519 = vmatprep.subr.mxu0 0.0
    %520 = vmatpush1.msra.mxu0 0.0
    %521 = vmatprep.subr.mxu0 0.0
    %522 = vmatpush1.msra.mxu0 0.0
    %523 = vmatprep.subr.mxu0 0.0
    %524 = vmatpush1.msra.mxu0 0.0
    %525 = vmatprep.subr.mxu0 0.0
    %526 = vmatpush1.msra.mxu0 0.0
    %527 = vmatprep.subr.mxu0 0.0
    %528 = vmatpush1.msra.mxu0 0.0
    %529 = vmatprep.subr.mxu0 0.0
    %530 = vmatpush1.msra.mxu0 0.0
    %531 = vmatprep.subr.mxu0 0.0
    %532 = vmatpush1.msra.mxu0 0.0
    %533 = vmatprep.subr.mxu0 0.0
    %534 = vmatpush1.msra.mxu0 0.0
    %535 = vmatprep.subr.mxu0 0.0
    %536 = vmatpush1.msra.mxu0 0.0
    %537 = vmatprep.subr.mxu0 0.0
    %538 = vmatpush1.msra.mxu0 0.0
    %539 = vmatprep.subr.mxu0 0.0
    %540 = vmatpush1.msra.mxu0 0.0
    %541 = vmatprep.subr.mxu0 0.0
    %542 = vmatpush1.msra.mxu0 0.0
    %543 = vmatprep.subr.mxu0 0.0
    %544 = vmatpush1.msra.mxu0 0.0
    %545 = vmatprep.subr.mxu0 0.0
    %546 = vmatpush1.msra.mxu0 0.0
    %547 = vmatprep.subr.mxu0 0.0
    %548 = vmatpush1.msra.mxu0 0.0
    %549 = vmatprep.subr.mxu0 0.0
    %550 = vmatpush1.msra.mxu0 0.0
    %551 = vmatprep.subr.mxu0 0.0
    %552 = vmatpush1.msra.mxu0 0.0
    %553 = vmatprep.subr.mxu0 0.0
    %554 = vmatpush1.msra.mxu0 0.0
    %555 = vmatprep.subr.mxu0 0.0
    %556 = vmatpush1.msra.mxu0 0.0
    %557 = vmatprep.subr.mxu0 0.0
    %558 = vmatpush1.msra.mxu0 0.0
    %559 = vmatprep.subr.mxu0 0.0
    %560 = vmatpush1.msra.mxu0 0.0
    %561 = vmatprep.subr.mxu0 0.0
    %562 = vmatpush1.msra.mxu0 0.0
    %563 = vmatprep.mubr.f32.mxu0 0.0
    %564 = vmatmul.mubr.f32.gmra.mrb[0].mxu0 %v497
    %v565 = vpop.f32.mrb[0].mxu0
    %v566 = vadd.f32 0.0, %v565
    %v567 = vpop.f32.mrb[0].mxu0
    %568 = vdwg.mxu0
    %569 = vrot.lane.b32.xlu0 %v286, 96
    %v570 = vpop.permute.xlu0 %569
    %571 = vrot.lane.b32.xlu0 %v291, 96
    %v572 = vpop.permute.xlu0 %571
    %573 = vrot.lane.b32.xlu0 %v296, 96
    %v574 = vpop.permute.xlu0 %573
    %v579 = vsel %vm464, %v486, 0
    %581 = vmatprep.subr.mxu0 0.0
    %582 = vmatpush1.msra.mxu0 %v570
    %583 = vmatprep.subr.mxu0 0.0
    %584 = vmatpush1.msra.mxu0 %v572
    %585 = vmatprep.subr.mxu0 0.0
    %586 = vmatpush1.msra.mxu0 %v574
    %587 = vmatprep.subr.mxu0 0.0
    %588 = vmatpush1.msra.mxu0 0.0
    %589 = vmatprep.subr.mxu0 0.0
    %590 = vmatpush1.msra.mxu0 0.0
    %591 = vmatprep.subr.mxu0 0.0
    %592 = vmatpush1.msra.mxu0 0.0
    %593 = vmatprep.subr.mxu0 0.0
    %594 = vmatpush1.msra.mxu0 0.0
    %595 = vmatprep.subr.mxu0 0.0
    %596 = vmatpush1.msra.mxu0 0.0
    %597 = vmatprep.subr.mxu0 0.0
    %598 = vmatpush1.msra.mxu0 0.0
    %599 = vmatprep.subr.mxu0 0.0
    %600 = vmatpush1.msra.mxu0 0.0
    %601 = vmatprep.subr.mxu0 0.0
    %602 = vmatpush1.msra.mxu0 0.0
    %603 = vmatprep.subr.mxu0 0.0
    %604 = vmatpush1.msra.mxu0 0.0
    %605 = vmatprep.subr.mxu0 0.0
    %606 = vmatpush1.msra.mxu0 0.0
    %607 = vmatprep.subr.mxu0 0.0
    %608 = vmatpush1.msra.mxu0 0.0
    %609 = vmatprep.subr.mxu0 0.0
    %610 = vmatpush1.msra.mxu0 0.0
    %611 = vmatprep.subr.mxu0 0.0
    %612 = vmatpush1.msra.mxu0 0.0
    %613 = vmatprep.subr.mxu0 0.0
    %614 = vmatpush1.msra.mxu0 0.0
    %615 = vmatprep.subr.mxu0 0.0
    %616 = vmatpush1.msra.mxu0 0.0
    %617 = vmatprep.subr.mxu0 0.0
    %618 = vmatpush1.msra.mxu0 0.0
    %619 = vmatprep.subr.mxu0 0.0
    %620 = vmatpush1.msra.mxu0 0.0
    %621 = vmatprep.subr.mxu0 0.0
    %622 = vmatpush1.msra.mxu0 0.0
    %623 = vmatprep.subr.mxu0 0.0
    %624 = vmatpush1.msra.mxu0 0.0
    %625 = vmatprep.subr.mxu0 0.0
    %626 = vmatpush1.msra.mxu0 0.0
    %627 = vmatprep.subr.mxu0 0.0
    %628 = vmatpush1.msra.mxu0 0.0
    %629 = vmatprep.subr.mxu0 0.0
    %630 = vmatpush1.msra.mxu0 0.0
    %631 = vmatprep.subr.mxu0 0.0
    %632 = vmatpush1.msra.mxu0 0.0
    %633 = vmatprep.subr.mxu0 0.0
    %634 = vmatpush1.msra.mxu0 0.0
    %635 = vmatprep.subr.mxu0 0.0
    %636 = vmatpush1.msra.mxu0 0.0
    %637 = vmatprep.subr.mxu0 0.0
    %638 = vmatpush1.msra.mxu0 0.0
    %639 = vmatprep.subr.mxu0 0.0
    %640 = vmatpush1.msra.mxu0 0.0
    %641 = vmatprep.subr.mxu0 0.0
    %642 = vmatpush1.msra.mxu0 0.0
    %643 = vmatprep.subr.mxu0 0.0
    %644 = vmatpush1.msra.mxu0 0.0
    %645 = vmatprep.mubr.f32.mxu0 0.0
    %646 = vmatmul.mubr.f32.gmra.mrb[0].mxu0 %v579
    %v647 = vpop.f32.mrb[0].mxu0
    %v648 = vadd.f32 0.0, %v647
    %v649 = vpop.f32.mrb[0].mxu0
    %650 = vdwg.mxu0
    %651 = vrot.lane.b32.xlu0 %v158, 120
    %v652 = vpop.permute.xlu0 %651
    %653 = vrot.lane.b32.xlu0 %v271, 120
    %v654 = vpop.permute.xlu0 %653
    %655 = vrot.lane.b32.xlu0 %v276, 120
    %v656 = vpop.permute.xlu0 %655
    %657 = vrot.lane.b32.xlu0 %v281, 120
    %v658 = vpop.permute.xlu0 %657
    %v659 = vsel %vm299, %v652, 0
    %v661 = vsel %vm299, %v654, 0
    %v663 = vsel %vm299, %v656, 0
    %v665 = vsel %vm299, %v658, 0
    %667 = vmatprep.subr.mxu0 0.0
    %668 = vmatpush1.xpose.msra.mxu0 %v661
    %669 = vmatprep.subr.mxu0 0.0
    %670 = vmatpush1.xpose.msra.mxu0 %v663
    %671 = vmatprep.subr.mxu0 0.0
    %672 = vmatpush1.xpose.msra.mxu0 %v665
    %673 = vmatprep.subr.mxu0 0.0
    %674 = vmatpush1.xpose.msra.mxu0 0.0
    %675 = vmatprep.subr.mxu0 0.0
    %676 = vmatpush1.xpose.msra.mxu0 0.0
    %677 = vmatprep.subr.mxu0 0.0
    %678 = vmatpush1.xpose.msra.mxu0 0.0
    %679 = vmatprep.subr.mxu0 0.0
    %680 = vmatpush1.xpose.msra.mxu0 0.0
    %681 = vmatprep.subr.mxu0 0.0
    %682 = vmatpush1.xpose.msra.mxu0 0.0
    %683 = vmatprep.subr.mxu0 0.0
    %684 = vmatpush1.xpose.msra.mxu0 0.0
    %685 = vmatprep.subr.mxu0 0.0
    %686 = vmatpush1.xpose.msra.mxu0 0.0
    %687 = vmatprep.subr.mxu0 0.0
    %688 = vmatpush1.xpose.msra.mxu0 0.0
    %689 = vmatprep.subr.mxu0 0.0
    %690 = vmatpush1.xpose.msra.mxu0 0.0
    %691 = vmatprep.subr.mxu0 0.0
    %692 = vmatpush1.xpose.msra.mxu0 0.0
    %693 = vmatprep.subr.mxu0 0.0
    %694 = vmatpush1.xpose.msra.mxu0 0.0
    %695 = vmatprep.subr.mxu0 0.0
    %696 = vmatpush1.xpose.msra.mxu0 0.0
    %697 = vmatprep.subr.mxu0 0.0
    %698 = vmatpush1.xpose.msra.mxu0 0.0
    %699 = vmatprep.subr.mxu0 0.0
    %700 = vmatpush1.xpose.msra.mxu0 0.0
    %701 = vmatprep.subr.mxu0 0.0
    %702 = vmatpush1.xpose.msra.mxu0 0.0
    %703 = vmatprep.subr.mxu0 0.0
    %704 = vmatpush1.xpose.msra.mxu0 0.0
    %705 = vmatprep.subr.mxu0 0.0
    %706 = vmatpush1.xpose.msra.mxu0 0.0
    %707 = vmatprep.subr.mxu0 0.0
    %708 = vmatpush1.xpose.msra.mxu0 0.0
    %709 = vmatprep.subr.mxu0 0.0
    %710 = vmatpush1.xpose.msra.mxu0 0.0
    %711 = vmatprep.subr.mxu0 0.0
    %712 = vmatpush1.xpose.msra.mxu0 0.0
    %713 = vmatprep.subr.mxu0 0.0
    %714 = vmatpush1.xpose.msra.mxu0 0.0
    %715 = vmatprep.subr.mxu0 0.0
    %716 = vmatpush1.xpose.msra.mxu0 0.0
    %717 = vmatprep.subr.mxu0 0.0
    %718 = vmatpush1.xpose.msra.mxu0 0.0
    %719 = vmatprep.subr.mxu0 0.0
    %720 = vmatpush1.xpose.msra.mxu0 0.0
    %721 = vmatprep.subr.mxu0 0.0
    %722 = vmatpush1.xpose.msra.mxu0 0.0
    %723 = vmatprep.subr.mxu0 0.0
    %724 = vmatpush1.xpose.msra.mxu0 0.0
    %725 = vmatprep.subr.mxu0 0.0
    %726 = vmatpush1.xpose.msra.mxu0 0.0
    %727 = vmatprep.subr.mxu0 0.0
    %728 = vmatpush1.xpose.msra.mxu0 0.0
    %729 = vmatprep.subr.mxu0 0.0
    %730 = vmatpush1.xpose.msra.mxu0 0.0
    %731 = vmatprep.mubr.f32.mxu0 0.0
    %732 = vmatmul.mubr.f32.gmra.mrb[0].mxu0 %v659
    %v733 = vpop.f32.mrb[0].mxu0
    %v734 = vadd.f32 %v63, %v733
    %v735 = vpop.f32.mrb[0].mxu0
    %736 = vdwg.mxu0
    %737 = vrot.lane.b32.xlu0 %v163, 120
    %v738 = vpop.permute.xlu0 %737
    %739 = vrot.lane.b32.xlu0 %v286, 120
    %v740 = vpop.permute.xlu0 %739
    %741 = vrot.lane.b32.xlu0 %v291, 120
    %v742 = vpop.permute.xlu0 %741
    %743 = vrot.lane.b32.xlu0 %v296, 120
    %v744 = vpop.permute.xlu0 %743
    %v745 = vsel %vm299, %v738, 0
    %v747 = vsel %vm299, %v740, 0
    %v749 = vsel %vm299, %v742, 0
    %v751 = vsel %vm299, %v744, 0
    %753 = vmatprep.subr.mxu0 0.0
    %754 = vmatpush1.xpose.msra.mxu0 %v747
    %755 = vmatprep.subr.mxu0 0.0
    %756 = vmatpush1.xpose.msra.mxu0 %v749
    %757 = vmatprep.subr.mxu0 0.0
    %758 = vmatpush1.xpose.msra.mxu0 %v751
    %759 = vmatprep.subr.mxu0 0.0
    %760 = vmatpush1.xpose.msra.mxu0 0.0
    %761 = vmatprep.subr.mxu0 0.0
    %762 = vmatpush1.xpose.msra.mxu0 0.0
    %763 = vmatprep.subr.mxu0 0.0
    %764 = vmatpush1.xpose.msra.mxu0 0.0
    %765 = vmatprep.subr.mxu0 0.0
    %766 = vmatpush1.xpose.msra.mxu0 0.0
    %767 = vmatprep.subr.mxu0 0.0
    %768 = vmatpush1.xpose.msra.mxu0 0.0
    %769 = vmatprep.subr.mxu0 0.0
    %770 = vmatpush1.xpose.msra.mxu0 0.0
    %771 = vmatprep.subr.mxu0 0.0
    %772 = vmatpush1.xpose.msra.mxu0 0.0
    %773 = vmatprep.subr.mxu0 0.0
    %774 = vmatpush1.xpose.msra.mxu0 0.0
    %775 = vmatprep.subr.mxu0 0.0
    %776 = vmatpush1.xpose.msra.mxu0 0.0
    %777 = vmatprep.subr.mxu0 0.0
    %778 = vmatpush1.xpose.msra.mxu0 0.0
    %779 = vmatprep.subr.mxu0 0.0
    %780 = vmatpush1.xpose.msra.mxu0 0.0
    %781 = vmatprep.subr.mxu0 0.0
    %782 = vmatpush1.xpose.msra.mxu0 0.0
    %783 = vmatprep.subr.mxu0 0.0
    %784 = vmatpush1.xpose.msra.mxu0 0.0
    %785 = vmatprep.subr.mxu0 0.0
    %786 = vmatpush1.xpose.msra.mxu0 0.0
    %787 = vmatprep.subr.mxu0 0.0
    %788 = vmatpush1.xpose.msra.mxu0 0.0
    %789 = vmatprep.subr.mxu0 0.0
    %790 = vmatpush1.xpose.msra.mxu0 0.0
    %791 = vmatprep.subr.mxu0 0.0
    %792 = vmatpush1.xpose.msra.mxu0 0.0
    %793 = vmatprep.subr.mxu0 0.0
    %794 = vmatpush1.xpose.msra.mxu0 0.0
    %795 = vmatprep.subr.mxu0 0.0
    %796 = vmatpush1.xpose.msra.mxu0 0.0
    %797 = vmatprep.subr.mxu0 0.0
    %798 = vmatpush1.xpose.msra.mxu0 0.0
    %799 = vmatprep.subr.mxu0 0.0
    %800 = vmatpush1.xpose.msra.mxu0 0.0
    %801 = vmatprep.subr.mxu0 0.0
    %802 = vmatpush1.xpose.msra.mxu0 0.0
    %803 = vmatprep.subr.mxu0 0.0
    %804 = vmatpush1.xpose.msra.mxu0 0.0
    %805 = vmatprep.subr.mxu0 0.0
    %806 = vmatpush1.xpose.msra.mxu0 0.0
    %807 = vmatprep.subr.mxu0 0.0
    %808 = vmatpush1.xpose.msra.mxu0 0.0
    %809 = vmatprep.subr.mxu0 0.0
    %810 = vmatpush1.xpose.msra.mxu0 0.0
    %811 = vmatprep.subr.mxu0 0.0
    %812 = vmatpush1.xpose.msra.mxu0 0.0
    %813 = vmatprep.subr.mxu0 0.0
    %814 = vmatpush1.xpose.msra.mxu0 0.0
    %815 = vmatprep.subr.mxu0 0.0
    %816 = vmatpush1.xpose.msra.mxu0 0.0
    %817 = vmatprep.mubr.f32.mxu0 0.0
    %818 = vmatmul.mubr.f32.gmra.mrb[0].mxu0 %v745
    %v819 = vpop.f32.mrb[0].mxu0
    %v820 = vadd.f32 %v64, %v819
    %v821 = vpop.f32.mrb[0].mxu0
    %822 = vdwg.mxu0
    %v823 = vsel %vm464, %v734, -inf
    %824 = vmax.xlane.f32.xlu0 %v823
    %v825 = vpop.xlane.xlu0 %824
    %v826 = vsel %vm464, %v820, -inf
    %827 = vmax.xlane.f32.xlu0 %v826
    %v828 = vpop.xlane.xlu0 %827
    %v829 = vsub.f32 %v734, %v825
    %v830 = vsub.f32 %v820, %v828
    %v831 = vmul.f32 %v829, 1.442695
    %v832 = vpow.pop %v831
    %v833 = vmul.f32 %v830, 1.442695
    %v834 = vpow.pop %v833
    %v835 = vsel %vm464, %v832, 0.0
    %836 = vadd.xlane.f32.xlu0 %v835
    %v837 = vpop.xlane.xlu0 %836
    %v838 = vsel %vm464, %v834, 0.0
    %839 = vadd.xlane.f32.xlu0 %v838
    %v840 = vpop.xlane.xlu0 %839
    %v841 = vrcp.pop %v837
    %v842 = vrcp.pop %v840
    %v843 = vmul.f32 %v832, %v841
    %v844 = vmul.f32 %v834, %v842
    %845 = vrot.lane.b32.xlu0 %v271, 88
    %v846 = vpop.permute.xlu0 %845
    %847 = vrot.lane.b32.xlu0 %v276, 88
    %v848 = vpop.permute.xlu0 %847
    %849 = vrot.lane.b32.xlu0 %v281, 88
    %v850 = vpop.permute.xlu0 %849
    %v855 = vsel %vm464, %v843, 0
    %857 = vmatprep.subr.mxu0 0.0
    %858 = vmatpush1.msra.mxu0 %v846
    %859 = vmatprep.subr.mxu0 0.0
    %860 = vmatpush1.msra.mxu0 %v848
    %861 = vmatprep.subr.mxu0 0.0
    %862 = vmatpush1.msra.mxu0 %v850
    %863 = vmatprep.subr.mxu0 0.0
    %864 = vmatpush1.msra.mxu0 0.0
    %865 = vmatprep.subr.mxu0 0.0
    %866 = vmatpush1.msra.mxu0 0.0
    %867 = vmatprep.subr.mxu0 0.0
    %868 = vmatpush1.msra.mxu0 0.0
    %869 = vmatprep.subr.mxu0 0.0
    %870 = vmatpush1.msra.mxu0 0.0
    %871 = vmatprep.subr.mxu0 0.0
    %872 = vmatpush1.msra.mxu0 0.0
    %873 = vmatprep.subr.mxu0 0.0
    %874 = vmatpush1.msra.mxu0 0.0
    %875 = vmatprep.subr.mxu0 0.0
    %876 = vmatpush1.msra.mxu0 0.0
    %877 = vmatprep.subr.mxu0 0.0
    %878 = vmatpush1.msra.mxu0 0.0
    %879 = vmatprep.subr.mxu0 0.0
    %880 = vmatpush1.msra.mxu0 0.0
    %881 = vmatprep.subr.mxu0 0.0
    %882 = vmatpush1.msra.mxu0 0.0
    %883 = vmatprep.subr.mxu0 0.0
    %884 = vmatpush1.msra.mxu0 0.0
    %885 = vmatprep.subr.mxu0 0.0
    %886 = vmatpush1.msra.mxu0 0.0
    %887 = vmatprep.subr.mxu0 0.0
    %888 = vmatpush1.msra.mxu0 0.0
    %889 = vmatprep.subr.mxu0 0.0
    %890 = vmatpush1.msra.mxu0 0.0
    %891 = vmatprep.subr.mxu0 0.0
    %892 = vmatpush1.msra.mxu0 0.0
    %893 = vmatprep.subr.mxu0 0.0
    %894 = vmatpush1.msra.mxu0 0.0
    %895 = vmatprep.subr.mxu0 0.0
    %896 = vmatpush1.msra.mxu0 0.0
    %897 = vmatprep.subr.mxu0 0.0
    %898 = vmatpush1.msra.mxu0 0.0
    %899 = vmatprep.subr.mxu0 0.0
    %900 = vmatpush1.msra.mxu0 0.0
    %901 = vmatprep.subr.mxu0 0.0
    %902 = vmatpush1.msra.mxu0 0.0
    %903 = vmatprep.subr.mxu0 0.0
    %904 = vmatpush1.msra.mxu0 0.0
    %905 = vmatprep.subr.mxu0 0.0
    %906 = vmatpush1.msra.mxu0 0.0
    %907 = vmatprep.subr.mxu0 0.0
    %908 = vmatpush1.msra.mxu0 0.0
    %909 = vmatprep.subr.mxu0 0.0
    %910 = vmatpush1.msra.mxu0 0.0
    %911 = vmatprep.subr.mxu0 0.0
    %912 = vmatpush1.msra.mxu0 0.0
    %913 = vmatprep.subr.mxu0 0.0
    %914 = vmatpush1.msra.mxu0 0.0
    %915 = vmatprep.subr.mxu0 0.0
    %916 = vmatpush1.msra.mxu0 0.0
    %917 = vmatprep.subr.mxu0 0.0
    %918 = vmatpush1.msra.mxu0 0.0
    %919 = vmatprep.subr.mxu0 0.0
    %920 = vmatpush1.msra.mxu0 0.0
    %921 = vmatprep.mubr.f32.mxu0 0.0
    %922 = vmatmul.mubr.f32.gmra.mrb[0].mxu0 %v855
    %v923 = vpop.f32.mrb[0].mxu0
    %v924 = vadd.f32 0.0, %v923
    %v925 = vpop.f32.mrb[0].mxu0
    %926 = vdwg.mxu0
    %927 = vrot.lane.b32.xlu0 %v286, 88
    %v928 = vpop.permute.xlu0 %927
    %929 = vrot.lane.b32.xlu0 %v291, 88
    %v930 = vpop.permute.xlu0 %929
    %931 = vrot.lane.b32.xlu0 %v296, 88
    %v932 = vpop.permute.xlu0 %931
    %v937 = vsel %vm464, %v844, 0
    %939 = vmatprep.subr.mxu0 0.0
    %940 = vmatpush1.msra.mxu0 %v928
    %941 = vmatprep.subr.mxu0 0.0
    %942 = vmatpush1.msra.mxu0 %v930
    %943 = vmatprep.subr.mxu0 0.0
    %944 = vmatpush1.msra.mxu0 %v932
    %945 = vmatprep.subr.mxu0 0.0
    %946 = vmatpush1.msra.mxu0 0.0
    %947 = vmatprep.subr.mxu0 0.0
    %948 = vmatpush1.msra.mxu0 0.0
    %949 = vmatprep.subr.mxu0 0.0
    %950 = vmatpush1.msra.mxu0 0.0
    %951 = vmatprep.subr.mxu0 0.0
    %952 = vmatpush1.msra.mxu0 0.0
    %953 = vmatprep.subr.mxu0 0.0
    %954 = vmatpush1.msra.mxu0 0.0
    %955 = vmatprep.subr.mxu0 0.0
    %956 = vmatpush1.msra.mxu0 0.0
    %957 = vmatprep.subr.mxu0 0.0
    %958 = vmatpush1.msra.mxu0 0.0
    %959 = vmatprep.subr.mxu0 0.0
    %960 = vmatpush1.msra.mxu0 0.0
    %961 = vmatprep.subr.mxu0 0.0
    %962 = vmatpush1.msra.mxu0 0.0
    %963 = vmatprep.subr.mxu0 0.0
    %964 = vmatpush1.msra.mxu0 0.0
    %965 = vmatprep.subr.mxu0 0.0
    %966 = vmatpush1.msra.mxu0 0.0
    %967 = vmatprep.subr.mxu0 0.0
    %968 = vmatpush1.msra.mxu0 0.0
    %969 = vmatprep.subr.mxu0 0.0
    %970 = vmatpush1.msra.mxu0 0.0
    %971 = vmatprep.subr.mxu0 0.0
    %972 = vmatpush1.msra.mxu0 0.0
    %973 = vmatprep.subr.mxu0 0.0
    %974 = vmatpush1.msra.mxu0 0.0
    %975 = vmatprep.subr.mxu0 0.0
    %976 = vmatpush1.msra.mxu0 0.0
    %977 = vmatprep.subr.mxu0 0.0
    %978 = vmatpush1.msra.mxu0 0.0
    %979 = vmatprep.subr.mxu0 0.0
    %980 = vmatpush1.msra.mxu0 0.0
    %981 = vmatprep.subr.mxu0 0.0
    %982 = vmatpush1.msra.mxu0 0.0
    %983 = vmatprep.subr.mxu0 0.0
    %984 = vmatpush1.msra.mxu0 0.0
    %985 = vmatprep.subr.mxu0 0.0
    %986 = vmatpush1.msra.mxu0 0.0
    %987 = vmatprep.subr.mxu0 0.0
    %988 = vmatpush1.msra.mxu0 0.0
    %989 = vmatprep.subr.mxu0 0.0
    %990 = vmatpush1.msra.mxu0 0.0
    %991 = vmatprep.subr.mxu0 0.0
    %992 = vmatpush1.msra.mxu0 0.0
    %993 = vmatprep.subr.mxu0 0.0
    %994 = vmatpush1.msra.mxu0 0.0
    %995 = vmatprep.subr.mxu0 0.0
    %996 = vmatpush1.msra.mxu0 0.0
    %997 = vmatprep.subr.mxu0 0.0
    %998 = vmatpush1.msra.mxu0 0.0
    %999 = vmatprep.subr.mxu0 0.0
    %1000 = vmatpush1.msra.mxu0 0.0
    %1001 = vmatprep.subr.mxu0 0.0
    %1002 = vmatpush1.msra.mxu0 0.0
    %1003 = vmatprep.mubr.f32.mxu0 0.0
    %1004 = vmatmul.mubr.f32.gmra.mrb[0].mxu0 %v937
    %v1005 = vpop.f32.mrb[0].mxu0
    %v1006 = vadd.f32 0.0, %v1005
    %v1007 = vpop.f32.mrb[0].mxu0
    %1008 = vdwg.mxu0
    %1009 = vrot.lane.b32.xlu0 %v67, 32
    %v1010 = vpop.permute.xlu0 %1009
    %v1013 = vsel %vm299, %v924, 0
    %v1016 = vsel %vm299, %v1006, 0
    %1018 = vmatprep.subr.mxu0 0.0
    %1019 = vmatpush1.msra.mxu0 %v1010
    %1020 = vmatprep.subr.mxu0 0.0
    %1021 = vmatpush1.msra.mxu0 0.0
    %1022 = vmatprep.subr.mxu0 0.0
    %1023 = vmatpush1.msra.mxu0 0.0
    %1024 = vmatprep.subr.mxu0 0.0
    %1025 = vmatpush1.msra.mxu0 0.0
    %1026 = vmatprep.subr.mxu0 0.0
    %1027 = vmatpush1.msra.mxu0 0.0
    %1028 = vmatprep.subr.mxu0 0.0
    %1029 = vmatpush1.msra.mxu0 0.0
    %1030 = vmatprep.subr.mxu0 0.0
    %1031 = vmatpush1.msra.mxu0 0.0
    %1032 = vmatprep.subr.mxu0 0.0
    %1033 = vmatpush1.msra.mxu0 0.0
    %1034 = vmatprep.subr.mxu0 0.0
    %1035 = vmatpush1.msra.mxu0 0.0
    %1036 = vmatprep.subr.mxu0 0.0
    %1037 = vmatpush1.msra.mxu0 0.0
    %1038 = vmatprep.subr.mxu0 0.0
    %1039 = vmatpush1.msra.mxu0 0.0
    %1040 = vmatprep.subr.mxu0 0.0
    %1041 = vmatpush1.msra.mxu0 0.0
    %1042 = vmatprep.subr.mxu0 0.0
    %1043 = vmatpush1.msra.mxu0 0.0
    %1044 = vmatprep.subr.mxu0 0.0
    %1045 = vmatpush1.msra.mxu0 0.0
    %1046 = vmatprep.subr.mxu0 0.0
    %1047 = vmatpush1.msra.mxu0 0.0
    %1048 = vmatprep.subr.mxu0 0.0
    %1049 = vmatpush1.msra.mxu0 0.0
    %1050 = vmatprep.subr.mxu0 0.0
    %1051 = vmatpush1.msra.mxu0 0.0
    %1052 = vmatprep.subr.mxu0 0.0
    %1053 = vmatpush1.msra.mxu0 0.0
    %1054 = vmatprep.subr.mxu0 0.0
    %1055 = vmatpush1.msra.mxu0 0.0
    %1056 = vmatprep.subr.mxu0 0.0
    %1057 = vmatpush1.msra.mxu0 0.0
    %1058 = vmatprep.subr.mxu0 0.0
    %1059 = vmatpush1.msra.mxu0 0.0
    %1060 = vmatprep.subr.mxu0 0.0
    %1061 = vmatpush1.msra.mxu0 0.0
    %1062 = vmatprep.subr.mxu0 0.0
    %1063 = vmatpush1.msra.mxu0 0.0
    %1064 = vmatprep.subr.mxu0 0.0
    %1065 = vmatpush1.msra.mxu0 0.0
    %1066 = vmatprep.subr.mxu0 0.0
    %1067 = vmatpush1.msra.mxu0 0.0
    %1068 = vmatprep.subr.mxu0 0.0
    %1069 = vmatpush1.msra.mxu0 0.0
    %1070 = vmatprep.subr.mxu0 0.0
    %1071 = vmatpush1.msra.mxu0 0.0
    %1072 = vmatprep.subr.mxu0 0.0
    %1073 = vmatpush1.msra.mxu0 0.0
    %1074 = vmatprep.subr.mxu0 0.0
    %1075 = vmatpush1.msra.mxu0 0.0
    %1076 = vmatprep.subr.mxu0 0.0
    %1077 = vmatpush1.msra.mxu0 0.0
    %1078 = vmatprep.subr.mxu0 0.0
    %1079 = vmatpush1.msra.mxu0 0.0
    %1080 = vmatprep.subr.mxu0 0.0
    %1081 = vmatpush1.msra.mxu0 0.0
    %1082 = vmatprep.mubr.f32.mxu0 0.0
    %1083 = vmatmul.mubr.f32.gmra.mrb[0].mxu0 %v1013
    %v1084 = vpop.f32.mrb[0].mxu0
    %v1085 = vadd.f32 0.0, %v1084
    %v1086 = vpop.f32.mrb[0].mxu0
    %1087 = vmatprep.mubr.f32.mxu0 0.0
    %1088 = vmatmul.mubr.f32.gmra.mrb[0].mxu0 %v1016
    %v1089 = vpop.f32.mrb[0].mxu0
    %v1090 = vadd.f32 0.0, %v1089
    %v1091 = vpop.f32.mrb[0].mxu0
    %1092 = vdwg.mxu0
    %1093 = vrot.lane.b32.xlu0 %v65, 32
    %v1094 = vpop.permute.xlu0 %1093
    %v1097 = vsel %vm299, %v566, 0
    %v1100 = vsel %vm299, %v648, 0
    %1102 = vmatprep.subr.mxu0 0.0
    %1103 = vmatpush1.msra.mxu0 %v1094
    %1104 = vmatprep.subr.mxu0 0.0
    %1105 = vmatpush1.msra.mxu0 0.0
    %1106 = vmatprep.subr.mxu0 0.0
    %1107 = vmatpush1.msra.mxu0 0.0
    %1108 = vmatprep.subr.mxu0 0.0
    %1109 = vmatpush1.msra.mxu0 0.0
    %1110 = vmatprep.subr.mxu0 0.0
    %1111 = vmatpush1.msra.mxu0 0.0
    %1112 = vmatprep.subr.mxu0 0.0
    %1113 = vmatpush1.msra.mxu0 0.0
    %1114 = vmatprep.subr.mxu0 0.0
    %1115 = vmatpush1.msra.mxu0 0.0
    %1116 = vmatprep.subr.mxu0 0.0
    %1117 = vmatpush1.msra.mxu0 0.0
    %1118 = vmatprep.subr.mxu0 0.0
    %1119 = vmatpush1.msra.mxu0 0.0
    %1120 = vmatprep.subr.mxu0 0.0
    %1121 = vmatpush1.msra.mxu0 0.0
    %1122 = vmatprep.subr.mxu0 0.0
    %1123 = vmatpush1.msra.mxu0 0.0
    %1124 = vmatprep.subr.mxu0 0.0
    %1125 = vmatpush1.msra.mxu0 0.0
    %1126 = vmatprep.subr.mxu0 0.0
    %1127 = vmatpush1.msra.mxu0 0.0
    %1128 = vmatprep.subr.mxu0 0.0
    %1129 = vmatpush1.msra.mxu0 0.0
    %1130 = vmatprep.subr.mxu0 0.0
    %1131 = vmatpush1.msra.mxu0 0.0
    %1132 = vmatprep.subr.mxu0 0.0
    %1133 = vmatpush1.msra.mxu0 0.0
    %1134 = vmatprep.subr.mxu0 0.0
    %1135 = vmatpush1.msra.mxu0 0.0
    %1136 = vmatprep.subr.mxu0 0.0
    %1137 = vmatpush1.msra.mxu0 0.0
    %1138 = vmatprep.subr.mxu0 0.0
    %1139 = vmatpush1.msra.mxu0 0.0
    %1140 = vmatprep.subr.mxu0 0.0
    %1141 = vmatpush1.msra.mxu0 0.0
    %1142 = vmatprep.subr.mxu0 0.0
    %1143 = vmatpush1.msra.mxu0 0.0
    %1144 = vmatprep.subr.mxu0 0.0
    %1145 = vmatpush1.msra.mxu0 0.0
    %1146 = vmatprep.subr.mxu0 0.0
    %1147 = vmatpush1.msra.mxu0 0.0
    %1148 = vmatprep.subr.mxu0 0.0
    %1149 = vmatpush1.msra.mxu0 0.0
    %1150 = vmatprep.subr.mxu0 0.0
    %1151 = vmatpush1.msra.mxu0 0.0
    %1152 = vmatprep.subr.mxu0 0.0
    %1153 = vmatpush1.msra.mxu0 0.0
    %1154 = vmatprep.subr.mxu0 0.0
    %1155 = vmatpush1.msra.mxu0 0.0
    %1156 = vmatprep.subr.mxu0 0.0
    %1157 = vmatpush1.msra.mxu0 0.0
    %1158 = vmatprep.subr.mxu0 0.0
    %1159 = vmatpush1.msra.mxu0 0.0
    %1160 = vmatprep.subr.mxu0 0.0
    %1161 = vmatpush1.msra.mxu0 0.0
    %1162 = vmatprep.subr.mxu0 0.0
    %1163 = vmatpush1.msra.mxu0 0.0
    %1164 = vmatprep.subr.mxu0 0.0
    %1165 = vmatpush1.msra.mxu0 0.0
    %1166 = vmatprep.mubr.f32.mxu0 0.0
    %1167 = vmatmul.mubr.f32.gmra.mrb[0].mxu0 %v1097
    %v1168 = vpop.f32.mrb[0].mxu0
    %v1169 = vadd.f32 %v1085, %v1168
    %v1170 = vpop.f32.mrb[0].mxu0
    %1171 = vmatprep.mubr.f32.mxu0 0.0
    %1172 = vmatmul.mubr.f32.gmra.mrb[0].mxu0 %v1100
    %v1173 = vpop.f32.mrb[0].mxu0
    %v1174 = vadd.f32 %v1090, %v1173
    %v1175 = vpop.f32.mrb[0].mxu0
    %1176 = vdwg.mxu0
    %1177 = vrot.lane.b32.xlu0 %v158, 112
    %v1178 = vpop.permute.xlu0 %1177
    %1179 = vrot.lane.b32.xlu0 %v271, 112
    %v1180 = vpop.permute.xlu0 %1179
    %1181 = vrot.lane.b32.xlu0 %v276, 112
    %v1182 = vpop.permute.xlu0 %1181
    %1183 = vrot.lane.b32.xlu0 %v281, 112
    %v1184 = vpop.permute.xlu0 %1183
    %v1185 = vsel %vm299, %v1178, 0
    %v1187 = vsel %vm299, %v1180, 0
    %v1189 = vsel %vm299, %v1182, 0
    %v1191 = vsel %vm299, %v1184, 0
    %1193 = vmatprep.subr.mxu0 0.0
    %1194 = vmatpush1.xpose.msra.mxu0 %v1187
    %1195 = vmatprep.subr.mxu0 0.0
    %1196 = vmatpush1.xpose.msra.mxu0 %v1189
    %1197 = vmatprep.subr.mxu0 0.0
    %1198 = vmatpush1.xpose.msra.mxu0 %v1191
    %1199 = vmatprep.subr.mxu0 0.0
    %1200 = vmatpush1.xpose.msra.mxu0 0.0
    %1201 = vmatprep.subr.mxu0 0.0
    %1202 = vmatpush1.xpose.msra.mxu0 0.0
    %1203 = vmatprep.subr.mxu0 0.0
    %1204 = vmatpush1.xpose.msra.mxu0 0.0
    %1205 = vmatprep.subr.mxu0 0.0
    %1206 = vmatpush1.xpose.msra.mxu0 0.0
    %1207 = vmatprep.subr.mxu0 0.0
    %1208 = vmatpush1.xpose.msra.mxu0 0.0
    %1209 = vmatprep.subr.mxu0 0.0
    %1210 = vmatpush1.xpose.msra.mxu0 0.0
    %1211 = vmatprep.subr.mxu0 0.0
    %1212 = vmatpush1.xpose.msra.mxu0 0.0
    %1213 = vmatprep.subr.mxu0 0.0
    %1214 = vmatpush1.xpose.msra.mxu0 0.0
    %1215 = vmatprep.subr.mxu0 0.0
    %1216 = vmatpush1.xpose.msra.mxu0 0.0
    %1217 = vmatprep.subr.mxu0 0.0
    %1218 = vmatpush1.xpose.msra.mxu0 0.0
    %1219 = vmatprep.subr.mxu0 0.0
    %1220 = vmatpush1.xpose.msra.mxu0 0.0
    %1221 = vmatprep.subr.mxu0 0.0
    %1222 = vmatpush1.xpose.msra.mxu0 0.0
    %1223 = vmatprep.subr.mxu0 0.0
    %1224 = vmatpush1.xpose.msra.mxu0 0.0
    %1225 = vmatprep.subr.mxu0 0.0
    %1226 = vmatpush1.xpose.msra.mxu0 0.0
    %1227 = vmatprep.subr.mxu0 0.0
    %1228 = vmatpush1.xpose.msra.mxu0 0.0
    %1229 = vmatprep.subr.mxu0 0.0
    %1230 = vmatpush1.xpose.msra.mxu0 0.0
    %1231 = vmatprep.subr.mxu0 0.0
    %1232 = vmatpush1.xpose.msra.mxu0 0.0
    %1233 = vmatprep.subr.mxu0 0.0
    %1234 = vmatpush1.xpose.msra.mxu0 0.0
    %1235 = vmatprep.subr.mxu0 0.0
    %1236 = vmatpush1.xpose.msra.mxu0 0.0
    %1237 = vmatprep.subr.mxu0 0.0
    %1238 = vmatpush1.xpose.msra.mxu0 0.0
    %1239 = vmatprep.subr.mxu0 0.0
    %1240 = vmatpush1.xpose.msra.mxu0 0.0
    %1241 = vmatprep.subr.mxu0 0.0
    %1242 = vmatpush1.xpose.msra.mxu0 0.0
    %1243 = vmatprep.subr.mxu0 0.0
    %1244 = vmatpush1.xpose.msra.mxu0 0.0
    %1245 = vmatprep.subr.mxu0 0.0
    %1246 = vmatpush1.xpose.msra.mxu0 0.0
    %1247 = vmatprep.subr.mxu0 0.0
    %1248 = vmatpush1.xpose.msra.mxu0 0.0
    %1249 = vmatprep.subr.mxu0 0.0
    %1250 = vmatpush1.xpose.msra.mxu0 0.0
    %1251 = vmatprep.subr.mxu0 0.0
    %1252 = vmatpush1.xpose.msra.mxu0 0.0
    %1253 = vmatprep.subr.mxu0 0.0
    %1254 = vmatpush1.xpose.msra.mxu0 0.0
    %1255 = vmatprep.subr.mxu0 0.0
    %1256 = vmatpush1.xpose.msra.mxu0 0.0
    %1257 = vmatprep.mubr.f32.mxu0 0.0
    %1258 = vmatmul.mubr.f32.gmra.mrb[0].mxu0 %v1185
    %v1259 = vpop.f32.mrb[0].mxu0
    %v1260 = vadd.f32 %v63, %v1259
    %v1261 = vpop.f32.mrb[0].mxu0
    %1262 = vdwg.mxu0
    %1263 = vrot.lane.b32.xlu0 %v163, 112
    %v1264 = vpop.permute.xlu0 %1263
    %1265 = vrot.lane.b32.xlu0 %v286, 112
    %v1266 = vpop.permute.xlu0 %1265
    %1267 = vrot.lane.b32.xlu0 %v291, 112
    %v1268 = vpop.permute.xlu0 %1267
    %1269 = vrot.lane.b32.xlu0 %v296, 112
    %v1270 = vpop.permute.xlu0 %1269
    %v1271 = vsel %vm299, %v1264, 0
    %v1273 = vsel %vm299, %v1266, 0
    %v1275 = vsel %vm299, %v1268, 0
    %v1277 = vsel %vm299, %v1270, 0
    %1279 = vmatprep.subr.mxu0 0.0
    %1280 = vmatpush1.xpose.msra.mxu0 %v1273
    %1281 = vmatprep.subr.mxu0 0.0
    %1282 = vmatpush1.xpose.msra.mxu0 %v1275
    %1283 = vmatprep.subr.mxu0 0.0
    %1284 = vmatpush1.xpose.msra.mxu0 %v1277
    %1285 = vmatprep.subr.mxu0 0.0
    %1286 = vmatpush1.xpose.msra.mxu0 0.0
    %1287 = vmatprep.subr.mxu0 0.0
    %1288 = vmatpush1.xpose.msra.mxu0 0.0
    %1289 = vmatprep.subr.mxu0 0.0
    %1290 = vmatpush1.xpose.msra.mxu0 0.0
    %1291 = vmatprep.subr.mxu0 0.0
    %1292 = vmatpush1.xpose.msra.mxu0 0.0
    %1293 = vmatprep.subr.mxu0 0.0
    %1294 = vmatpush1.xpose.msra.mxu0 0.0
    %1295 = vmatprep.subr.mxu0 0.0
    %1296 = vmatpush1.xpose.msra.mxu0 0.0
    %1297 = vmatprep.subr.mxu0 0.0
    %1298 = vmatpush1.xpose.msra.mxu0 0.0
    %1299 = vmatprep.subr.mxu0 0.0
    %1300 = vmatpush1.xpose.msra.mxu0 0.0
    %1301 = vmatprep.subr.mxu0 0.0
    %1302 = vmatpush1.xpose.msra.mxu0 0.0
    %1303 = vmatprep.subr.mxu0 0.0
    %1304 = vmatpush1.xpose.msra.mxu0 0.0
    %1305 = vmatprep.subr.mxu0 0.0
    %1306 = vmatpush1.xpose.msra.mxu0 0.0
    %1307 = vmatprep.subr.mxu0 0.0
    %1308 = vmatpush1.xpose.msra.mxu0 0.0
    %1309 = vmatprep.subr.mxu0 0.0
    %1310 = vmatpush1.xpose.msra.mxu0 0.0
    %1311 = vmatprep.subr.mxu0 0.0
    %1312 = vmatpush1.xpose.msra.mxu0 0.0
    %1313 = vmatprep.subr.mxu0 0.0
    %1314 = vmatpush1.xpose.msra.mxu0 0.0
    %1315 = vmatprep.subr.mxu0 0.0
    %1316 = vmatpush1.xpose.msra.mxu0 0.0
    %1317 = vmatprep.subr.mxu0 0.0
    %1318 = vmatpush1.xpose.msra.mxu0 0.0
    %1319 = vmatprep.subr.mxu0 0.0
    %1320 = vmatpush1.xpose.msra.mxu0 0.0
    %1321 = vmatprep.subr.mxu0 0.0
    %1322 = vmatpush1.xpose.msra.mxu0 0.0
    %1323 = vmatprep.subr.mxu0 0.0
    %1324 = vmatpush1.xpose.msra.mxu0 0.0
    %1325 = vmatprep.subr.mxu0 0.0
    %1326 = vmatpush1.xpose.msra.mxu0 0.0
    %1327 = vmatprep.subr.mxu0 0.0
    %1328 = vmatpush1.xpose.msra.mxu0 0.0
    %1329 = vmatprep.subr.mxu0 0.0
    %1330 = vmatpush1.xpose.msra.mxu0 0.0
    %1331 = vmatprep.subr.mxu0 0.0
    %1332 = vmatpush1.xpose.msra.mxu0 0.0
    %1333 = vmatprep.subr.mxu0 0.0
    %1334 = vmatpush1.xpose.msra.mxu0 0.0
    %1335 = vmatprep.subr.mxu0 0.0
    %1336 = vmatpush1.xpose.msra.mxu0 0.0
    %1337 = vmatprep.subr.mxu0 0.0
    %1338 = vmatpush1.xpose.msra.mxu0 0.0
    %1339 = vmatprep.subr.mxu0 0.0
    %1340 = vmatpush1.xpose.msra.mxu0 0.0
    %1341 = vmatprep.subr.mxu0 0.0
    %1342 = vmatpush1.xpose.msra.mxu0 0.0
    %1343 = vmatprep.mubr.f32.mxu0 0.0
    %1344 = vmatmul.mubr.f32.gmra.mrb[0].mxu0 %v1271
    %v1345 = vpop.f32.mrb[0].mxu0
    %v1346 = vadd.f32 %v64, %v1345
    %v1347 = vpop.f32.mrb[0].mxu0
    %1348 = vdwg.mxu0
    %v1349 = vsel %vm464, %v1260, -inf
    %1350 = vmax.xlane.f32.xlu0 %v1349
    %v1351 = vpop.xlane.xlu0 %1350
    %v1352 = vsel %vm464, %v1346, -inf
    %1353 = vmax.xlane.f32.xlu0 %v1352
    %v1354 = vpop.xlane.xlu0 %1353
    %v1355 = vsub.f32 %v1260, %v1351
    %v1356 = vsub.f32 %v1346, %v1354
    %v1357 = vmul.f32 %v1355, 1.442695
    %v1358 = vpow.pop %v1357
    %v1359 = vmul.f32 %v1356, 1.442695
    %v1360 = vpow.pop %v1359
    %v1361 = vsel %vm464, %v1358, 0.0
    %1362 = vadd.xlane.f32.xlu0 %v1361
    %v1363 = vpop.xlane.xlu0 %1362
    %v1364 = vsel %vm464, %v1360, 0.0
    %1365 = vadd.xlane.f32.xlu0 %v1364
    %v1366 = vpop.xlane.xlu0 %1365
    %v1367 = vrcp.pop %v1363
    %v1368 = vrcp.pop %v1366
    %v1369 = vmul.f32 %v1358, %v1367
    %v1370 = vmul.f32 %v1360, %v1368
    %1371 = vrot.lane.b32.xlu0 %v271, 80
    %v1372 = vpop.permute.xlu0 %1371
    %1373 = vrot.lane.b32.xlu0 %v276, 80
    %v1374 = vpop.permute.xlu0 %1373
    %1375 = vrot.lane.b32.xlu0 %v281, 80
    %v1376 = vpop.permute.xlu0 %1375
    %v1381 = vsel %vm464, %v1369, 0
    %1383 = vmatprep.subr.mxu0 0.0
    %1384 = vmatpush1.msra.mxu0 %v1372
    %1385 = vmatprep.subr.mxu0 0.0
    %1386 = vmatpush1.msra.mxu0 %v1374
    %1387 = vmatprep.subr.mxu0 0.0
    %1388 = vmatpush1.msra.mxu0 %v1376
    %1389 = vmatprep.subr.mxu0 0.0
    %1390 = vmatpush1.msra.mxu0 0.0
    %1391 = vmatprep.subr.mxu0 0.0
    %1392 = vmatpush1.msra.mxu0 0.0
    %1393 = vmatprep.subr.mxu0 0.0
    %1394 = vmatpush1.msra.mxu0 0.0
    %1395 = vmatprep.subr.mxu0 0.0
    %1396 = vmatpush1.msra.mxu0 0.0
    %1397 = vmatprep.subr.mxu0 0.0
    %1398 = vmatpush1.msra.mxu0 0.0
    %1399 = vmatprep.subr.mxu0 0.0
    %1400 = vmatpush1.msra.mxu0 0.0
    %1401 = vmatprep.subr.mxu0 0.0
    %1402 = vmatpush1.msra.mxu0 0.0
    %1403 = vmatprep.subr.mxu0 0.0
    %1404 = vmatpush1.msra.mxu0 0.0
    %1405 = vmatprep.subr.mxu0 0.0
    %1406 = vmatpush1.msra.mxu0 0.0
    %1407 = vmatprep.subr.mxu0 0.0
    %1408 = vmatpush1.msra.mxu0 0.0
    %1409 = vmatprep.subr.mxu0 0.0
    %1410 = vmatpush1.msra.mxu0 0.0
    %1411 = vmatprep.subr.mxu0 0.0
    %1412 = vmatpush1.msra.mxu0 0.0
    %1413 = vmatprep.subr.mxu0 0.0
    %1414 = vmatpush1.msra.mxu0 0.0
    %1415 = vmatprep.subr.mxu0 0.0
    %1416 = vmatpush1.msra.mxu0 0.0
    %1417 = vmatprep.subr.mxu0 0.0
    %1418 = vmatpush1.msra.mxu0 0.0
    %1419 = vmatprep.subr.mxu0 0.0
    %1420 = vmatpush1.msra.mxu0 0.0
    %1421 = vmatprep.subr.mxu0 0.0
    %1422 = vmatpush1.msra.mxu0 0.0
    %1423 = vmatprep.subr.mxu0 0.0
    %1424 = vmatpush1.msra.mxu0 0.0
    %1425 = vmatprep.subr.mxu0 0.0
    %1426 = vmatpush1.msra.mxu0 0.0
    %1427 = vmatprep.subr.mxu0 0.0
    %1428 = vmatpush1.msra.mxu0 0.0
    %1429 = vmatprep.subr.mxu0 0.0
    %1430 = vmatpush1.msra.mxu0 0.0
    %1431 = vmatprep.subr.mxu0 0.0
    %1432 = vmatpush1.msra.mxu0 0.0
    %1433 = vmatprep.subr.mxu0 0.0
    %1434 = vmatpush1.msra.mxu0 0.0
    %1435 = vmatprep.subr.mxu0 0.0
    %1436 = vmatpush1.msra.mxu0 0.0
    %1437 = vmatprep.subr.mxu0 0.0
    %1438 = vmatpush1.msra.mxu0 0.0
    %1439 = vmatprep.subr.mxu0 0.0
    %1440 = vmatpush1.msra.mxu0 0.0
    %1441 = vmatprep.subr.mxu0 0.0
    %1442 = vmatpush1.msra.mxu0 0.0
    %1443 = vmatprep.subr.mxu0 0.0
    %1444 = vmatpush1.msra.mxu0 0.0
    %1445 = vmatprep.subr.mxu0 0.0
    %1446 = vmatpush1.msra.mxu0 0.0
    %1447 = vmatprep.mubr.f32.mxu0 0.0
    %1448 = vmatmul.mubr.f32.gmra.mrb[0].mxu0 %v1381
    %v1449 = vpop.f32.mrb[0].mxu0
    %v1450 = vadd.f32 0.0, %v1449
    %v1451 = vpop.f32.mrb[0].mxu0
    %1452 = vdwg.mxu0
    %1453 = vrot.lane.b32.xlu0 %v286, 80
    %v1454 = vpop.permute.xlu0 %1453
    %1455 = vrot.lane.b32.xlu0 %v291, 80
    %v1456 = vpop.permute.xlu0 %1455
    %1457 = vrot.lane.b32.xlu0 %v296, 80
    %v1458 = vpop.permute.xlu0 %1457
    %v1463 = vsel %vm464, %v1370, 0
    %1465 = vmatprep.subr.mxu0 0.0
    %1466 = vmatpush1.msra.mxu0 %v1454
    %1467 = vmatprep.subr.mxu0 0.0
    %1468 = vmatpush1.msra.mxu0 %v1456
    %1469 = vmatprep.subr.mxu0 0.0
    %1470 = vmatpush1.msra.mxu0 %v1458
    %1471 = vmatprep.subr.mxu0 0.0
    %1472 = vmatpush1.msra.mxu0 0.0
    %1473 = vmatprep.subr.mxu0 0.0
    %1474 = vmatpush1.msra.mxu0 0.0
    %1475 = vmatprep.subr.mxu0 0.0
    %1476 = vmatpush1.msra.mxu0 0.0
    %1477 = vmatprep.subr.mxu0 0.0
    %1478 = vmatpush1.msra.mxu0 0.0
    %1479 = vmatprep.subr.mxu0 0.0
    %1480 = vmatpush1.msra.mxu0 0.0
    %1481 = vmatprep.subr.mxu0 0.0
    %1482 = vmatpush1.msra.mxu0 0.0
    %1483 = vmatprep.subr.mxu0 0.0
    %1484 = vmatpush1.msra.mxu0 0.0
    %1485 = vmatprep.subr.mxu0 0.0
    %1486 = vmatpush1.msra.mxu0 0.0
    %1487 = vmatprep.subr.mxu0 0.0
    %1488 = vmatpush1.msra.mxu0 0.0
    %1489 = vmatprep.subr.mxu0 0.0
    %1490 = vmatpush1.msra.mxu0 0.0
    %1491 = vmatprep.subr.mxu0 0.0
    %1492 = vmatpush1.msra.mxu0 0.0
    %1493 = vmatprep.subr.mxu0 0.0
    %1494 = vmatpush1.msra.mxu0 0.0
    %1495 = vmatprep.subr.mxu0 0.0
    %1496 = vmatpush1.msra.mxu0 0.0
    %1497 = vmatprep.subr.mxu0 0.0
    %1498 = vmatpush1.msra.mxu0 0.0
    %1499 = vmatprep.subr.mxu0 0.0
    %1500 = vmatpush1.msra.mxu0 0.0
    %1501 = vmatprep.subr.mxu0 0.0
    %1502 = vmatpush1.msra.mxu0 0.0
    %1503 = vmatprep.subr.mxu0 0.0
    %1504 = vmatpush1.msra.mxu0 0.0
    %1505 = vmatprep.subr.mxu0 0.0
    %1506 = vmatpush1.msra.mxu0 0.0
    %1507 = vmatprep.subr.mxu0 0.0
    %1508 = vmatpush1.msra.mxu0 0.0
    %1509 = vmatprep.subr.mxu0 0.0
    %1510 = vmatpush1.msra.mxu0 0.0
    %1511 = vmatprep.subr.mxu0 0.0
    %1512 = vmatpush1.msra.mxu0 0.0
    %1513 = vmatprep.subr.mxu0 0.0
    %1514 = vmatpush1.msra.mxu0 0.0
    %1515 = vmatprep.subr.mxu0 0.0
    %1516 = vmatpush1.msra.mxu0 0.0
    %1517 = vmatprep.subr.mxu0 0.0
    %1518 = vmatpush1.msra.mxu0 0.0
    %1519 = vmatprep.subr.mxu0 0.0
    %1520 = vmatpush1.msra.mxu0 0.0
    %1521 = vmatprep.subr.mxu0 0.0
    %1522 = vmatpush1.msra.mxu0 0.0
    %1523 = vmatprep.subr.mxu0 0.0
    %1524 = vmatpush1.msra.mxu0 0.0
    %1525 = vmatprep.subr.mxu0 0.0
    %1526 = vmatpush1.msra.mxu0 0.0
    %1527 = vmatprep.subr.mxu0 0.0
    %1528 = vmatpush1.msra.mxu0 0.0
    %1529 = vmatprep.mubr.f32.mxu0 0.0
    %1530 = vmatmul.mubr.f32.gmra.mrb[0].mxu0 %v1463
    %v1531 = vpop.f32.mrb[0].mxu0
    %v1532 = vadd.f32 0.0, %v1531
    %v1533 = vpop.f32.mrb[0].mxu0
    %1534 = vdwg.mxu0
    %1535 = vrot.lane.b32.xlu0 %v69, 32
    %v1536 = vpop.permute.xlu0 %1535
    %v1539 = vsel %vm299, %v1450, 0
    %v1542 = vsel %vm299, %v1532, 0
    %1544 = vmatprep.subr.mxu0 0.0
    %1545 = vmatpush1.msra.mxu0 %v1536
    %1546 = vmatprep.subr.mxu0 0.0
    %1547 = vmatpush1.msra.mxu0 0.0
    %1548 = vmatprep.subr.mxu0 0.0
    %1549 = vmatpush1.msra.mxu0 0.0
    %1550 = vmatprep.subr.mxu0 0.0
    %1551 = vmatpush1.msra.mxu0 0.0
    %1552 = vmatprep.subr.mxu0 0.0
    %1553 = vmatpush1.msra.mxu0 0.0
    %1554 = vmatprep.subr.mxu0 0.0
    %1555 = vmatpush1.msra.mxu0 0.0
    %1556 = vmatprep.subr.mxu0 0.0
    %1557 = vmatpush1.msra.mxu0 0.0
    %1558 = vmatprep.subr.mxu0 0.0
    %1559 = vmatpush1.msra.mxu0 0.0
    %1560 = vmatprep.subr.mxu0 0.0
    %1561 = vmatpush1.msra.mxu0 0.0
    %1562 = vmatprep.subr.mxu0 0.0
    %1563 = vmatpush1.msra.mxu0 0.0
    %1564 = vmatprep.subr.mxu0 0.0
    %1565 = vmatpush1.msra.mxu0 0.0
    %1566 = vmatprep.subr.mxu0 0.0
    %1567 = vmatpush1.msra.mxu0 0.0
    %1568 = vmatprep.subr.mxu0 0.0
    %1569 = vmatpush1.msra.mxu0 0.0
    %1570 = vmatprep.subr.mxu0 0.0
    %1571 = vmatpush1.msra.mxu0 0.0
    %1572 = vmatprep.subr.mxu0 0.0
    %1573 = vmatpush1.msra.mxu0 0.0
    %1574 = vmatprep.subr.mxu0 0.0
    %1575 = vmatpush1.msra.mxu0 0.0
    %1576 = vmatprep.subr.mxu0 0.0
    %1577 = vmatpush1.msra.mxu0 0.0
    %1578 = vmatprep.subr.mxu0 0.0
    %1579 = vmatpush1.msra.mxu0 0.0
    %1580 = vmatprep.subr.mxu0 0.0
    %1581 = vmatpush1.msra.mxu0 0.0
    %1582 = vmatprep.subr.mxu0 0.0
    %1583 = vmatpush1.msra.mxu0 0.0
    %1584 = vmatprep.subr.mxu0 0.0
    %1585 = vmatpush1.msra.mxu0 0.0
    %1586 = vmatprep.subr.mxu0 0.0
    %1587 = vmatpush1.msra.mxu0 0.0
    %1588 = vmatprep.subr.mxu0 0.0
    %1589 = vmatpush1.msra.mxu0 0.0
    %1590 = vmatprep.subr.mxu0 0.0
    %1591 = vmatpush1.msra.mxu0 0.0
    %1592 = vmatprep.subr.mxu0 0.0
    %1593 = vmatpush1.msra.mxu0 0.0
    %1594 = vmatprep.subr.mxu0 0.0
    %1595 = vmatpush1.msra.mxu0 0.0
    %1596 = vmatprep.subr.mxu0 0.0
    %1597 = vmatpush1.msra.mxu0 0.0
    %1598 = vmatprep.subr.mxu0 0.0
    %1599 = vmatpush1.msra.mxu0 0.0
    %1600 = vmatprep.subr.mxu0 0.0
    %1601 = vmatpush1.msra.mxu0 0.0
    %1602 = vmatprep.subr.mxu0 0.0
    %1603 = vmatpush1.msra.mxu0 0.0
    %1604 = vmatprep.subr.mxu0 0.0
    %1605 = vmatpush1.msra.mxu0 0.0
    %1606 = vmatprep.subr.mxu0 0.0
    %1607 = vmatpush1.msra.mxu0 0.0
    %1608 = vmatprep.mubr.f32.mxu0 0.0
    %1609 = vmatmul.mubr.f32.gmra.mrb[0].mxu0 %v1539
    %v1610 = vpop.f32.mrb[0].mxu0
    %v1611 = vadd.f32 0.0, %v1610
    %v1612 = vpop.f32.mrb[0].mxu0
    %1613 = vmatprep.mubr.f32.mxu0 0.0
    %1614 = vmatmul.mubr.f32.gmra.mrb[0].mxu0 %v1542
    %v1615 = vpop.f32.mrb[0].mxu0
    %v1616 = vadd.f32 0.0, %v1615
    %v1617 = vpop.f32.mrb[0].mxu0
    %1618 = vdwg.mxu0
    %v1619 = vadd.f32 %v1169, %v1611
    %v1620 = vadd.f32 %v1174, %v1616
    %1621 = vrot.lane.b32.xlu0 %v158, 104
    %v1622 = vpop.permute.xlu0 %1621
    %1623 = vrot.lane.b32.xlu0 %v271, 104
    %v1624 = vpop.permute.xlu0 %1623
    %1625 = vrot.lane.b32.xlu0 %v276, 104
    %v1626 = vpop.permute.xlu0 %1625
    %1627 = vrot.lane.b32.xlu0 %v281, 104
    %v1628 = vpop.permute.xlu0 %1627
    %v1629 = vsel %vm299, %v1622, 0
    %v1631 = vsel %vm299, %v1624, 0
    %v1633 = vsel %vm299, %v1626, 0
    %v1635 = vsel %vm299, %v1628, 0
    %1637 = vmatprep.subr.mxu0 0.0
    %1638 = vmatpush1.xpose.msra.mxu0 %v1631
    %1639 = vmatprep.subr.mxu0 0.0
    %1640 = vmatpush1.xpose.msra.mxu0 %v1633
    %1641 = vmatprep.subr.mxu0 0.0
    %1642 = vmatpush1.xpose.msra.mxu0 %v1635
    %1643 = vmatprep.subr.mxu0 0.0
    %1644 = vmatpush1.xpose.msra.mxu0 0.0
    %1645 = vmatprep.subr.mxu0 0.0
    %1646 = vmatpush1.xpose.msra.mxu0 0.0
    %1647 = vmatprep.subr.mxu0 0.0
    %1648 = vmatpush1.xpose.msra.mxu0 0.0
    %1649 = vmatprep.subr.mxu0 0.0
    %1650 = vmatpush1.xpose.msra.mxu0 0.0
    %1651 = vmatprep.subr.mxu0 0.0
    %1652 = vmatpush1.xpose.msra.mxu0 0.0
    %1653 = vmatprep.subr.mxu0 0.0
    %1654 = vmatpush1.xpose.msra.mxu0 0.0
    %1655 = vmatprep.subr.mxu0 0.0
    %1656 = vmatpush1.xpose.msra.mxu0 0.0
    %1657 = vmatprep.subr.mxu0 0.0
    %1658 = vmatpush1.xpose.msra.mxu0 0.0
    %1659 = vmatprep.subr.mxu0 0.0
    %1660 = vmatpush1.xpose.msra.mxu0 0.0
    %1661 = vmatprep.subr.mxu0 0.0
    %1662 = vmatpush1.xpose.msra.mxu0 0.0
    %1663 = vmatprep.subr.mxu0 0.0
    %1664 = vmatpush1.xpose.msra.mxu0 0.0
    %1665 = vmatprep.subr.mxu0 0.0
    %1666 = vmatpush1.xpose.msra.mxu0 0.0
    %1667 = vmatprep.subr.mxu0 0.0
    %1668 = vmatpush1.xpose.msra.mxu0 0.0
    %1669 = vmatprep.subr.mxu0 0.0
    %1670 = vmatpush1.xpose.msra.mxu0 0.0
    %1671 = vmatprep.subr.mxu0 0.0
    %1672 = vmatpush1.xpose.msra.mxu0 0.0
    %1673 = vmatprep.subr.mxu0 0.0
    %1674 = vmatpush1.xpose.msra.mxu0 0.0
    %1675 = vmatprep.subr.mxu0 0.0
    %1676 = vmatpush1.xpose.msra.mxu0 0.0
    %1677 = vmatprep.subr.mxu0 0.0
    %1678 = vmatpush1.xpose.msra.mxu0 0.0
    %1679 = vmatprep.subr.mxu0 0.0
    %1680 = vmatpush1.xpose.msra.mxu0 0.0
    %1681 = vmatprep.subr.mxu0 0.0
    %1682 = vmatpush1.xpose.msra.mxu0 0.0
    %1683 = vmatprep.subr.mxu0 0.0
    %1684 = vmatpush1.xpose.msra.mxu0 0.0
    %1685 = vmatprep.subr.mxu0 0.0
    %1686 = vmatpush1.xpose.msra.mxu0 0.0
    %1687 = vmatprep.subr.mxu0 0.0
    %1688 = vmatpush1.xpose.msra.mxu0 0.0
    %1689 = vmatprep.subr.mxu0 0.0
    %1690 = vmatpush1.xpose.msra.mxu0 0.0
    %1691 = vmatprep.subr.mxu0 0.0
    %1692 = vmatpush1.xpose.msra.mxu0 0.0
    %1693 = vmatprep.subr.mxu0 0.0
    %1694 = vmatpush1.xpose.msra.mxu0 0.0
    %1695 = vmatprep.subr.mxu0 0.0
    %1696 = vmatpush1.xpose.msra.mxu0 0.0
    %1697 = vmatprep.subr.mxu0 0.0
    %1698 = vmatpush1.xpose.msra.mxu0 0.0
    %1699 = vmatprep.subr.mxu0 0.0
    %1700 = vmatpush1.xpose.msra.mxu0 0.0
    %1701 = vmatprep.mubr.f32.mxu0 0.0
    %1702 = vmatmul.mubr.f32.gmra.mrb[0].mxu0 %v1629
    %v1703 = vpop.f32.mrb[0].mxu0
    %v1704 = vadd.f32 %v63, %v1703
    %v1705 = vpop.f32.mrb[0].mxu0
    %1706 = vdwg.mxu0
    %1707 = vrot.lane.b32.xlu0 %v163, 104
    %v1708 = vpop.permute.xlu0 %1707
    %1709 = vrot.lane.b32.xlu0 %v286, 104
    %v1710 = vpop.permute.xlu0 %1709
    %1711 = vrot.lane.b32.xlu0 %v291, 104
    %v1712 = vpop.permute.xlu0 %1711
    %1713 = vrot.lane.b32.xlu0 %v296, 104
    %v1714 = vpop.permute.xlu0 %1713
    %v1715 = vsel %vm299, %v1708, 0
    %v1717 = vsel %vm299, %v1710, 0
    %v1719 = vsel %vm299, %v1712, 0
    %v1721 = vsel %vm299, %v1714, 0
    %1723 = vmatprep.subr.mxu0 0.0
    %1724 = vmatpush1.xpose.msra.mxu0 %v1717
    %1725 = vmatprep.subr.mxu0 0.0
    %1726 = vmatpush1.xpose.msra.mxu0 %v1719
    %1727 = vmatprep.subr.mxu0 0.0
    %1728 = vmatpush1.xpose.msra.mxu0 %v1721
    %1729 = vmatprep.subr.mxu0 0.0
    %1730 = vmatpush1.xpose.msra.mxu0 0.0
    %1731 = vmatprep.subr.mxu0 0.0
    %1732 = vmatpush1.xpose.msra.mxu0 0.0
    %1733 = vmatprep.subr.mxu0 0.0
    %1734 = vmatpush1.xpose.msra.mxu0 0.0
    %1735 = vmatprep.subr.mxu0 0.0
    %1736 = vmatpush1.xpose.msra.mxu0 0.0
    %1737 = vmatprep.subr.mxu0 0.0
    %1738 = vmatpush1.xpose.msra.mxu0 0.0
    %1739 = vmatprep.subr.mxu0 0.0
    %1740 = vmatpush1.xpose.msra.mxu0 0.0
    %1741 = vmatprep.subr.mxu0 0.0
    %1742 = vmatpush1.xpose.msra.mxu0 0.0
    %1743 = vmatprep.subr.mxu0 0.0
    %1744 = vmatpush1.xpose.msra.mxu0 0.0
    %1745 = vmatprep.subr.mxu0 0.0
    %1746 = vmatpush1.xpose.msra.mxu0 0.0
    %1747 = vmatprep.subr.mxu0 0.0
    %1748 = vmatpush1.xpose.msra.mxu0 0.0
    %1749 = vmatprep.subr.mxu0 0.0
    %1750 = vmatpush1.xpose.msra.mxu0 0.0
    %1751 = vmatprep.subr.mxu0 0.0
    %1752 = vmatpush1.xpose.msra.mxu0 0.0
    %1753 = vmatprep.subr.mxu0 0.0
    %1754 = vmatpush1.xpose.msra.mxu0 0.0
    %1755 = vmatprep.subr.mxu0 0.0
    %1756 = vmatpush1.xpose.msra.mxu0 0.0
    %1757 = vmatprep.subr.mxu0 0.0
    %1758 = vmatpush1.xpose.msra.mxu0 0.0
    %1759 = vmatprep.subr.mxu0 0.0
    %1760 = vmatpush1.xpose.msra.mxu0 0.0
    %1761 = vmatprep.subr.mxu0 0.0
    %1762 = vmatpush1.xpose.msra.mxu0 0.0
    %1763 = vmatprep.subr.mxu0 0.0
    %1764 = vmatpush1.xpose.msra.mxu0 0.0
    %1765 = vmatprep.subr.mxu0 0.0
    %1766 = vmatpush1.xpose.msra.mxu0 0.0
    %1767 = vmatprep.subr.mxu0 0.0
    %1768 = vmatpush1.xpose.msra.mxu0 0.0
    %1769 = vmatprep.subr.mxu0 0.0
    %1770 = vmatpush1.xpose.msra.mxu0 0.0
    %1771 = vmatprep.subr.mxu0 0.0
    %1772 = vmatpush1.xpose.msra.mxu0 0.0
    %1773 = vmatprep.subr.mxu0 0.0
    %1774 = vmatpush1.xpose.msra.mxu0 0.0
    %1775 = vmatprep.subr.mxu0 0.0
    %1776 = vmatpush1.xpose.msra.mxu0 0.0
    %1777 = vmatprep.subr.mxu0 0.0
    %1778 = vmatpush1.xpose.msra.mxu0 0.0
    %1779 = vmatprep.subr.mxu0 0.0
    %1780 = vmatpush1.xpose.msra.mxu0 0.0
    %1781 = vmatprep.subr.mxu0 0.0
    %1782 = vmatpush1.xpose.msra.mxu0 0.0
    %1783 = vmatprep.subr.mxu0 0.0
    %1784 = vmatpush1.xpose.msra.mxu0 0.0
    %1785 = vmatprep.subr.mxu0 0.0
    %1786 = vmatpush1.xpose.msra.mxu0 0.0
    %1787 = vmatprep.mubr.f32.mxu0 0.0
    %1788 = vmatmul.mubr.f32.gmra.mrb[0].mxu0 %v1715
    %v1789 = vpop.f32.mrb[0].mxu0
    %v1790 = vadd.f32 %v64, %v1789
    %v1791 = vpop.f32.mrb[0].mxu0
    %1792 = vdwg.mxu0
    %v1793 = vsel %vm464, %v1704, -inf
    %1794 = vmax.xlane.f32.xlu0 %v1793
    %v1795 = vpop.xlane.xlu0 %1794
    %v1796 = vsel %vm464, %v1790, -inf
    %1797 = vmax.xlane.f32.xlu0 %v1796
    %v1798 = vpop.xlane.xlu0 %1797
    %v1799 = vsub.f32 %v1704, %v1795
    %v1800 = vsub.f32 %v1790, %v1798
    %v1801 = vmul.f32 %v1799, 1.442695
    %v1802 = vpow.pop %v1801
    %v1803 = vmul.f32 %v1800, 1.442695
    %v1804 = vpow.pop %v1803
    %v1805 = vsel %vm464, %v1802, 0.0
    %1806 = vadd.xlane.f32.xlu0 %v1805
    %v1807 = vpop.xlane.xlu0 %1806
    %v1808 = vsel %vm464, %v1804, 0.0
    %1809 = vadd.xlane.f32.xlu0 %v1808
    %v1810 = vpop.xlane.xlu0 %1809
    %v1811 = vrcp.pop %v1807
    %v1812 = vrcp.pop %v1810
    %v1813 = vmul.f32 %v1802, %v1811
    %v1814 = vmul.f32 %v1804, %v1812
    %1815 = vrot.lane.b32.xlu0 %v271, 72
    %v1816 = vpop.permute.xlu0 %1815
    %1817 = vrot.lane.b32.xlu0 %v276, 72
    %v1818 = vpop.permute.xlu0 %1817
    %1819 = vrot.lane.b32.xlu0 %v281, 72
    %v1820 = vpop.permute.xlu0 %1819
    %v1825 = vsel %vm464, %v1813, 0
    %1827 = vmatprep.subr.mxu0 0.0
    %1828 = vmatpush1.msra.mxu0 %v1816
    %1829 = vmatprep.subr.mxu0 0.0
    %1830 = vmatpush1.msra.mxu0 %v1818
    %1831 = vmatprep.subr.mxu0 0.0
    %1832 = vmatpush1.msra.mxu0 %v1820
    %1833 = vmatprep.subr.mxu0 0.0
    %1834 = vmatpush1.msra.mxu0 0.0
    %1835 = vmatprep.subr.mxu0 0.0
    %1836 = vmatpush1.msra.mxu0 0.0
    %1837 = vmatprep.subr.mxu0 0.0
    %1838 = vmatpush1.msra.mxu0 0.0
    %1839 = vmatprep.subr.mxu0 0.0
    %1840 = vmatpush1.msra.mxu0 0.0
    %1841 = vmatprep.subr.mxu0 0.0
    %1842 = vmatpush1.msra.mxu0 0.0
    %1843 = vmatprep.subr.mxu0 0.0
    %1844 = vmatpush1.msra.mxu0 0.0
    %1845 = vmatprep.subr.mxu0 0.0
    %1846 = vmatpush1.msra.mxu0 0.0
    %1847 = vmatprep.subr.mxu0 0.0
    %1848 = vmatpush1.msra.mxu0 0.0
    %1849 = vmatprep.subr.mxu0 0.0
    %1850 = vmatpush1.msra.mxu0 0.0
    %1851 = vmatprep.subr.mxu0 0.0
    %1852 = vmatpush1.msra.mxu0 0.0
    %1853 = vmatprep.subr.mxu0 0.0
    %1854 = vmatpush1.msra.mxu0 0.0
    %1855 = vmatprep.subr.mxu0 0.0
    %1856 = vmatpush1.msra.mxu0 0.0
    %1857 = vmatprep.subr.mxu0 0.0
    %1858 = vmatpush1.msra.mxu0 0.0
    %1859 = vmatprep.subr.mxu0 0.0
    %1860 = vmatpush1.msra.mxu0 0.0
    %1861 = vmatprep.subr.mxu0 0.0
    %1862 = vmatpush1.msra.mxu0 0.0
    %1863 = vmatprep.subr.mxu0 0.0
    %1864 = vmatpush1.msra.mxu0 0.0
    %1865 = vmatprep.subr.mxu0 0.0
    %1866 = vmatpush1.msra.mxu0 0.0
    %1867 = vmatprep.subr.mxu0 0.0
    %1868 = vmatpush1.msra.mxu0 0.0
    %1869 = vmatprep.subr.mxu0 0.0
    %1870 = vmatpush1.msra.mxu0 0.0
    %1871 = vmatprep.subr.mxu0 0.0
    %1872 = vmatpush1.msra.mxu0 0.0
    %1873 = vmatprep.subr.mxu0 0.0
    %1874 = vmatpush1.msra.mxu0 0.0
    %1875 = vmatprep.subr.mxu0 0.0
    %1876 = vmatpush1.msra.mxu0 0.0
    %1877 = vmatprep.subr.mxu0 0.0
    %1878 = vmatpush1.msra.mxu0 0.0
    %1879 = vmatprep.subr.mxu0 0.0
    %1880 = vmatpush1.msra.mxu0 0.0
    %1881 = vmatprep.subr.mxu0 0.0
    %1882 = vmatpush1.msra.mxu0 0.0
    %1883 = vmatprep.subr.mxu0 0.0
    %1884 = vmatpush1.msra.mxu0 0.0
    %1885 = vmatprep.subr.mxu0 0.0
    %1886 = vmatpush1.msra.mxu0 0.0
    %1887 = vmatprep.subr.mxu0 0.0
    %1888 = vmatpush1.msra.mxu0 0.0
    %1889 = vmatprep.subr.mxu0 0.0
    %1890 = vmatpush1.msra.mxu0 0.0
    %1891 = vmatprep.mubr.f32.mxu0 0.0
    %1892 = vmatmul.mubr.f32.gmra.mrb[0].mxu0 %v1825
    %v1893 = vpop.f32.mrb[0].mxu0
    %v1894 = vadd.f32 0.0, %v1893
    %v1895 = vpop.f32.mrb[0].mxu0
    %1896 = vdwg.mxu0
    %1897 = vrot.lane.b32.xlu0 %v286, 72
    %v1898 = vpop.permute.xlu0 %1897
    %1899 = vrot.lane.b32.xlu0 %v291, 72
    %v1900 = vpop.permute.xlu0 %1899
    %1901 = vrot.lane.b32.xlu0 %v296, 72
    %v1902 = vpop.permute.xlu0 %1901
    %v1907 = vsel %vm464, %v1814, 0
    %1909 = vmatprep.subr.mxu0 0.0
    %1910 = vmatpush1.msra.mxu0 %v1898
    %1911 = vmatprep.subr.mxu0 0.0
    %1912 = vmatpush1.msra.mxu0 %v1900
    %1913 = vmatprep.subr.mxu0 0.0
    %1914 = vmatpush1.msra.mxu0 %v1902
    %1915 = vmatprep.subr.mxu0 0.0
    %1916 = vmatpush1.msra.mxu0 0.0
    %1917 = vmatprep.subr.mxu0 0.0
    %1918 = vmatpush1.msra.mxu0 0.0
    %1919 = vmatprep.subr.mxu0 0.0
    %1920 = vmatpush1.msra.mxu0 0.0
    %1921 = vmatprep.subr.mxu0 0.0
    %1922 = vmatpush1.msra.mxu0 0.0
    %1923 = vmatprep.subr.mxu0 0.0
    %1924 = vmatpush1.msra.mxu0 0.0
    %1925 = vmatprep.subr.mxu0 0.0
    %1926 = vmatpush1.msra.mxu0 0.0
    %1927 = vmatprep.subr.mxu0 0.0
    %1928 = vmatpush1.msra.mxu0 0.0
    %1929 = vmatprep.subr.mxu0 0.0
    %1930 = vmatpush1.msra.mxu0 0.0
    %1931 = vmatprep.subr.mxu0 0.0
    %1932 = vmatpush1.msra.mxu0 0.0
    %1933 = vmatprep.subr.mxu0 0.0
    %1934 = vmatpush1.msra.mxu0 0.0
    %1935 = vmatprep.subr.mxu0 0.0
    %1936 = vmatpush1.msra.mxu0 0.0
    %1937 = vmatprep.subr.mxu0 0.0
    %1938 = vmatpush1.msra.mxu0 0.0
    %1939 = vmatprep.subr.mxu0 0.0
    %1940 = vmatpush1.msra.mxu0 0.0
    %1941 = vmatprep.subr.mxu0 0.0
    %1942 = vmatpush1.msra.mxu0 0.0
    %1943 = vmatprep.subr.mxu0 0.0
    %1944 = vmatpush1.msra.mxu0 0.0
    %1945 = vmatprep.subr.mxu0 0.0
    %1946 = vmatpush1.msra.mxu0 0.0
    %1947 = vmatprep.subr.mxu0 0.0
    %1948 = vmatpush1.msra.mxu0 0.0
    %1949 = vmatprep.subr.mxu0 0.0
    %1950 = vmatpush1.msra.mxu0 0.0
    %1951 = vmatprep.subr.mxu0 0.0
    %1952 = vmatpush1.msra.mxu0 0.0
    %1953 = vmatprep.subr.mxu0 0.0
    %1954 = vmatpush1.msra.mxu0 0.0
    %1955 = vmatprep.subr.mxu0 0.0
    %1956 = vmatpush1.msra.mxu0 0.0
    %1957 = vmatprep.subr.mxu0 0.0
    %1958 = vmatpush1.msra.mxu0 0.0
    %1959 = vmatprep.subr.mxu0 0.0
    %1960 = vmatpush1.msra.mxu0 0.0
    %1961 = vmatprep.subr.mxu0 0.0
    %1962 = vmatpush1.msra.mxu0 0.0
    %1963 = vmatprep.subr.mxu0 0.0
    %1964 = vmatpush1.msra.mxu0 0.0
    %1965 = vmatprep.subr.mxu0 0.0
    %1966 = vmatpush1.msra.mxu0 0.0
    %1967 = vmatprep.subr.mxu0 0.0
    %1968 = vmatpush1.msra.mxu0 0.0
    %1969 = vmatprep.subr.mxu0 0.0
    %1970 = vmatpush1.msra.mxu0 0.0
    %1971 = vmatprep.subr.mxu0 0.0
    %1972 = vmatpush1.msra.mxu0 0.0
    %1973 = vmatprep.mubr.f32.mxu0 0.0
    %1974 = vmatmul.mubr.f32.gmra.mrb[0].mxu0 %v1907
    %v1975 = vpop.f32.mrb[0].mxu0
    %v1976 = vadd.f32 0.0, %v1975
    %v1977 = vpop.f32.mrb[0].mxu0
    %1978 = vdwg.mxu0
    %1979 = vrot.lane.b32.xlu0 %v71, 32
    %v1980 = vpop.permute.xlu0 %1979
    %v1983 = vsel %vm299, %v1894, 0
    %v1986 = vsel %vm299, %v1976, 0
    %1988 = vmatprep.subr.mxu0 0.0
    %1989 = vmatpush1.msra.mxu0 %v1980
    %1990 = vmatprep.subr.mxu0 0.0
    %1991 = vmatpush1.msra.mxu0 0.0
    %1992 = vmatprep.subr.mxu0 0.0
    %1993 = vmatpush1.msra.mxu0 0.0
    %1994 = vmatprep.subr.mxu0 0.0
    %1995 = vmatpush1.msra.mxu0 0.0
    %1996 = vmatprep.subr.mxu0 0.0
    %1997 = vmatpush1.msra.mxu0 0.0
    %1998 = vmatprep.subr.mxu0 0.0
    %1999 = vmatpush1.msra.mxu0 0.0
    %2000 = vmatprep.subr.mxu0 0.0
    %2001 = vmatpush1.msra.mxu0 0.0
    %2002 = vmatprep.subr.mxu0 0.0
    %2003 = vmatpush1.msra.mxu0 0.0
    %2004 = vmatprep.subr.mxu0 0.0
    %2005 = vmatpush1.msra.mxu0 0.0
    %2006 = vmatprep.subr.mxu0 0.0
    %2007 = vmatpush1.msra.mxu0 0.0
    %2008 = vmatprep.subr.mxu0 0.0
    %2009 = vmatpush1.msra.mxu0 0.0
    %2010 = vmatprep.subr.mxu0 0.0
    %2011 = vmatpush1.msra.mxu0 0.0
    %2012 = vmatprep.subr.mxu0 0.0
    %2013 = vmatpush1.msra.mxu0 0.0
    %2014 = vmatprep.subr.mxu0 0.0
    %2015 = vmatpush1.msra.mxu0 0.0
    %2016 = vmatprep.subr.mxu0 0.0
    %2017 = vmatpush1.msra.mxu0 0.0
    %2018 = vmatprep.subr.mxu0 0.0
    %2019 = vmatpush1.msra.mxu0 0.0
    %2020 = vmatprep.subr.mxu0 0.0
    %2021 = vmatpush1.msra.mxu0 0.0
    %2022 = vmatprep.subr.mxu0 0.0
    %2023 = vmatpush1.msra.mxu0 0.0
    %2024 = vmatprep.subr.mxu0 0.0
    %2025 = vmatpush1.msra.mxu0 0.0
    %2026 = vmatprep.subr.mxu0 0.0
    %2027 = vmatpush1.msra.mxu0 0.0
    %2028 = vmatprep.subr.mxu0 0.0
    %2029 = vmatpush1.msra.mxu0 0.0
    %2030 = vmatprep.subr.mxu0 0.0
    %2031 = vmatpush1.msra.mxu0 0.0
    %2032 = vmatprep.subr.mxu0 0.0
    %2033 = vmatpush1.msra.mxu0 0.0
    %2034 = vmatprep.subr.mxu0 0.0
    %2035 = vmatpush1.msra.mxu0 0.0
    %2036 = vmatprep.subr.mxu0 0.0
    %2037 = vmatpush1.msra.mxu0 0.0
    %2038 = vmatprep.subr.mxu0 0.0
    %2039 = vmatpush1.msra.mxu0 0.0
    %2040 = vmatprep.subr.mxu0 0.0
    %2041 = vmatpush1.msra.mxu0 0.0
    %2042 = vmatprep.subr.mxu0 0.0
    %2043 = vmatpush1.msra.mxu0 0.0
    %2044 = vmatprep.subr.mxu0 0.0
    %2045 = vmatpush1.msra.mxu0 0.0
    %2046 = vmatprep.subr.mxu0 0.0
    %2047 = vmatpush1.msra.mxu0 0.0
    %2048 = vmatprep.subr.mxu0 0.0
    %2049 = vmatpush1.msra.mxu0 0.0
    %2050 = vmatprep.subr.mxu0 0.0
    %2051 = vmatpush1.msra.mxu0 0.0
    %2052 = vmatprep.mubr.f32.mxu0 0.0
    %2053 = vmatmul.mubr.f32.gmra.mrb[0].mxu0 %v1983
    %v2054 = vpop.f32.mrb[0].mxu0
    %v2055 = vadd.f32 0.0, %v2054
    %v2056 = vpop.f32.mrb[0].mxu0
    %2057 = vmatprep.mubr.f32.mxu0 0.0
    %2058 = vmatmul.mubr.f32.gmra.mrb[0].mxu0 %v1986
    %v2059 = vpop.f32.mrb[0].mxu0
    %v2060 = vadd.f32 0.0, %v2059
    %v2061 = vpop.f32.mrb[0].mxu0
    %2062 = vdwg.mxu0
    %v2063 = vadd.f32 %v1619, %v2055
    %v2064 = vadd.f32 %v1620, %v2060
    %v2065 = vlaneseq
    %v2066 = vshrl.u32 %v2065, 7
    %v2067 = vsub.s32 2, %v2066
    %v2068 = vrot.slane %v81, %v2067
    %v2069 = vadd.f32 %v2063, %v2068
    %v2070 = vadd.f32 %v2064, %v2068
    %v2071 = vadd.f32 %v56, %v2069
    %v2072 = vadd.f32 %v56, %v2070
    %v2073 = vsel %vm87, %v2071, 0.0
    %2074 = vadd.xlane.f32.xlu0 %v2073
    %v2075 = vpop.xlane.xlu0 %2074
    %v2076 = vsel %vm87, %v2072, 0.0
    %2077 = vadd.xlane.f32.xlu0 %v2076
    %v2078 = vpop.xlane.xlu0 %2077
    %v2079 = vrcp.pop 32.0
    %v2080 = vmul.f32 %v2075, %v2079
    %v2081 = vmul.f32 %v2078, %v2079
    %v2082 = vsub.f32 %v2071, %v2080
    %v2083 = vsub.f32 %v2072, %v2081
    %v2084 = vmul.f32 %v2082, %v2082
    %v2085 = vmul.f32 %v2083, %v2083
    %v2086 = vsel %vm87, %v2084, 0.0
    %2087 = vadd.xlane.f32.xlu0 %v2086
    %v2088 = vpop.xlane.xlu0 %2087
    %v2089 = vsel %vm87, %v2085, 0.0
    %2090 = vadd.xlane.f32.xlu0 %v2089
    %v2091 = vpop.xlane.xlu0 %2090
    %v2092 = vmul.f32 %v2088, %v2079
    %v2093 = vmul.f32 %v2091, %v2079
    %v2094 = vadd.f32 %v2092, 1e-05
    %v2095 = vadd.f32 %v2093, 1e-05
    %v2096 = vrsqrt.pop %v2094
    %v2097 = vrsqrt.pop %v2095
    %v2098 = vmul.f32 %v2082, %v2096
    %v2099 = vmul.f32 %v2083, %v2097
    %v2100 = vlaneseq
    %v2101 = vshrl.u32 %v2100, 7
    %v2102 = vsub.s32 3, %v2101
    %v2103 = vrot.slane %v81, %v2102
    %v2104 = vmul.f32 %v2098, %v2103
    %v2105 = vmul.f32 %v2099, %v2103
    %v2106 = vlaneseq
    %v2107 = vshrl.u32 %v2106, 7
    %v2108 = vsub.s32 4, %v2107
    %v2109 = vrot.slane %v81, %v2108
    %v2110 = vadd.f32 %v2104, %v2109
    %v2111 = vadd.f32 %v2105, %v2109
    %v2112 = vlaneseq
    %v2113 = vshrl.u32 %v2112, 7
    %v2114 = vsub.s32 5, %v2113
    %v2115 = vrot.slane %v81, %v2114
    %v2117 = vsel %vm87, %v2110, 0
    %v2120 = vsel %vm87, %v2111, 0
    %2122 = vmatprep.subr.mxu0 0.0
    %2123 = vmatpush1.msra.mxu0 %v66
    %2124 = vmatprep.subr.mxu0 0.0
    %2125 = vmatpush1.msra.mxu0 %v68
    %2126 = vmatprep.subr.mxu0 0.0
    %2127 = vmatpush1.msra.mxu0 %v70
    %2128 = vmatprep.subr.mxu0 0.0
    %2129 = vmatpush1.msra.mxu0 %v72
    %2130 = vmatprep.subr.mxu0 0.0
    %2131 = vmatpush1.msra.mxu0 0.0
    %2132 = vmatprep.subr.mxu0 0.0
    %2133 = vmatpush1.msra.mxu0 0.0
    %2134 = vmatprep.subr.mxu0 0.0
    %2135 = vmatpush1.msra.mxu0 0.0
    %2136 = vmatprep.subr.mxu0 0.0
    %2137 = vmatpush1.msra.mxu0 0.0
    %2138 = vmatprep.subr.mxu0 0.0
    %2139 = vmatpush1.msra.mxu0 0.0
    %2140 = vmatprep.subr.mxu0 0.0
    %2141 = vmatpush1.msra.mxu0 0.0
    %2142 = vmatprep.subr.mxu0 0.0
    %2143 = vmatpush1.msra.mxu0 0.0
    %2144 = vmatprep.subr.mxu0 0.0
    %2145 = vmatpush1.msra.mxu0 0.0
    %2146 = vmatprep.subr.mxu0 0.0
    %2147 = vmatpush1.msra.mxu0 0.0
    %2148 = vmatprep.subr.mxu0 0.0
    %2149 = vmatpush1.msra.mxu0 0.0
    %2150 = vmatprep.subr.mxu0 0.0
    %2151 = vmatpush1.msra.mxu0 0.0
    %2152 = vmatprep.subr.mxu0 0.0
    %2153 = vmatpush1.msra.mxu0 0.0
    %2154 = vmatprep.subr.mxu0 0.0
    %2155 = vmatpush1.msra.mxu0 0.0
    %2156 = vmatprep.subr.mxu0 0.0
    %2157 = vmatpush1.msra.mxu0 0.0
    %2158 = vmatprep.subr.mxu0 0.0
    %2159 = vmatpush1.msra.mxu0 0.0
    %2160 = vmatprep.subr.mxu0 0.0
    %2161 = vmatpush1.msra.mxu0 0.0
    %2162 = vmatprep.subr.mxu0 0.0
    %2163 = vmatpush1.msra.mxu0 0.0
    %2164 = vmatprep.subr.mxu0 0.0
    %2165 = vmatpush1.msra.mxu0 0.0
    %2166 = vmatprep.subr.mxu0 0.0
    %2167 = vmatpush1.msra.mxu0 0.0
    %2168 = vmatprep.subr.mxu0 0.0
    %2169 = vmatpush1.msra.mxu0 0.0
    %2170 = vmatprep.subr.mxu0 0.0
    %2171 = vmatpush1.msra.mxu0 0.0
    %2172 = vmatprep.subr.mxu0 0.0
    %2173 = vmatpush1.msra.mxu0 0.0
    %2174 = vmatprep.subr.mxu0 0.0
    %2175 = vmatpush1.msra.mxu0 0.0
    %2176 = vmatprep.subr.mxu0 0.0
    %2177 = vmatpush1.msra.mxu0 0.0
    %2178 = vmatprep.subr.mxu0 0.0
    %2179 = vmatpush1.msra.mxu0 0.0
    %2180 = vmatprep.subr.mxu0 0.0
    %2181 = vmatpush1.msra.mxu0 0.0
    %2182 = vmatprep.subr.mxu0 0.0
    %2183 = vmatpush1.msra.mxu0 0.0
    %2184 = vmatprep.subr.mxu0 0.0
    %2185 = vmatpush1.msra.mxu0 0.0
    %2186 = vmatprep.mubr.f32.mxu0 0.0
    %2187 = vmatmul.mubr.f32.gmra.mrb[0].mxu0 %v2117
    %v2188 = vpop.f32.mrb[0].mxu0
    %v2189 = vadd.f32 %v2115, %v2188
    %v2190 = vpop.f32.mrb[0].mxu0
    %2191 = vmatprep.mubr.f32.mxu0 0.0
    %2192 = vmatmul.mubr.f32.gmra.mrb[0].mxu0 %v2120
    %v2193 = vpop.f32.mrb[0].mxu0
    %v2194 = vadd.f32 %v2115, %v2193
    %v2195 = vpop.f32.mrb[0].mxu0
    %2196 = vdwg.mxu0
    %v2197 = vmul.f32 %v2189, %v2189
    %v2198 = vmul.f32 %v2194, %v2194
    %v2199 = vmul.f32 %v2189, %v2197
    %v2200 = vmul.f32 %v2194, %v2198
    %v2201 = vmul.f32 %v2199, 0.044715
    %v2202 = vmul.f32 %v2200, 0.044715
    %v2203 = vadd.f32 %v2189, %v2201
    %v2204 = vadd.f32 %v2194, %v2202
    %v2205 = vmul.f32 %v2203, 0.7978846
    %v2206 = vmul.f32 %v2204, 0.7978846
    %v2207 = vtanh.pop %v2205
    %v2208 = vtanh.pop %v2206
    %v2209 = vadd.f32 %v2207, 1.0
    %v2210 = vadd.f32 %v2208, 1.0
    %v2211 = vmul.f32 %v2209, 0.5
    %v2212 = vmul.f32 %v2210, 0.5
    %v2213 = vmul.f32 %v2189, %v2211
    %v2214 = vmul.f32 %v2194, %v2212
    %v2215 = vlaneseq
    %v2216 = vshrl.u32 %v2215, 7
    %v2217 = vsub.s32 6, %v2216
    %v2218 = vrot.slane %v81, %v2217
    %vm2219 = vcmask 523264
    %v2221 = vsel %vm2219, %v2213, 0
    %v2224 = vsel %vm2219, %v2214, 0
    %2226 = vmatprep.subr.mxu0 0.0
    %2227 = vmatpush1.msra.mxu0 %v73
    %2228 = vmatprep.subr.mxu0 0.0
    %2229 = vmatpush1.msra.mxu0 %v74
    %2230 = vmatprep.subr.mxu0 0.0
    %2231 = vmatpush1.msra.mxu0 %v75
    %2232 = vmatprep.subr.mxu0 0.0
    %2233 = vmatpush1.msra.mxu0 %v76
    %2234 = vmatprep.subr.mxu0 0.0
    %2235 = vmatpush1.msra.mxu0 %v77
    %2236 = vmatprep.subr.mxu0 0.0
    %2237 = vmatpush1.msra.mxu0 %v78
    %2238 = vmatprep.subr.mxu0 0.0
    %2239 = vmatpush1.msra.mxu0 %v79
    %2240 = vmatprep.subr.mxu0 0.0
    %2241 = vmatpush1.msra.mxu0 %v80
    %2242 = vmatprep.subr.mxu0 0.0
    %2243 = vmatpush1.msra.mxu0 0.0
    %2244 = vmatprep.subr.mxu0 0.0
    %2245 = vmatpush1.msra.mxu0 0.0
    %2246 = vmatprep.subr.mxu0 0.0
    %2247 = vmatpush1.msra.mxu0 0.0
    %2248 = vmatprep.subr.mxu0 0.0
    %2249 = vmatpush1.msra.mxu0 0.0
    %2250 = vmatprep.subr.mxu0 0.0
    %2251 = vmatpush1.msra.mxu0 0.0
    %2252 = vmatprep.subr.mxu0 0.0
    %2253 = vmatpush1.msra.mxu0 0.0
    %2254 = vmatprep.subr.mxu0 0.0
    %2255 = vmatpush1.msra.mxu0 0.0
    %2256 = vmatprep.subr.mxu0 0.0
    %2257 = vmatpush1.msra.mxu0 0.0
    %2258 = vmatprep.subr.mxu0 0.0
    %2259 = vmatpush1.msra.mxu0 0.0
    %2260 = vmatprep.subr.mxu0 0.0
    %2261 = vmatpush1.msra.mxu0 0.0
    %2262 = vmatprep.subr.mxu0 0.0
    %2263 = vmatpush1.msra.mxu0 0.0
    %2264 = vmatprep.subr.mxu0 0.0
    %2265 = vmatpush1.msra.mxu0 0.0
    %2266 = vmatprep.subr.mxu0 0.0
    %2267 = vmatpush1.msra.mxu0 0.0
    %2268 = vmatprep.subr.mxu0 0.0
    %2269 = vmatpush1.msra.mxu0 0.0
    %2270 = vmatprep.subr.mxu0 0.0
    %2271 = vmatpush1.msra.mxu0 0.0
    %2272 = vmatprep.subr.mxu0 0.0
    %2273 = vmatpush1.msra.mxu0 0.0
    %2274 = vmatprep.subr.mxu0 0.0
    %2275 = vmatpush1.msra.mxu0 0.0
    %2276 = vmatprep.subr.mxu0 0.0
    %2277 = vmatpush1.msra.mxu0 0.0
    %2278 = vmatprep.subr.mxu0 0.0
    %2279 = vmatpush1.msra.mxu0 0.0
    %2280 = vmatprep.subr.mxu0 0.0
    %2281 = vmatpush1.msra.mxu0 0.0
    %2282 = vmatprep.subr.mxu0 0.0
    %2283 = vmatpush1.msra.mxu0 0.0
    %2284 = vmatprep.subr.mxu0 0.0
    %2285 = vmatpush1.msra.mxu0 0.0
    %2286 = vmatprep.subr.mxu0 0.0
    %2287 = vmatpush1.msra.mxu0 0.0
    %2288 = vmatprep.subr.mxu0 0.0
    %2289 = vmatpush1.msra.mxu0 0.0
    %2290 = vmatprep.mubr.f32.mxu0 0.0
    %2291 = vmatmul.mubr.f32.gmra.mrb[0].mxu0 %v2221
    %v2292 = vpop.f32.mrb[0].mxu0
    %v2293 = vadd.f32 %v2218, %v2292
    %v2294 = vpop.f32.mrb[0].mxu0
    %2295 = vmatprep.mubr.f32.mxu0 0.0
    %2296 = vmatmul.mubr.f32.gmra.mrb[0].mxu0 %v2224
    %v2297 = vpop.f32.mrb[0].mxu0
    %v2298 = vadd.f32 %v2218, %v2297
    %v2299 = vpop.f32.mrb[0].mxu0
    %2300 = vdwg.mxu0
    %v2301 = vadd.f32 %v2110, %v2293
    %v2302 = vadd.f32 %v2111, %v2298
    %v2303 = vsel %vm87, %v2301, 0.0
    %2304 = vadd.xlane.f32.xlu0 %v2303
    %v2305 = vpop.xlane.xlu0 %2304
    %v2306 = vsel %vm87, %v2302, 0.0
    %2307 = vadd.xlane.f32.xlu0 %v2306
    %v2308 = vpop.xlane.xlu0 %2307
    %v2309 = vmul.f32 %v2305, %v2079
    %v2310 = vmul.f32 %v2308, %v2079
    %v2311 = vsub.f32 %v2301, %v2309
    %v2312 = vsub.f32 %v2302, %v2310
    %v2313 = vmul.f32 %v2311, %v2311
    %v2314 = vmul.f32 %v2312, %v2312
    %v2315 = vsel %vm87, %v2313, 0.0
    %2316 = vadd.xlane.f32.xlu0 %v2315
    %v2317 = vpop.xlane.xlu0 %2316
    %v2318 = vsel %vm87, %v2314, 0.0
    %2319 = vadd.xlane.f32.xlu0 %v2318
    %v2320 = vpop.xlane.xlu0 %2319
    %v2321 = vmul.f32 %v2317, %v2079
    %v2322 = vmul.f32 %v2320, %v2079
    %v2323 = vadd.f32 %v2321, 1e-05
    %v2324 = vadd.f32 %v2322, 1e-05
    %v2325 = vrsqrt.pop %v2323
    %v2326 = vrsqrt.pop %v2324
    %v2327 = vmul.f32 %v2311, %v2325
    %v2328 = vmul.f32 %v2312, %v2326
    %v2329 = vlaneseq
    %v2330 = vshrl.u32 %v2329, 7
    %v2331 = vsub.s32 7, %v2330
    %v2332 = vrot.slane %v81, %v2331
    %v2333 = vmul.f32 %v2327, %v2332
    %v2334 = vmul.f32 %v2328, %v2332
    %v2335 = vlaneseq
    %v2336 = vshrl.u32 %v2335, 7
    %v2337 = vsub.s32 0, %v2336
    %v2338 = vrot.slane %v82, %v2337
    %v2339 = vadd.f32 %v2333, %v2338
    %v2340 = vadd.f32 %v2334, %v2338
    %s2341 = scalar_lea.vmem %s3, 64
    %v2342 = vld [vmem:[%s2341] sm:$0xff]
    %v2343 = vld [vmem:[%s2341 + $0x8] sm:$0xff]
    %v2344 = vld [vmem:[%s2341 + $0x10] sm:$0xff]
    %v2345 = vld [vmem:[%s2341 + $0x18] sm:$0xff]
    %v2346 = vld [vmem:[%s2341 + $0x20] sm:$0xff]
    %v2347 = vld [vmem:[%s2341 + $0x28] sm:$0xff]
    %v2348 = vld [vmem:[%s2341 + $0x30] sm:$0xff]
    %v2349 = vld [vmem:[%s2341 + $0x38] sm:$0xff]
    %s2350 = scalar_lea.vmem %s4, 64
    %v2351 = vld [vmem:[%s2350] sm:$0xff]
    %v2352 = vld [vmem:[%s2350 + $0x8] sm:$0xff]
    %v2353 = vld [vmem:[%s2350 + $0x10] sm:$0xff]
    %v2354 = vld [vmem:[%s2350 + $0x18] sm:$0xff]
    %v2355 = vld [vmem:[%s2350 + $0x20] sm:$0xff]
    %v2356 = vld [vmem:[%s2350 + $0x28] sm:$0xff]
    %v2357 = vld [vmem:[%s2350 + $0x30] sm:$0xff]
    %v2358 = vld [vmem:[%s2350 + $0x38] sm:$0xff]
    %s2359 = scalar_lea.vmem %s5, 16
    %v2360 = vld [vmem:[%s2359] sm:$0xff]
    %v2361 = vld [vmem:[%s2359 + $0x8] sm:$0x1]
    %v2362 = vlaneseq
    %v2363 = vshrl.u32 %v2362, 7
    %v2364 = vsub.s32 0, %v2363
    %v2365 = vrot.slane %v2360, %v2364
    %v2367 = vsel %vm87, %v2339, 0
    %v2370 = vsel %vm87, %v2340, 0
    %2372 = vmatprep.subr.mxu0 0.0
    %2373 = vmatpush1.msra.mxu0 %v2342
    %2374 = vmatprep.subr.mxu0 0.0
    %2375 = vmatpush1.msra.mxu0 %v2344
    %2376 = vmatprep.subr.mxu0 0.0
    %2377 = vmatpush1.msra.mxu0 %v2346
    %2378 = vmatprep.subr.mxu0 0.0
    %2379 = vmatpush1.msra.mxu0 %v2348
    %2380 = vmatprep.subr.mxu0 0.0
    %2381 = vmatpush1.msra.mxu0 0.0
    %2382 = vmatprep.subr.mxu0 0.0
    %2383 = vmatpush1.msra.mxu0 0.0
    %2384 = vmatprep.subr.mxu0 0.0
    %2385 = vmatpush1.msra.mxu0 0.0
    %2386 = vmatprep.subr.mxu0 0.0
    %2387 = vmatpush1.msra.mxu0 0.0
    %2388 = vmatprep.subr.mxu0 0.0
    %2389 = vmatpush1.msra.mxu0 0.0
    %2390 = vmatprep.subr.mxu0 0.0
    %2391 = vmatpush1.msra.mxu0 0.0
    %2392 = vmatprep.subr.mxu0 0.0
    %2393 = vmatpush1.msra.mxu0 0.0
    %2394 = vmatprep.subr.mxu0 0.0
    %2395 = vmatpush1.msra.mxu0 0.0
    %2396 = vmatprep.subr.mxu0 0.0
    %2397 = vmatpush1.msra.mxu0 0.0
    %2398 = vmatprep.subr.mxu0 0.0
    %2399 = vmatpush1.msra.mxu0 0.0
    %2400 = vmatprep.subr.mxu0 0.0
    %2401 = vmatpush1.msra.mxu0 0.0
    %2402 = vmatprep.subr.mxu0 0.0
    %2403 = vmatpush1.msra.mxu0 0.0
    %2404 = vmatprep.subr.mxu0 0.0
    %2405 = vmatpush1.msra.mxu0 0.0
    %2406 = vmatprep.subr.mxu0 0.0
    %2407 = vmatpush1.msra.mxu0 0.0
    %2408 = vmatprep.subr.mxu0 0.0
    %2409 = vmatpush1.msra.mxu0 0.0
    %2410 = vmatprep.subr.mxu0 0.0
    %2411 = vmatpush1.msra.mxu0 0.0
    %2412 = vmatprep.subr.mxu0 0.0
    %2413 = vmatpush1.msra.mxu0 0.0
    %2414 = vmatprep.subr.mxu0 0.0
    %2415 = vmatpush1.msra.mxu0 0.0
    %2416 = vmatprep.subr.mxu0 0.0
    %2417 = vmatpush1.msra.mxu0 0.0
    %2418 = vmatprep.subr.mxu0 0.0
    %2419 = vmatpush1.msra.mxu0 0.0
    %2420 = vmatprep.subr.mxu0 0.0
    %2421 = vmatpush1.msra.mxu0 0.0
    %2422 = vmatprep.subr.mxu0 0.0
    %2423 = vmatpush1.msra.mxu0 0.0
    %2424 = vmatprep.subr.mxu0 0.0
    %2425 = vmatpush1.msra.mxu0 0.0
    %2426 = vmatprep.subr.mxu0 0.0
    %2427 = vmatpush1.msra.mxu0 0.0
    %2428 = vmatprep.subr.mxu0 0.0
    %2429 = vmatpush1.msra.mxu0 0.0
    %2430 = vmatprep.subr.mxu0 0.0
    %2431 = vmatpush1.msra.mxu0 0.0
    %2432 = vmatprep.subr.mxu0 0.0
    %2433 = vmatpush1.msra.mxu0 0.0
    %2434 = vmatprep.subr.mxu0 0.0
    %2435 = vmatpush1.msra.mxu0 0.0
    %2436 = vmatprep.mubr.f32.mxu0 0.0
    %2437 = vmatmul.mubr.f32.gmra.mrb[0].mxu0 %v2367
    %v2438 = vpop.f32.mrb[0].mxu0
    %v2439 = vadd.f32 %v2365, %v2438
    %v2440 = vpop.f32.mrb[0].mxu0
    %2441 = vmatprep.mubr.f32.mxu0 0.0
    %2442 = vmatmul.mubr.f32.gmra.mrb[0].mxu0 %v2370
    %v2443 = vpop.f32.mrb[0].mxu0
    %v2444 = vadd.f32 %v2365, %v2443
    %v2445 = vpop.f32.mrb[0].mxu0
    %2446 = vdwg.mxu0
    %v2447 = vlaneseq
    %v2448 = vshrl.u32 %v2447, 7
    %v2449 = vsub.s32 1, %v2448
    %v2450 = vrot.slane %v2360, %v2449
    %2455 = vrot.lane.b32.xlu0 %v2342, 96
    %v2456 = vpop.permute.xlu0 %2455
    %2457 = vrot.lane.b32.xlu0 %v2344, 96
    %v2458 = vpop.permute.xlu0 %2457
    %2459 = vrot.lane.b32.xlu0 %v2346, 96
    %v2460 = vpop.permute.xlu0 %2459
    %2461 = vrot.lane.b32.xlu0 %v2348, 96
    %v2462 = vpop.permute.xlu0 %2461
    %2467 = vmatprep.subr.mxu0 0.0
    %2468 = vmatpush1.msra.mxu0 %v2456
    %2469 = vmatprep.subr.mxu0 0.0
    %2470 = vmatpush1.msra.mxu0 %v2458
    %2471 = vmatprep.subr.mxu0 0.0
    %2472 = vmatpush1.msra.mxu0 %v2460
    %2473 = vmatprep.subr.mxu0 0.0
    %2474 = vmatpush1.msra.mxu0 %v2462
    %2475 = vmatprep.subr.mxu0 0.0
    %2476 = vmatpush1.msra.mxu0 0.0
    %2477 = vmatprep.subr.mxu0 0.0
    %2478 = vmatpush1.msra.mxu0 0.0
    %2479 = vmatprep.subr.mxu0 0.0
    %2480 = vmatpush1.msra.mxu0 0.0
    %2481 = vmatprep.subr.mxu0 0.0
    %2482 = vmatpush1.msra.mxu0 0.0
    %2483 = vmatprep.subr.mxu0 0.0
    %2484 = vmatpush1.msra.mxu0 0.0
    %2485 = vmatprep.subr.mxu0 0.0
    %2486 = vmatpush1.msra.mxu0 0.0
    %2487 = vmatprep.subr.mxu0 0.0
    %2488 = vmatpush1.msra.mxu0 0.0
    %2489 = vmatprep.subr.mxu0 0.0
    %2490 = vmatpush1.msra.mxu0 0.0
    %2491 = vmatprep.subr.mxu0 0.0
    %2492 = vmatpush1.msra.mxu0 0.0
    %2493 = vmatprep.subr.mxu0 0.0
    %2494 = vmatpush1.msra.mxu0 0.0
    %2495 = vmatprep.subr.mxu0 0.0
    %2496 = vmatpush1.msra.mxu0 0.0
    %2497 = vmatprep.subr.mxu0 0.0
    %2498 = vmatpush1.msra.mxu0 0.0
    %2499 = vmatprep.subr.mxu0 0.0
    %2500 = vmatpush1.msra.mxu0 0.0
    %2501 = vmatprep.subr.mxu0 0.0
    %2502 = vmatpush1.msra.mxu0 0.0
    %2503 = vmatprep.subr.mxu0 0.0
    %2504 = vmatpush1.msra.mxu0 0.0
    %2505 = vmatprep.subr.mxu0 0.0
    %2506 = vmatpush1.msra.mxu0 0.0
    %2507 = vmatprep.subr.mxu0 0.0
    %2508 = vmatpush1.msra.mxu0 0.0
    %2509 = vmatprep.subr.mxu0 0.0
    %2510 = vmatpush1.msra.mxu0 0.0
    %2511 = vmatprep.subr.mxu0 0.0
    %2512 = vmatpush1.msra.mxu0 0.0
    %2513 = vmatprep.subr.mxu0 0.0
    %2514 = vmatpush1.msra.mxu0 0.0
    %2515 = vmatprep.subr.mxu0 0.0
    %2516 = vmatpush1.msra.mxu0 0.0
    %2517 = vmatprep.subr.mxu0 0.0
    %2518 = vmatpush1.msra.mxu0 0.0
    %2519 = vmatprep.subr.mxu0 0.0
    %2520 = vmatpush1.msra.mxu0 0.0
    %2521 = vmatprep.subr.mxu0 0.0
    %2522 = vmatpush1.msra.mxu0 0.0
    %2523 = vmatprep.subr.mxu0 0.0
    %2524 = vmatpush1.msra.mxu0 0.0
    %2525 = vmatprep.subr.mxu0 0.0
    %2526 = vmatpush1.msra.mxu0 0.0
    %2527 = vmatprep.subr.mxu0 0.0
    %2528 = vmatpush1.msra.mxu0 0.0
    %2529 = vmatprep.subr.mxu0 0.0
    %2530 = vmatpush1.msra.mxu0 0.0
    %2531 = vmatprep.mubr.f32.mxu0 0.0
    %2532 = vmatmul.mubr.f32.gmra.mrb[0].mxu0 %v187
    %v2533 = vpop.f32.mrb[0].mxu0
    %v2534 = vadd.f32 %v2450, %v2533
    %v2535 = vpop.f32.mrb[0].mxu0
    %2536 = vmatprep.mubr.f32.mxu0 0.0
    %2537 = vmatmul.mubr.f32.gmra.mrb[0].mxu0 %v190
    %v2538 = vpop.f32.mrb[0].mxu0
    %v2539 = vadd.f32 %v2450, %v2538
    %v2540 = vpop.f32.mrb[0].mxu0
    %2541 = vmatprep.mubr.f32.mxu0 0.0
    %2542 = vmatmul.mubr.f32.gmra.mrb[0].mxu0 %v193
    %v2543 = vpop.f32.mrb[0].mxu0
    %v2544 = vadd.f32 %v2450, %v2543
    %v2545 = vpop.f32.mrb[0].mxu0
    %2546 = vmatprep.mubr.f32.mxu0 0.0
    %2547 = vmatmul.mubr.f32.gmra.mrb[0].mxu0 %v196
    %v2548 = vpop.f32.mrb[0].mxu0
    %v2549 = vadd.f32 %v2450, %v2548
    %v2550 = vpop.f32.mrb[0].mxu0
    %2551 = vmatprep.mubr.f32.mxu0 0.0
    %2552 = vmatmul.mubr.f32.gmra.mrb[0].mxu0 %v199
    %v2553 = vpop.f32.mrb[0].mxu0
    %v2554 = vadd.f32 %v2450, %v2553
    %v2555 = vpop.f32.mrb[0].mxu0
    %2556 = vmatprep.mubr.f32.mxu0 0.0
    %2557 = vmatmul.mubr.f32.gmra.mrb[0].mxu0 %v202
    %v2558 = vpop.f32.mrb[0].mxu0
    %v2559 = vadd.f32 %v2450, %v2558
    %v2560 = vpop.f32.mrb[0].mxu0
    %2561 = vdwg.mxu0
    %v2563 = vsel %vm299, %v2439, 0
    %v2566 = vsel %vm299, %v2534, 0
    %v2569 = vsel %vm299, %v2539, 0
    %v2572 = vsel %vm299, %v2544, 0
    %2574 = vmatprep.subr.mxu0 0.0
    %2575 = vmatpush1.xpose.msra.mxu0 %v2566
    %2576 = vmatprep.subr.mxu0 0.0
    %2577 = vmatpush1.xpose.msra.mxu0 %v2569
    %2578 = vmatprep.subr.mxu0 0.0
    %2579 = vmatpush1.xpose.msra.mxu0 %v2572
    %2580 = vmatprep.subr.mxu0 0.0
    %2581 = vmatpush1.xpose.msra.mxu0 0.0
    %2582 = vmatprep.subr.mxu0 0.0
    %2583 = vmatpush1.xpose.msra.mxu0 0.0
    %2584 = vmatprep.subr.mxu0 0.0
    %2585 = vmatpush1.xpose.msra.mxu0 0.0
    %2586 = vmatprep.subr.mxu0 0.0
    %2587 = vmatpush1.xpose.msra.mxu0 0.0
    %2588 = vmatprep.subr.mxu0 0.0
    %2589 = vmatpush1.xpose.msra.mxu0 0.0
    %2590 = vmatprep.subr.mxu0 0.0
    %2591 = vmatpush1.xpose.msra.mxu0 0.0
    %2592 = vmatprep.subr.mxu0 0.0
    %2593 = vmatpush1.xpose.msra.mxu0 0.0
    %2594 = vmatprep.subr.mxu0 0.0
    %2595 = vmatpush1.xpose.msra.mxu0 0.0
    %2596 = vmatprep.subr.mxu0 0.0
    %2597 = vmatpush1.xpose.msra.mxu0 0.0
    %2598 = vmatprep.subr.mxu0 0.0
    %2599 = vmatpush1.xpose.msra.mxu0 0.0
    %2600 = vmatprep.subr.mxu0 0.0
    %2601 = vmatpush1.xpose.msra.mxu0 0.0
    %2602 = vmatprep.subr.mxu0 0.0
    %2603 = vmatpush1.xpose.msra.mxu0 0.0
    %2604 = vmatprep.subr.mxu0 0.0
    %2605 = vmatpush1.xpose.msra.mxu0 0.0
    %2606 = vmatprep.subr.mxu0 0.0
    %2607 = vmatpush1.xpose.msra.mxu0 0.0
    %2608 = vmatprep.subr.mxu0 0.0
    %2609 = vmatpush1.xpose.msra.mxu0 0.0
    %2610 = vmatprep.subr.mxu0 0.0
    %2611 = vmatpush1.xpose.msra.mxu0 0.0
    %2612 = vmatprep.subr.mxu0 0.0
    %2613 = vmatpush1.xpose.msra.mxu0 0.0
    %2614 = vmatprep.subr.mxu0 0.0
    %2615 = vmatpush1.xpose.msra.mxu0 0.0
    %2616 = vmatprep.subr.mxu0 0.0
    %2617 = vmatpush1.xpose.msra.mxu0 0.0
    %2618 = vmatprep.subr.mxu0 0.0
    %2619 = vmatpush1.xpose.msra.mxu0 0.0
    %2620 = vmatprep.subr.mxu0 0.0
    %2621 = vmatpush1.xpose.msra.mxu0 0.0
    %2622 = vmatprep.subr.mxu0 0.0
    %2623 = vmatpush1.xpose.msra.mxu0 0.0
    %2624 = vmatprep.subr.mxu0 0.0
    %2625 = vmatpush1.xpose.msra.mxu0 0.0
    %2626 = vmatprep.subr.mxu0 0.0
    %2627 = vmatpush1.xpose.msra.mxu0 0.0
    %2628 = vmatprep.subr.mxu0 0.0
    %2629 = vmatpush1.xpose.msra.mxu0 0.0
    %2630 = vmatprep.subr.mxu0 0.0
    %2631 = vmatpush1.xpose.msra.mxu0 0.0
    %2632 = vmatprep.subr.mxu0 0.0
    %2633 = vmatpush1.xpose.msra.mxu0 0.0
    %2634 = vmatprep.subr.mxu0 0.0
    %2635 = vmatpush1.xpose.msra.mxu0 0.0
    %2636 = vmatprep.subr.mxu0 0.0
    %2637 = vmatpush1.xpose.msra.mxu0 0.0
    %2638 = vmatprep.mubr.f32.mxu0 0.0
    %2639 = vmatmul.mubr.f32.gmra.mrb[0].mxu0 %v2563
    %v2640 = vpop.f32.mrb[0].mxu0
    %v2641 = vadd.f32 %v63, %v2640
    %v2642 = vpop.f32.mrb[0].mxu0
    %2643 = vdwg.mxu0
    %v2645 = vsel %vm299, %v2444, 0
    %v2648 = vsel %vm299, %v2549, 0
    %v2651 = vsel %vm299, %v2554, 0
    %v2654 = vsel %vm299, %v2559, 0
    %2656 = vmatprep.subr.mxu0 0.0
    %2657 = vmatpush1.xpose.msra.mxu0 %v2648
    %2658 = vmatprep.subr.mxu0 0.0
    %2659 = vmatpush1.xpose.msra.mxu0 %v2651
    %2660 = vmatprep.subr.mxu0 0.0
    %2661 = vmatpush1.xpose.msra.mxu0 %v2654
    %2662 = vmatprep.subr.mxu0 0.0
    %2663 = vmatpush1.xpose.msra.mxu0 0.0
    %2664 = vmatprep.subr.mxu0 0.0
    %2665 = vmatpush1.xpose.msra.mxu0 0.0
    %2666 = vmatprep.subr.mxu0 0.0
    %2667 = vmatpush1.xpose.msra.mxu0 0.0
    %2668 = vmatprep.subr.mxu0 0.0
    %2669 = vmatpush1.xpose.msra.mxu0 0.0
    %2670 = vmatprep.subr.mxu0 0.0
    %2671 = vmatpush1.xpose.msra.mxu0 0.0
    %2672 = vmatprep.subr.mxu0 0.0
    %2673 = vmatpush1.xpose.msra.mxu0 0.0
    %2674 = vmatprep.subr.mxu0 0.0
    %2675 = vmatpush1.xpose.msra.mxu0 0.0
    %2676 = vmatprep.subr.mxu0 0.0
    %2677 = vmatpush1.xpose.msra.mxu0 0.0
    %2678 = vmatprep.subr.mxu0 0.0
    %2679 = vmatpush1.xpose.msra.mxu0 0.0
    %2680 = vmatprep.subr.mxu0 0.0
    %2681 = vmatpush1.xpose.msra.mxu0 0.0
    %2682 = vmatprep.subr.mxu0 0.0
    %2683 = vmatpush1.xpose.msra.mxu0 0.0
    %2684 = vmatprep.subr.mxu0 0.0
    %2685 = vmatpush1.xpose.msra.mxu0 0.0
    %2686 = vmatprep.subr.mxu0 0.0
    %2687 = vmatpush1.xpose.msra.mxu0 0.0
    %2688 = vmatprep.subr.mxu0 0.0
    %2689 = vmatpush1.xpose.msra.mxu0 0.0
    %2690 = vmatprep.subr.mxu0 0.0
    %2691 = vmatpush1.xpose.msra.mxu0 0.0
    %2692 = vmatprep.subr.mxu0 0.0
    %2693 = vmatpush1.xpose.msra.mxu0 0.0
    %2694 = vmatprep.subr.mxu0 0.0
    %2695 = vmatpush1.xpose.msra.mxu0 0.0
    %2696 = vmatprep.subr.mxu0 0.0
    %2697 = vmatpush1.xpose.msra.mxu0 0.0
    %2698 = vmatprep.subr.mxu0 0.0
    %2699 = vmatpush1.xpose.msra.mxu0 0.0
    %2700 = vmatprep.subr.mxu0 0.0
    %2701 = vmatpush1.xpose.msra.mxu0 0.0
    %2702 = vmatprep.subr.mxu0 0.0
    %2703 = vmatpush1.xpose.msra.mxu0 0.0
    %2704 = vmatprep.subr.mxu0 0.0
    %2705 = vmatpush1.xpose.msra.mxu0 0.0
    %2706 = vmatprep.subr.mxu0 0.0
    %2707 = vmatpush1.xpose.msra.mxu0 0.0
    %2708 = vmatprep.subr.mxu0 0.0
    %2709 = vmatpush1.xpose.msra.mxu0 0.0
    %2710 = vmatprep.subr.mxu0 0.0
    %2711 = vmatpush1.xpose.msra.mxu0 0.0
    %2712 = vmatprep.subr.mxu0 0.0
    %2713 = vmatpush1.xpose.msra.mxu0 0.0
    %2714 = vmatprep.subr.mxu0 0.0
    %2715 = vmatpush1.xpose.msra.mxu0 0.0
    %2716 = vmatprep.subr.mxu0 0.0
    %2717 = vmatpush1.xpose.msra.mxu0 0.0
    %2718 = vmatprep.subr.mxu0 0.0
    %2719 = vmatpush1.xpose.msra.mxu0 0.0
    %2720 = vmatprep.mubr.f32.mxu0 0.0
    %2721 = vmatmul.mubr.f32.gmra.mrb[0].mxu0 %v2645
    %v2722 = vpop.f32.mrb[0].mxu0
    %v2723 = vadd.f32 %v64, %v2722
    %v2724 = vpop.f32.mrb[0].mxu0
    %2725 = vdwg.mxu0
    %v2726 = vsel %vm464, %v2641, -inf
    %2727 = vmax.xlane.f32.xlu0 %v2726
    %v2728 = vpop.xlane.xlu0 %2727
    %v2729 = vsel %vm464, %v2723, -inf
    %2730 = vmax.xlane.f32.xlu0 %v2729
    %v2731 = vpop.xlane.xlu0 %2730
    %v2732 = vsub.f32 %v2641, %v2728
    %v2733 = vsub.f32 %v2723, %v2731
    %v2734 = vmul.f32 %v2732, 1.442695
    %v2735 = vpow.pop %v2734
    %v2736 = vmul.f32 %v2733, 1.442695
    %v2737 = vpow.pop %v2736
    %v2738 = vsel %vm464, %v2735, 0.0
    %2739 = vadd.xlane.f32.xlu0 %v2738
    %v2740 = vpop.xlane.xlu0 %2739
    %v2741 = vsel %vm464, %v2737, 0.0
    %2742 = vadd.xlane.f32.xlu0 %v2741
    %v2743 = vpop.xlane.xlu0 %2742
    %v2744 = vrcp.pop %v2740
    %v2745 = vrcp.pop %v2743
    %v2746 = vmul.f32 %v2735, %v2744
    %v2747 = vmul.f32 %v2737, %v2745
    %2748 = vrot.lane.b32.xlu0 %v2534, 96
    %v2749 = vpop.permute.xlu0 %2748
    %2750 = vrot.lane.b32.xlu0 %v2539, 96
    %v2751 = vpop.permute.xlu0 %2750
    %2752 = vrot.lane.b32.xlu0 %v2544, 96
    %v2753 = vpop.permute.xlu0 %2752
    %v2758 = vsel %vm464, %v2746, 0
    %2760 = vmatprep.subr.mxu0 0.0
    %2761 = vmatpush1.msra.mxu0 %v2749
    %2762 = vmatprep.subr.mxu0 0.0
    %2763 = vmatpush1.msra.mxu0 %v2751
    %2764 = vmatprep.subr.mxu0 0.0
    %2765 = vmatpush1.msra.mxu0 %v2753
    %2766 = vmatprep.subr.mxu0 0.0
    %2767 = vmatpush1.msra.mxu0 0.0
    %2768 = vmatprep.subr.mxu0 0.0
    %2769 = vmatpush1.msra.mxu0 0.0
    %2770 = vmatprep.subr.mxu0 0.0
    %2771 = vmatpush1.msra.mxu0 0.0
    %2772 = vmatprep.subr.mxu0 0.0
    %2773 = vmatpush1.msra.mxu0 0.0
    %2774 = vmatprep.subr.mxu0 0.0
    %2775 = vmatpush1.msra.mxu0 0.0
    %2776 = vmatprep.subr.mxu0 0.0
    %2777 = vmatpush1.msra.mxu0 0.0
    %2778 = vmatprep.subr.mxu0 0.0
    %2779 = vmatpush1.msra.mxu0 0.0
    %2780 = vmatprep.subr.mxu0 0.0
    %2781 = vmatpush1.msra.mxu0 0.0
    %2782 = vmatprep.subr.mxu0 0.0
    %2783 = vmatpush1.msra.mxu0 0.0
    %2784 = vmatprep.subr.mxu0 0.0
    %2785 = vmatpush1.msra.mxu0 0.0
    %2786 = vmatprep.subr.mxu0 0.0
    %2787 = vmatpush1.msra.mxu0 0.0
    %2788 = vmatprep.subr.mxu0 0.0
    %2789 = vmatpush1.msra.mxu0 0.0
    %2790 = vmatprep.subr.mxu0 0.0
    %2791 = vmatpush1.msra.mxu0 0.0
    %2792 = vmatprep.subr.mxu0 0.0
    %2793 = vmatpush1.msra.mxu0 0.0
    %2794 = vmatprep.subr.mxu0 0.0
    %2795 = vmatpush1.msra.mxu0 0.0
    %2796 = vmatprep.subr.mxu0 0.0
    %2797 = vmatpush1.msra.mxu0 0.0
    %2798 = vmatprep.subr.mxu0 0.0
    %2799 = vmatpush1.msra.mxu0 0.0
    %2800 = vmatprep.subr.mxu0 0.0
    %2801 = vmatpush1.msra.mxu0 0.0
    %2802 = vmatprep.subr.mxu0 0.0
    %2803 = vmatpush1.msra.mxu0 0.0
    %2804 = vmatprep.subr.mxu0 0.0
    %2805 = vmatpush1.msra.mxu0 0.0
    %2806 = vmatprep.subr.mxu0 0.0
    %2807 = vmatpush1.msra.mxu0 0.0
    %2808 = vmatprep.subr.mxu0 0.0
    %2809 = vmatpush1.msra.mxu0 0.0
    %2810 = vmatprep.subr.mxu0 0.0
    %2811 = vmatpush1.msra.mxu0 0.0
    %2812 = vmatprep.subr.mxu0 0.0
    %2813 = vmatpush1.msra.mxu0 0.0
    %2814 = vmatprep.subr.mxu0 0.0
    %2815 = vmatpush1.msra.mxu0 0.0
    %2816 = vmatprep.subr.mxu0 0.0
    %2817 = vmatpush1.msra.mxu0 0.0
    %2818 = vmatprep.subr.mxu0 0.0
    %2819 = vmatpush1.msra.mxu0 0.0
    %2820 = vmatprep.subr.mxu0 0.0
    %2821 = vmatpush1.msra.mxu0 0.0
    %2822 = vmatprep.subr.mxu0 0.0
    %2823 = vmatpush1.msra.mxu0 0.0
    %2824 = vmatprep.mubr.f32.mxu0 0.0
    %2825 = vmatmul.mubr.f32.gmra.mrb[0].mxu0 %v2758
    %v2826 = vpop.f32.mrb[0].mxu0
    %v2827 = vadd.f32 0.0, %v2826
    %v2828 = vpop.f32.mrb[0].mxu0
    %2829 = vdwg.mxu0
    %2830 = vrot.lane.b32.xlu0 %v2549, 96
    %v2831 = vpop.permute.xlu0 %2830
    %2832 = vrot.lane.b32.xlu0 %v2554, 96
    %v2833 = vpop.permute.xlu0 %2832
    %2834 = vrot.lane.b32.xlu0 %v2559, 96
    %v2835 = vpop.permute.xlu0 %2834
    %v2840 = vsel %vm464, %v2747, 0
    %2842 = vmatprep.subr.mxu0 0.0
    %2843 = vmatpush1.msra.mxu0 %v2831
    %2844 = vmatprep.subr.mxu0 0.0
    %2845 = vmatpush1.msra.mxu0 %v2833
    %2846 = vmatprep.subr.mxu0 0.0
    %2847 = vmatpush1.msra.mxu0 %v2835
    %2848 = vmatprep.subr.mxu0 0.0
    %2849 = vmatpush1.msra.mxu0 0.0
    %2850 = vmatprep.subr.mxu0 0.0
    %2851 = vmatpush1.msra.mxu0 0.0
    %2852 = vmatprep.subr.mxu0 0.0
    %2853 = vmatpush1.msra.mxu0 0.0
    %2854 = vmatprep.subr.mxu0 0.0
    %2855 = vmatpush1.msra.mxu0 0.0
    %2856 = vmatprep.subr.mxu0 0.0
    %2857 = vmatpush1.msra.mxu0 0.0
    %2858 = vmatprep.subr.mxu0 0.0
    %2859 = vmatpush1.msra.mxu0 0.0
    %2860 = vmatprep.subr.mxu0 0.0
    %2861 = vmatpush1.msra.mxu0 0.0
    %2862 = vmatprep.subr.mxu0 0.0
    %2863 = vmatpush1.msra.mxu0 0.0
    %2864 = vmatprep.subr.mxu0 0.0
    %2865 = vmatpush1.msra.mxu0 0.0
    %2866 = vmatprep.subr.mxu0 0.0
    %2867 = vmatpush1.msra.mxu0 0.0
    %2868 = vmatprep.subr.mxu0 0.0
    %2869 = vmatpush1.msra.mxu0 0.0
    %2870 = vmatprep.subr.mxu0 0.0
    %2871 = vmatpush1.msra.mxu0 0.0
    %2872 = vmatprep.subr.mxu0 0.0
    %2873 = vmatpush1.msra.mxu0 0.0
    %2874 = vmatprep.subr.mxu0 0.0
    %2875 = vmatpush1.msra.mxu0 0.0
    %2876 = vmatprep.subr.mxu0 0.0
    %2877 = vmatpush1.msra.mxu0 0.0
    %2878 = vmatprep.subr.mxu0 0.0
    %2879 = vmatpush1.msra.mxu0 0.0
    %2880 = vmatprep.subr.mxu0 0.0
    %2881 = vmatpush1.msra.mxu0 0.0
    %2882 = vmatprep.subr.mxu0 0.0
    %2883 = vmatpush1.msra.mxu0 0.0
    %2884 = vmatprep.subr.mxu0 0.0
    %2885 = vmatpush1.msra.mxu0 0.0
    %2886 = vmatprep.subr.mxu0 0.0
    %2887 = vmatpush1.msra.mxu0 0.0
    %2888 = vmatprep.subr.mxu0 0.0
    %2889 = vmatpush1.msra.mxu0 0.0
    %2890 = vmatprep.subr.mxu0 0.0
    %2891 = vmatpush1.msra.mxu0 0.0
    %2892 = vmatprep.subr.mxu0 0.0
    %2893 = vmatpush1.msra.mxu0 0.0
    %2894 = vmatprep.subr.mxu0 0.0
    %2895 = vmatpush1.msra.mxu0 0.0
    %2896 = vmatprep.subr.mxu0 0.0
    %2897 = vmatpush1.msra.mxu0 0.0
    %2898 = vmatprep.subr.mxu0 0.0
    %2899 = vmatpush1.msra.mxu0 0.0
    %2900 = vmatprep.subr.mxu0 0.0
    %2901 = vmatpush1.msra.mxu0 0.0
    %2902 = vmatprep.subr.mxu0 0.0
    %2903 = vmatpush1.msra.mxu0 0.0
    %2904 = vmatprep.subr.mxu0 0.0
    %2905 = vmatpush1.msra.mxu0 0.0
    %2906 = vmatprep.mubr.f32.mxu0 0.0
    %2907 = vmatmul.mubr.f32.gmra.mrb[0].mxu0 %v2840
    %v2908 = vpop.f32.mrb[0].mxu0
    %v2909 = vadd.f32 0.0, %v2908
    %v2910 = vpop.f32.mrb[0].mxu0
    %2911 = vdwg.mxu0
    %2912 = vrot.lane.b32.xlu0 %v2439, 120
    %v2913 = vpop.permute.xlu0 %2912
    %2914 = vrot.lane.b32.xlu0 %v2534, 120
    %v2915 = vpop.permute.xlu0 %2914
    %2916 = vrot.lane.b32.xlu0 %v2539, 120
    %v2917 = vpop.permute.xlu0 %2916
    %2918 = vrot.lane.b32.xlu0 %v2544, 120
    %v2919 = vpop.permute.xlu0 %2918
    %v2920 = vsel %vm299, %v2913, 0
    %v2922 = vsel %vm299, %v2915, 0
    %v2924 = vsel %vm299, %v2917, 0
    %v2926 = vsel %vm299, %v2919, 0
    %2928 = vmatprep.subr.mxu0 0.0
    %2929 = vmatpush1.xpose.msra.mxu0 %v2922
    %2930 = vmatprep.subr.mxu0 0.0
    %2931 = vmatpush1.xpose.msra.mxu0 %v2924
    %2932 = vmatprep.subr.mxu0 0.0
    %2933 = vmatpush1.xpose.msra.mxu0 %v2926
    %2934 = vmatprep.subr.mxu0 0.0
    %2935 = vmatpush1.xpose.msra.mxu0 0.0
    %2936 = vmatprep.subr.mxu0 0.0
    %2937 = vmatpush1.xpose.msra.mxu0 0.0
    %2938 = vmatprep.subr.mxu0 0.0
    %2939 = vmatpush1.xpose.msra.mxu0 0.0
    %2940 = vmatprep.subr.mxu0 0.0
    %2941 = vmatpush1.xpose.msra.mxu0 0.0
    %2942 = vmatprep.subr.mxu0 0.0
    %2943 = vmatpush1.xpose.msra.mxu0 0.0
    %2944 = vmatprep.subr.mxu0 0.0
    %2945 = vmatpush1.xpose.msra.mxu0 0.0
    %2946 = vmatprep.subr.mxu0 0.0
    %2947 = vmatpush1.xpose.msra.mxu0 0.0
    %2948 = vmatprep.subr.mxu0 0.0
    %2949 = vmatpush1.xpose.msra.mxu0 0.0
    %2950 = vmatprep.subr.mxu0 0.0
    %2951 = vmatpush1.xpose.msra.mxu0 0.0
    %2952 = vmatprep.subr.mxu0 0.0
    %2953 = vmatpush1.xpose.msra.mxu0 0.0
    %2954 = vmatprep.subr.mxu0 0.0
    %2955 = vmatpush1.xpose.msra.mxu0 0.0
    %2956 = vmatprep.subr.mxu0 0.0
    %2957 = vmatpush1.xpose.msra.mxu0 0.0
    %2958 = vmatprep.subr.mxu0 0.0
    %2959 = vmatpush1.xpose.msra.mxu0 0.0
    %2960 = vmatprep.subr.mxu0 0.0
    %2961 = vmatpush1.xpose.msra.mxu0 0.0
    %2962 = vmatprep.subr.mxu0 0.0
    %2963 = vmatpush1.xpose.msra.mxu0 0.0
    %2964 = vmatprep.subr.mxu0 0.0
    %2965 = vmatpush1.xpose.msra.mxu0 0.0
    %2966 = vmatprep.subr.mxu0 0.0
    %2967 = vmatpush1.xpose.msra.mxu0 0.0
    %2968 = vmatprep.subr.mxu0 0.0
    %2969 = vmatpush1.xpose.msra.mxu0 0.0
    %2970 = vmatprep.subr.mxu0 0.0
    %2971 = vmatpush1.xpose.msra.mxu0 0.0
    %2972 = vmatprep.subr.mxu0 0.0
    %2973 = vmatpush1.xpose.msra.mxu0 0.0
    %2974 = vmatprep.subr.mxu0 0.0
    %2975 = vmatpush1.xpose.msra.mxu0 0.0
    %2976 = vmatprep.subr.mxu0 0.0
    %2977 = vmatpush1.xpose.msra.mxu0 0.0
    %2978 = vmatprep.subr.mxu0 0.0
    %2979 = vmatpush1.xpose.msra.mxu0 0.0
    %2980 = vmatprep.subr.mxu0 0.0
    %2981 = vmatpush1.xpose.msra.mxu0 0.0
    %2982 = vmatprep.subr.mxu0 0.0
    %2983 = vmatpush1.xpose.msra.mxu0 0.0
    %2984 = vmatprep.subr.mxu0 0.0
    %2985 = vmatpush1.xpose.msra.mxu0 0.0
    %2986 = vmatprep.subr.mxu0 0.0
    %2987 = vmatpush1.xpose.msra.mxu0 0.0
    %2988 = vmatprep.subr.mxu0 0.0
    %2989 = vmatpush1.xpose.msra.mxu0 0.0
    %2990 = vmatprep.subr.mxu0 0.0
    %2991 = vmatpush1.xpose.msra.mxu0 0.0
    %2992 = vmatprep.mubr.f32.mxu0 0.0
    %2993 = vmatmul.mubr.f32.gmra.mrb[0].mxu0 %v2920
    %v2994 = vpop.f32.mrb[0].mxu0
    %v2995 = vadd.f32 %v63, %v2994
    %v2996 = vpop.f32.mrb[0].mxu0
    %2997 = vdwg.mxu0
    %2998 = vrot.lane.b32.xlu0 %v2444, 120
    %v2999 = vpop.permute.xlu0 %2998
    %3000 = vrot.lane.b32.xlu0 %v2549, 120
    %v3001 = vpop.permute.xlu0 %3000
    %3002 = vrot.lane.b32.xlu0 %v2554, 120
    %v3003 = vpop.permute.xlu0 %3002
    %3004 = vrot.lane.b32.xlu0 %v2559, 120
    %v3005 = vpop.permute.xlu0 %3004
    %v3006 = vsel %vm299, %v2999, 0
    %v3008 = vsel %vm299, %v3001, 0
    %v3010 = vsel %vm299, %v3003, 0
    %v3012 = vsel %vm299, %v3005, 0
    %3014 = vmatprep.subr.mxu0 0.0
    %3015 = vmatpush1.xpose.msra.mxu0 %v3008
    %3016 = vmatprep.subr.mxu0 0.0
    %3017 = vmatpush1.xpose.msra.mxu0 %v3010
    %3018 = vmatprep.subr.mxu0 0.0
    %3019 = vmatpush1.xpose.msra.mxu0 %v3012
    %3020 = vmatprep.subr.mxu0 0.0
    %3021 = vmatpush1.xpose.msra.mxu0 0.0
    %3022 = vmatprep.subr.mxu0 0.0
    %3023 = vmatpush1.xpose.msra.mxu0 0.0
    %3024 = vmatprep.subr.mxu0 0.0
    %3025 = vmatpush1.xpose.msra.mxu0 0.0
    %3026 = vmatprep.subr.mxu0 0.0
    %3027 = vmatpush1.xpose.msra.mxu0 0.0
    %3028 = vmatprep.subr.mxu0 0.0
    %3029 = vmatpush1.xpose.msra.mxu0 0.0
    %3030 = vmatprep.subr.mxu0 0.0
    %3031 = vmatpush1.xpose.msra.mxu0 0.0
    %3032 = vmatprep.subr.mxu0 0.0
    %3033 = vmatpush1.xpose.msra.mxu0 0.0
    %3034 = vmatprep.subr.mxu0 0.0
    %3035 = vmatpush1.xpose.msra.mxu0 0.0
    %3036 = vmatprep.subr.mxu0 0.0
    %3037 = vmatpush1.xpose.msra.mxu0 0.0
    %3038 = vmatprep.subr.mxu0 0.0
    %3039 = vmatpush1.xpose.msra.mxu0 0.0
    %3040 = vmatprep.subr.mxu0 0.0
    %3041 = vmatpush1.xpose.msra.mxu0 0.0
    %3042 = vmatprep.subr.mxu0 0.0
    %3043 = vmatpush1.xpose.msra.mxu0 0.0
    %3044 = vmatprep.subr.mxu0 0.0
    %3045 = vmatpush1.xpose.msra.mxu0 0.0
    %3046 = vmatprep.subr.mxu0 0.0
    %3047 = vmatpush1.xpose.msra.mxu0 0.0
    %3048 = vmatprep.subr.mxu0 0.0
    %3049 = vmatpush1.xpose.msra.mxu0 0.0
    %3050 = vmatprep.subr.mxu0 0.0
    %3051 = vmatpush1.xpose.msra.mxu0 0.0
    %3052 = vmatprep.subr.mxu0 0.0
    %3053 = vmatpush1.xpose.msra.mxu0 0.0
    %3054 = vmatprep.subr.mxu0 0.0
    %3055 = vmatpush1.xpose.msra.mxu0 0.0
    %3056 = vmatprep.subr.mxu0 0.0
    %3057 = vmatpush1.xpose.msra.mxu0 0.0
    %3058 = vmatprep.subr.mxu0 0.0
    %3059 = vmatpush1.xpose.msra.mxu0 0.0
    %3060 = vmatprep.subr.mxu0 0.0
    %3061 = vmatpush1.xpose.msra.mxu0 0.0
    %3062 = vmatprep.subr.mxu0 0.0
    %3063 = vmatpush1.xpose.msra.mxu0 0.0
    %3064 = vmatprep.subr.mxu0 0.0
    %3065 = vmatpush1.xpose.msra.mxu0 0.0
    %3066 = vmatprep.subr.mxu0 0.0
    %3067 = vmatpush1.xpose.msra.mxu0 0.0
    %3068 = vmatprep.subr.mxu0 0.0
    %3069 = vmatpush1.xpose.msra.mxu0 0.0
    %3070 = vmatprep.subr.mxu0 0.0
    %3071 = vmatpush1.xpose.msra.mxu0 0.0
    %3072 = vmatprep.subr.mxu0 0.0
    %3073 = vmatpush1.xpose.msra.mxu0 0.0
    %3074 = vmatprep.subr.mxu0 0.0
    %3075 = vmatpush1.xpose.msra.mxu0 0.0
    %3076 = vmatprep.subr.mxu0 0.0
    %3077 = vmatpush1.xpose.msra.mxu0 0.0
    %3078 = vmatprep.mubr.f32.mxu0 0.0
    %3079 = vmatmul.mubr.f32.gmra.mrb[0].mxu0 %v3006
    %v3080 = vpop.f32.mrb[0].mxu0
    %v3081 = vadd.f32 %v64, %v3080
    %v3082 = vpop.f32.mrb[0].mxu0
    %3083 = vdwg.mxu0
    %v3084 = vsel %vm464, %v2995, -inf
    %3085 = vmax.xlane.f32.xlu0 %v3084
    %v3086 = vpop.xlane.xlu0 %3085
    %v3087 = vsel %vm464, %v3081, -inf
    %3088 = vmax.xlane.f32.xlu0 %v3087
    %v3089 = vpop.xlane.xlu0 %3088
    %v3090 = vsub.f32 %v2995, %v3086
    %v3091 = vsub.f32 %v3081, %v3089
    %v3092 = vmul.f32 %v3090, 1.442695
    %v3093 = vpow.pop %v3092
    %v3094 = vmul.f32 %v3091, 1.442695
    %v3095 = vpow.pop %v3094
    %v3096 = vsel %vm464, %v3093, 0.0
    %3097 = vadd.xlane.f32.xlu0 %v3096
    %v3098 = vpop.xlane.xlu0 %3097
    %v3099 = vsel %vm464, %v3095, 0.0
    %3100 = vadd.xlane.f32.xlu0 %v3099
    %v3101 = vpop.xlane.xlu0 %3100
    %v3102 = vrcp.pop %v3098
    %v3103 = vrcp.pop %v3101
    %v3104 = vmul.f32 %v3093, %v3102
    %v3105 = vmul.f32 %v3095, %v3103
    %3106 = vrot.lane.b32.xlu0 %v2534, 88
    %v3107 = vpop.permute.xlu0 %3106
    %3108 = vrot.lane.b32.xlu0 %v2539, 88
    %v3109 = vpop.permute.xlu0 %3108
    %3110 = vrot.lane.b32.xlu0 %v2544, 88
    %v3111 = vpop.permute.xlu0 %3110
    %v3116 = vsel %vm464, %v3104, 0
    %3118 = vmatprep.subr.mxu0 0.0
    %3119 = vmatpush1.msra.mxu0 %v3107
    %3120 = vmatprep.subr.mxu0 0.0
    %3121 = vmatpush1.msra.mxu0 %v3109
    %3122 = vmatprep.subr.mxu0 0.0
    %3123 = vmatpush1.msra.mxu0 %v3111
    %3124 = vmatprep.subr.mxu0 0.0
    %3125 = vmatpush1.msra.mxu0 0.0
    %3126 = vmatprep.subr.mxu0 0.0
    %3127 = vmatpush1.msra.mxu0 0.0
    %3128 = vmatprep.subr.mxu0 0.0
    %3129 = vmatpush1.msra.mxu0 0.0
    %3130 = vmatprep.subr.mxu0 0.0
    %3131 = vmatpush1.msra.mxu0 0.0
    %3132 = vmatprep.subr.mxu0 0.0
    %3133 = vmatpush1.msra.mxu0 0.0
    %3134 = vmatprep.subr.mxu0 0.0
    %3135 = vmatpush1.msra.mxu0 0.0
    %3136 = vmatprep.subr.mxu0 0.0
    %3137 = vmatpush1.msra.mxu0 0.0
    %3138 = vmatprep.subr.mxu0 0.0
    %3139 = vmatpush1.msra.mxu0 0.0
    %3140 = vmatprep.subr.mxu0 0.0
    %3141 = vmatpush1.msra.mxu0 0.0
    %3142 = vmatprep.subr.mxu0 0.0
    %3143 = vmatpush1.msra.mxu0 0.0
    %3144 = vmatprep.subr.mxu0 0.0
    %3145 = vmatpush1.msra.mxu0 0.0
    %3146 = vmatprep.subr.mxu0 0.0
    %3147 = vmatpush1.msra.mxu0 0.0
    %3148 = vmatprep.subr.mxu0 0.0
    %3149 = vmatpush1.msra.mxu0 0.0
    %3150 = vmatprep.subr.mxu0 0.0
    %3151 = vmatpush1.msra.mxu0 0.0
    %3152 = vmatprep.subr.mxu0 0.0
    %3153 = vmatpush1.msra.mxu0 0.0
    %3154 = vmatprep.subr.mxu0 0.0
    %3155 = vmatpush1.msra.mxu0 0.0
    %3156 = vmatprep.subr.mxu0 0.0
    %3157 = vmatpush1.msra.mxu0 0.0
    %3158 = vmatprep.subr.mxu0 0.0
    %3159 = vmatpush1.msra.mxu0 0.0
    %3160 = vmatprep.subr.mxu0 0.0
    %3161 = vmatpush1.msra.mxu0 0.0
    %3162 = vmatprep.subr.mxu0 0.0
    %3163 = vmatpush1.msra.mxu0 0.0
    %3164 = vmatprep.subr.mxu0 0.0
    %3165 = vmatpush1.msra.mxu0 0.0
    %3166 = vmatprep.subr.mxu0 0.0
    %3167 = vmatpush1.msra.mxu0 0.0
    %3168 = vmatprep.subr.mxu0 0.0
    %3169 = vmatpush1.msra.mxu0 0.0
    %3170 = vmatprep.subr.mxu0 0.0
    %3171 = vmatpush1.msra.mxu0 0.0
    %3172 = vmatprep.subr.mxu0 0.0
    %3173 = vmatpush1.msra.mxu0 0.0
    %3174 = vmatprep.subr.mxu0 0.0
    %3175 = vmatpush1.msra.mxu0 0.0
    %3176 = vmatprep.subr.mxu0 0.0
    %3177 = vmatpush1.msra.mxu0 0.0
    %3178 = vmatprep.subr.mxu0 0.0
    %3179 = vmatpush1.msra.mxu0 0.0
    %3180 = vmatprep.subr.mxu0 0.0
    %3181 = vmatpush1.msra.mxu0 0.0
    %3182 = vmatprep.mubr.f32.mxu0 0.0
    %3183 = vmatmul.mubr.f32.gmra.mrb[0].mxu0 %v3116
    %v3184 = vpop.f32.mrb[0].mxu0
    %v3185 = vadd.f32 0.0, %v3184
    %v3186 = vpop.f32.mrb[0].mxu0
    %3187 = vdwg.mxu0
    %3188 = vrot.lane.b32.xlu0 %v2549, 88
    %v3189 = vpop.permute.xlu0 %3188
    %3190 = vrot.lane.b32.xlu0 %v2554, 88
    %v3191 = vpop.permute.xlu0 %3190
    %3192 = vrot.lane.b32.xlu0 %v2559, 88
    %v3193 = vpop.permute.xlu0 %3192
    %v3198 = vsel %vm464, %v3105, 0
    %3200 = vmatprep.subr.mxu0 0.0
    %3201 = vmatpush1.msra.mxu0 %v3189
    %3202 = vmatprep.subr.mxu0 0.0
    %3203 = vmatpush1.msra.mxu0 %v3191
    %3204 = vmatprep.subr.mxu0 0.0
    %3205 = vmatpush1.msra.mxu0 %v3193
    %3206 = vmatprep.subr.mxu0 0.0
    %3207 = vmatpush1.msra.mxu0 0.0
    %3208 = vmatprep.subr.mxu0 0.0
    %3209 = vmatpush1.msra.mxu0 0.0
    %3210 = vmatprep.subr.mxu0 0.0
    %3211 = vmatpush1.msra.mxu0 0.0
    %3212 = vmatprep.subr.mxu0 0.0
    %3213 = vmatpush1.msra.mxu0 0.0
    %3214 = vmatprep.subr.mxu0 0.0
    %3215 = vmatpush1.msra.mxu0 0.0
    %3216 = vmatprep.subr.mxu0 0.0
    %3217 = vmatpush1.msra.mxu0 0.0
    %3218 = vmatprep.subr.mxu0 0.0
    %3219 = vmatpush1.msra.mxu0 0.0
    %3220 = vmatprep.subr.mxu0 0.0
    %3221 = vmatpush1.msra.mxu0 0.0
    %3222 = vmatprep.subr.mxu0 0.0
    %3223 = vmatpush1.msra.mxu0 0.0
    %3224 = vmatprep.subr.mxu0 0.0
    %3225 = vmatpush1.msra.mxu0 0.0
    %3226 = vmatprep.subr.mxu0 0.0
    %3227 = vmatpush1.msra.mxu0 0.0
    %3228 = vmatprep.subr.mxu0 0.0
    %3229 = vmatpush1.msra.mxu0 0.0
    %3230 = vmatprep.subr.mxu0 0.0
    %3231 = vmatpush1.msra.mxu0 0.0
    %3232 = vmatprep.subr.mxu0 0.0
    %3233 = vmatpush1.msra.mxu0 0.0
    %3234 = vmatprep.subr.mxu0 0.0
    %3235 = vmatpush1.msra.mxu0 0.0
    %3236 = vmatprep.subr.mxu0 0.0
    %3237 = vmatpush1.msra.mxu0 0.0
    %3238 = vmatprep.subr.mxu0 0.0
    %3239 = vmatpush1.msra.mxu0 0.0
    %3240 = vmatprep.subr.mxu0 0.0
    %3241 = vmatpush1.msra.mxu0 0.0
    %3242 = vmatprep.subr.mxu0 0.0
    %3243 = vmatpush1.msra.mxu0 0.0
    %3244 = vmatprep.subr.mxu0 0.0
    %3245 = vmatpush1.msra.mxu0 0.0
    %3246 = vmatprep.subr.mxu0 0.0
    %3247 = vmatpush1.msra.mxu0 0.0
    %3248 = vmatprep.subr.mxu0 0.0
    %3249 = vmatpush1.msra.mxu0 0.0
    %3250 = vmatprep.subr.mxu0 0.0
    %3251 = vmatpush1.msra.mxu0 0.0
    %3252 = vmatprep.subr.mxu0 0.0
    %3253 = vmatpush1.msra.mxu0 0.0
    %3254 = vmatprep.subr.mxu0 0.0
    %3255 = vmatpush1.msra.mxu0 0.0
    %3256 = vmatprep.subr.mxu0 0.0
    %3257 = vmatpush1.msra.mxu0 0.0
    %3258 = vmatprep.subr.mxu0 0.0
    %3259 = vmatpush1.msra.mxu0 0.0
    %3260 = vmatprep.subr.mxu0 0.0
    %3261 = vmatpush1.msra.mxu0 0.0
    %3262 = vmatprep.subr.mxu0 0.0
    %3263 = vmatpush1.msra.mxu0 0.0
    %3264 = vmatprep.mubr.f32.mxu0 0.0
    %3265 = vmatmul.mubr.f32.gmra.mrb[0].mxu0 %v3198
    %v3266 = vpop.f32.mrb[0].mxu0
    %v3267 = vadd.f32 0.0, %v3266
    %v3268 = vpop.f32.mrb[0].mxu0
    %3269 = vdwg.mxu0
    %3270 = vrot.lane.b32.xlu0 %v2344, 32
    %v3271 = vpop.permute.xlu0 %3270
    %v3274 = vsel %vm299, %v3185, 0
    %v3277 = vsel %vm299, %v3267, 0
    %3279 = vmatprep.subr.mxu0 0.0
    %3280 = vmatpush1.msra.mxu0 %v3271
    %3281 = vmatprep.subr.mxu0 0.0
    %3282 = vmatpush1.msra.mxu0 0.0
    %3283 = vmatprep.subr.mxu0 0.0
    %3284 = vmatpush1.msra.mxu0 0.0
    %3285 = vmatprep.subr.mxu0 0.0
    %3286 = vmatpush1.msra.mxu0 0.0
    %3287 = vmatprep.subr.mxu0 0.0
    %3288 = vmatpush1.msra.mxu0 0.0
    %3289 = vmatprep.subr.mxu0 0.0
    %3290 = vmatpush1.msra.mxu0 0.0
    %3291 = vmatprep.subr.mxu0 0.0
    %3292 = vmatpush1.msra.mxu0 0.0
    %3293 = vmatprep.subr.mxu0 0.0
    %3294 = vmatpush1.msra.mxu0 0.0
    %3295 = vmatprep.subr.mxu0 0.0
    %3296 = vmatpush1.msra.mxu0 0.0
    %3297 = vmatprep.subr.mxu0 0.0
    %3298 = vmatpush1.msra.mxu0 0.0
    %3299 = vmatprep.subr.mxu0 0.0
    %3300 = vmatpush1.msra.mxu0 0.0
    %3301 = vmatprep.subr.mxu0 0.0
    %3302 = vmatpush1.msra.mxu0 0.0
    %3303 = vmatprep.subr.mxu0 0.0
    %3304 = vmatpush1.msra.mxu0 0.0
    %3305 = vmatprep.subr.mxu0 0.0
    %3306 = vmatpush1.msra.mxu0 0.0
    %3307 = vmatprep.subr.mxu0 0.0
    %3308 = vmatpush1.msra.mxu0 0.0
    %3309 = vmatprep.subr.mxu0 0.0
    %3310 = vmatpush1.msra.mxu0 0.0
    %3311 = vmatprep.subr.mxu0 0.0
    %3312 = vmatpush1.msra.mxu0 0.0
    %3313 = vmatprep.subr.mxu0 0.0
    %3314 = vmatpush1.msra.mxu0 0.0
    %3315 = vmatprep.subr.mxu0 0.0
    %3316 = vmatpush1.msra.mxu0 0.0
    %3317 = vmatprep.subr.mxu0 0.0
    %3318 = vmatpush1.msra.mxu0 0.0
    %3319 = vmatprep.subr.mxu0 0.0
    %3320 = vmatpush1.msra.mxu0 0.0
    %3321 = vmatprep.subr.mxu0 0.0
    %3322 = vmatpush1.msra.mxu0 0.0
    %3323 = vmatprep.subr.mxu0 0.0
    %3324 = vmatpush1.msra.mxu0 0.0
    %3325 = vmatprep.subr.mxu0 0.0
    %3326 = vmatpush1.msra.mxu0 0.0
    %3327 = vmatprep.subr.mxu0 0.0
    %3328 = vmatpush1.msra.mxu0 0.0
    %3329 = vmatprep.subr.mxu0 0.0
    %3330 = vmatpush1.msra.mxu0 0.0
    %3331 = vmatprep.subr.mxu0 0.0
    %3332 = vmatpush1.msra.mxu0 0.0
    %3333 = vmatprep.subr.mxu0 0.0
    %3334 = vmatpush1.msra.mxu0 0.0
    %3335 = vmatprep.subr.mxu0 0.0
    %3336 = vmatpush1.msra.mxu0 0.0
    %3337 = vmatprep.subr.mxu0 0.0
    %3338 = vmatpush1.msra.mxu0 0.0
    %3339 = vmatprep.subr.mxu0 0.0
    %3340 = vmatpush1.msra.mxu0 0.0
    %3341 = vmatprep.subr.mxu0 0.0
    %3342 = vmatpush1.msra.mxu0 0.0
    %3343 = vmatprep.mubr.f32.mxu0 0.0
    %3344 = vmatmul.mubr.f32.gmra.mrb[0].mxu0 %v3274
    %v3345 = vpop.f32.mrb[0].mxu0
    %v3346 = vadd.f32 0.0, %v3345
    %v3347 = vpop.f32.mrb[0].mxu0
    %3348 = vmatprep.mubr.f32.mxu0 0.0
    %3349 = vmatmul.mubr.f32.gmra.mrb[0].mxu0 %v3277
    %v3350 = vpop.f32.mrb[0].mxu0
    %v3351 = vadd.f32 0.0, %v3350
    %v3352 = vpop.f32.mrb[0].mxu0
    %3353 = vdwg.mxu0
    %3354 = vrot.lane.b32.xlu0 %v2342, 32
    %v3355 = vpop.permute.xlu0 %3354
    %v3358 = vsel %vm299, %v2827, 0
    %v3361 = vsel %vm299, %v2909, 0
    %3363 = vmatprep.subr.mxu0 0.0
    %3364 = vmatpush1.msra.mxu0 %v3355
    %3365 = vmatprep.subr.mxu0 0.0
    %3366 = vmatpush1.msra.mxu0 0.0
    %3367 = vmatprep.subr.mxu0 0.0
    %3368 = vmatpush1.msra.mxu0 0.0
    %3369 = vmatprep.subr.mxu0 0.0
    %3370 = vmatpush1.msra.mxu0 0.0
    %3371 = vmatprep.subr.mxu0 0.0
    %3372 = vmatpush1.msra.mxu0 0.0
    %3373 = vmatprep.subr.mxu0 0.0
    %3374 = vmatpush1.msra.mxu0 0.0
    %3375 = vmatprep.subr.mxu0 0.0
    %3376 = vmatpush1.msra.mxu0 0.0
    %3377 = vmatprep.subr.mxu0 0.0
    %3378 = vmatpush1.msra.mxu0 0.0
    %3379 = vmatprep.subr.mxu0 0.0
    %3380 = vmatpush1.msra.mxu0 0.0
    %3381 = vmatprep.subr.mxu0 0.0
    %3382 = vmatpush1.msra.mxu0 0.0
    %3383 = vmatprep.subr.mxu0 0.0
    %3384 = vmatpush1.msra.mxu0 0.0
    %3385 = vmatprep.subr.mxu0 0.0
    %3386 = vmatpush1.msra.mxu0 0.0
    %3387 = vmatprep.subr.mxu0 0.0
    %3388 = vmatpush1.msra.mxu0 0.0
    %3389 = vmatprep.subr.mxu0 0.0
    %3390 = vmatpush1.msra.mxu0 0.0
    %3391 = vmatprep.subr.mxu0 0.0
    %3392 = vmatpush1.msra.mxu0 0.0
    %3393 = vmatprep.subr.mxu0 0.0
    %3394 = vmatpush1.msra.mxu0 0.0
    %3395 = vmatprep.subr.mxu0 0.0
    %3396 = vmatpush1.msra.mxu0 0.0
    %3397 = vmatprep.subr.mxu0 0.0
    %3398 = vmatpush1.msra.mxu0 0.0
    %3399 = vmatprep.subr.mxu0 0.0
    %3400 = vmatpush1.msra.mxu0 0.0
    %3401 = vmatprep.subr.mxu0 0.0
    %3402 = vmatpush1.msra.mxu0 0.0
    %3403 = vmatprep.subr.mxu0 0.0
    %3404 = vmatpush1.msra.mxu0 0.0
    %3405 = vmatprep.subr.mxu0 0.0
    %3406 = vmatpush1.msra.mxu0 0.0
    %3407 = vmatprep.subr.mxu0 0.0
    %3408 = vmatpush1.msra.mxu0 0.0
    %3409 = vmatprep.subr.mxu0 0.0
    %3410 = vmatpush1.msra.mxu0 0.0
    %3411 = vmatprep.subr.mxu0 0.0
    %3412 = vmatpush1.msra.mxu0 0.0
    %3413 = vmatprep.subr.mxu0 0.0
    %3414 = vmatpush1.msra.mxu0 0.0
    %3415 = vmatprep.subr.mxu0 0.0
    %3416 = vmatpush1.msra.mxu0 0.0
    %3417 = vmatprep.subr.mxu0 0.0
    %3418 = vmatpush1.msra.mxu0 0.0
    %3419 = vmatprep.subr.mxu0 0.0
    %3420 = vmatpush1.msra.mxu0 0.0
    %3421 = vmatprep.subr.mxu0 0.0
    %3422 = vmatpush1.msra.mxu0 0.0
    %3423 = vmatprep.subr.mxu0 0.0
    %3424 = vmatpush1.msra.mxu0 0.0
    %3425 = vmatprep.subr.mxu0 0.0
    %3426 = vmatpush1.msra.mxu0 0.0
    %3427 = vmatprep.mubr.f32.mxu0 0.0
    %3428 = vmatmul.mubr.f32.gmra.mrb[0].mxu0 %v3358
    %v3429 = vpop.f32.mrb[0].mxu0
    %v3430 = vadd.f32 %v3346, %v3429
    %v3431 = vpop.f32.mrb[0].mxu0
    %3432 = vmatprep.mubr.f32.mxu0 0.0
    %3433 = vmatmul.mubr.f32.gmra.mrb[0].mxu0 %v3361
    %v3434 = vpop.f32.mrb[0].mxu0
    %v3435 = vadd.f32 %v3351, %v3434
    %v3436 = vpop.f32.mrb[0].mxu0
    %3437 = vdwg.mxu0
    %3438 = vrot.lane.b32.xlu0 %v2439, 112
    %v3439 = vpop.permute.xlu0 %3438
    %3440 = vrot.lane.b32.xlu0 %v2534, 112
    %v3441 = vpop.permute.xlu0 %3440
    %3442 = vrot.lane.b32.xlu0 %v2539, 112
    %v3443 = vpop.permute.xlu0 %3442
    %3444 = vrot.lane.b32.xlu0 %v2544, 112
    %v3445 = vpop.permute.xlu0 %3444
    %v3446 = vsel %vm299, %v3439, 0
    %v3448 = vsel %vm299, %v3441, 0
    %v3450 = vsel %vm299, %v3443, 0
    %v3452 = vsel %vm299, %v3445, 0
    %3454 = vmatprep.subr.mxu0 0.0
    %3455 = vmatpush1.xpose.msra.mxu0 %v3448
    %3456 = vmatprep.subr.mxu0 0.0
    %3457 = vmatpush1.xpose.msra.mxu0 %v3450
    %3458 = vmatprep.subr.mxu0 0.0
    %3459 = vmatpush1.xpose.msra.mxu0 %v3452
    %3460 = vmatprep.subr.mxu0 0.0
    %3461 = vmatpush1.xpose.msra.mxu0 0.0
    %3462 = vmatprep.subr.mxu0 0.0
    %3463 = vmatpush1.xpose.msra.mxu0 0.0
    %3464 = vmatprep.subr.mxu0 0.0
    %3465 = vmatpush1.xpose.msra.mxu0 0.0
    %3466 = vmatprep.subr.mxu0 0.0
    %3467 = vmatpush1.xpose.msra.mxu0 0.0
    %3468 = vmatprep.subr.mxu0 0.0
    %3469 = vmatpush1.xpose.msra.mxu0 0.0
    %3470 = vmatprep.subr.mxu0 0.0
    %3471 = vmatpush1.xpose.msra.mxu0 0.0
    %3472 = vmatprep.subr.mxu0 0.0
    %3473 = vmatpush1.xpose.msra.mxu0 0.0
    %3474 = vmatprep.subr.mxu0 0.0
    %3475 = vmatpush1.xpose.msra.mxu0 0.0
    %3476 = vmatprep.subr.mxu0 0.0
    %3477 = vmatpush1.xpose.msra.mxu0 0.0
    %3478 = vmatprep.subr.mxu0 0.0
    %3479 = vmatpush1.xpose.msra.mxu0 0.0
    %3480 = vmatprep.subr.mxu0 0.0
    %3481 = vmatpush1.xpose.msra.mxu0 0.0
    %3482 = vmatprep.subr.mxu0 0.0
    %3483 = vmatpush1.xpose.msra.mxu0 0.0
    %3484 = vmatprep.subr.mxu0 0.0
    %3485 = vmatpush1.xpose.msra.mxu0 0.0
    %3486 = vmatprep.subr.mxu0 0.0
    %3487 = vmatpush1.xpose.msra.mxu0 0.0
    %3488 = vmatprep.subr.mxu0 0.0
    %3489 = vmatpush1.xpose.msra.mxu0 0.0
    %3490 = vmatprep.subr.mxu0 0.0
    %3491 = vmatpush1.xpose.msra.mxu0 0.0
    %3492 = vmatprep.subr.mxu0 0.0
    %3493 = vmatpush1.xpose.msra.mxu0 0.0
    %3494 = vmatprep.subr.mxu0 0.0
    %3495 = vmatpush1.xpose.msra.mxu0 0.0
    %3496 = vmatprep.subr.mxu0 0.0
    %3497 = vmatpush1.xpose.msra.mxu0 0.0
    %3498 = vmatprep.subr.mxu0 0.0
    %3499 = vmatpush1.xpose.msra.mxu0 0.0
    %3500 = vmatprep.subr.mxu0 0.0
    %3501 = vmatpush1.xpose.msra.mxu0 0.0
    %3502 = vmatprep.subr.mxu0 0.0
    %3503 = vmatpush1.xpose.msra.mxu0 0.0
    %3504 = vmatprep.subr.mxu0 0.0
    %3505 = vmatpush1.xpose.msra.mxu0 0.0
    %3506 = vmatprep.subr.mxu0 0.0
    %3507 = vmatpush1.xpose.msra.mxu0 0.0
    %3508 = vmatprep.subr.mxu0 0.0
    %3509 = vmatpush1.xpose.msra.mxu0 0.0
    %3510 = vmatprep.subr.mxu0 0.0
    %3511 = vmatpush1.xpose.msra.mxu0 0.0
    %3512 = vmatprep.subr.mxu0 0.0
    %3513 = vmatpush1.xpose.msra.mxu0 0.0
    %3514 = vmatprep.subr.mxu0 0.0
    %3515 = vmatpush1.xpose.msra.mxu0 0.0
    %3516 = vmatprep.subr.mxu0 0.0
    %3517 = vmatpush1.xpose.msra.mxu0 0.0
    %3518 = vmatprep.mubr.f32.mxu0 0.0
    %3519 = vmatmul.mubr.f32.gmra.mrb[0].mxu0 %v3446
    %v3520 = vpop.f32.mrb[0].mxu0
    %v3521 = vadd.f32 %v63, %v3520
    %v3522 = vpop.f32.mrb[0].mxu0
    %3523 = vdwg.mxu0
    %3524 = vrot.lane.b32.xlu0 %v2444, 112
    %v3525 = vpop.permute.xlu0 %3524
    %3526 = vrot.lane.b32.xlu0 %v2549, 112
    %v3527 = vpop.permute.xlu0 %3526
    %3528 = vrot.lane.b32.xlu0 %v2554, 112
    %v3529 = vpop.permute.xlu0 %3528
    %3530 = vrot.lane.b32.xlu0 %v2559, 112
    %v3531 = vpop.permute.xlu0 %3530
    %v3532 = vsel %vm299, %v3525, 0
    %v3534 = vsel %vm299, %v3527, 0
    %v3536 = vsel %vm299, %v3529, 0
    %v3538 = vsel %vm299, %v3531, 0
    %3540 = vmatprep.subr.mxu0 0.0
    %3541 = vmatpush1.xpose.msra.mxu0 %v3534
    %3542 = vmatprep.subr.mxu0 0.0
    %3543 = vmatpush1.xpose.msra.mxu0 %v3536
    %3544 = vmatprep.subr.mxu0 0.0
    %3545 = vmatpush1.xpose.msra.mxu0 %v3538
    %3546 = vmatprep.subr.mxu0 0.0
    %3547 = vmatpush1.xpose.msra.mxu0 0.0
    %3548 = vmatprep.subr.mxu0 0.0
    %3549 = vmatpush1.xpose.msra.mxu0 0.0
    %3550 = vmatprep.subr.mxu0 0.0
    %3551 = vmatpush1.xpose.msra.mxu0 0.0
    %3552 = vmatprep.subr.mxu0 0.0
    %3553 = vmatpush1.xpose.msra.mxu0 0.0
    %3554 = vmatprep.subr.mxu0 0.0
    %3555 = vmatpush1.xpose.msra.mxu0 0.0
    %3556 = vmatprep.subr.mxu0 0.0
    %3557 = vmatpush1.xpose.msra.mxu0 0.0
    %3558 = vmatprep.subr.mxu0 0.0
    %3559 = vmatpush1.xpose.msra.mxu0 0.0
    %3560 = vmatprep.subr.mxu0 0.0
    %3561 = vmatpush1.xpose.msra.mxu0 0.0
    %3562 = vmatprep.subr.mxu0 0.0
    %3563 = vmatpush1.xpose.msra.mxu0 0.0
    %3564 = vmatprep.subr.mxu0 0.0
    %3565 = vmatpush1.xpose.msra.mxu0 0.0
    %3566 = vmatprep.subr.mxu0 0.0
    %3567 = vmatpush1.xpose.msra.mxu0 0.0
    %3568 = vmatprep.subr.mxu0 0.0
    %3569 = vmatpush1.xpose.msra.mxu0 0.0
    %3570 = vmatprep.subr.mxu0 0.0
    %3571 = vmatpush1.xpose.msra.mxu0 0.0
    %3572 = vmatprep.subr.mxu0 0.0
    %3573 = vmatpush1.xpose.msra.mxu0 0.0
    %3574 = vmatprep.subr.mxu0 0.0
    %3575 = vmatpush1.xpose.msra.mxu0 0.0
    %3576 = vmatprep.subr.mxu0 0.0
    %3577 = vmatpush1.xpose.msra.mxu0 0.0
    %3578 = vmatprep.subr.mxu0 0.0
    %3579 = vmatpush1.xpose.msra.mxu0 0.0
    %3580 = vmatprep.subr.mxu0 0.0
    %3581 = vmatpush1.xpose.msra.mxu0 0.0
    %3582 = vmatprep.subr.mxu0 0.0
    %3583 = vmatpush1.xpose.msra.mxu0 0.0
    %3584 = vmatprep.subr.mxu0 0.0
    %3585 = vmatpush1.xpose.msra.mxu0 0.0
    %3586 = vmatprep.subr.mxu0 0.0
    %3587 = vmatpush1.xpose.msra.mxu0 0.0
    %3588 = vmatprep.subr.mxu0 0.0
    %3589 = vmatpush1.xpose.msra.mxu0 0.0
    %3590 = vmatprep.subr.mxu0 0.0
    %3591 = vmatpush1.xpose.msra.mxu0 0.0
    %3592 = vmatprep.subr.mxu0 0.0
    %3593 = vmatpush1.xpose.msra.mxu0 0.0
    %3594 = vmatprep.subr.mxu0 0.0
    %3595 = vmatpush1.xpose.msra.mxu0 0.0
    %3596 = vmatprep.subr.mxu0 0.0
    %3597 = vmatpush1.xpose.msra.mxu0 0.0
    %3598 = vmatprep.subr.mxu0 0.0
    %3599 = vmatpush1.xpose.msra.mxu0 0.0
    %3600 = vmatprep.subr.mxu0 0.0
    %3601 = vmatpush1.xpose.msra.mxu0 0.0
    %3602 = vmatprep.subr.mxu0 0.0
    %3603 = vmatpush1.xpose.msra.mxu0 0.0
    %3604 = vmatprep.mubr.f32.mxu0 0.0
    %3605 = vmatmul.mubr.f32.gmra.mrb[0].mxu0 %v3532
    %v3606 = vpop.f32.mrb[0].mxu0
    %v3607 = vadd.f32 %v64, %v3606
    %v3608 = vpop.f32.mrb[0].mxu0
    %3609 = vdwg.mxu0
    %v3610 = vsel %vm464, %v3521, -inf
    %3611 = vmax.xlane.f32.xlu0 %v3610
    %v3612 = vpop.xlane.xlu0 %3611
    %v3613 = vsel %vm464, %v3607, -inf
    %3614 = vmax.xlane.f32.xlu0 %v3613
    %v3615 = vpop.xlane.xlu0 %3614
    %v3616 = vsub.f32 %v3521, %v3612
    %v3617 = vsub.f32 %v3607, %v3615
    %v3618 = vmul.f32 %v3616, 1.442695
    %v3619 = vpow.pop %v3618
    %v3620 = vmul.f32 %v3617, 1.442695
    %v3621 = vpow.pop %v3620
    %v3622 = vsel %vm464, %v3619, 0.0
    %3623 = vadd.xlane.f32.xlu0 %v3622
    %v3624 = vpop.xlane.xlu0 %3623
    %v3625 = vsel %vm464, %v3621, 0.0
    %3626 = vadd.xlane.f32.xlu0 %v3625
    %v3627 = vpop.xlane.xlu0 %3626
    %v3628 = vrcp.pop %v3624
    %v3629 = vrcp.pop %v3627
    %v3630 = vmul.f32 %v3619, %v3628
    %v3631 = vmul.f32 %v3621, %v3629
    %3632 = vrot.lane.b32.xlu0 %v2534, 80
    %v3633 = vpop.permute.xlu0 %3632
    %3634 = vrot.lane.b32.xlu0 %v2539, 80
    %v3635 = vpop.permute.xlu0 %3634
    %3636 = vrot.lane.b32.xlu0 %v2544, 80
    %v3637 = vpop.permute.xlu0 %3636
    %v3642 = vsel %vm464, %v3630, 0
    %3644 = vmatprep.subr.mxu0 0.0
    %3645 = vmatpush1.msra.mxu0 %v3633
    %3646 = vmatprep.subr.mxu0 0.0
    %3647 = vmatpush1.msra.mxu0 %v3635
    %3648 = vmatprep.subr.mxu0 0.0
    %3649 = vmatpush1.msra.mxu0 %v3637
    %3650 = vmatprep.subr.mxu0 0.0
    %3651 = vmatpush1.msra.mxu0 0.0
    %3652 = vmatprep.subr.mxu0 0.0
    %3653 = vmatpush1.msra.mxu0 0.0
    %3654 = vmatprep.subr.mxu0 0.0
    %3655 = vmatpush1.msra.mxu0 0.0
    %3656 = vmatprep.subr.mxu0 0.0
    %3657 = vmatpush1.msra.mxu0 0.0
    %3658 = vmatprep.subr.mxu0 0.0
    %3659 = vmatpush1.msra.mxu0 0.0
    %3660 = vmatprep.subr.mxu0 0.0
    %3661 = vmatpush1.msra.mxu0 0.0
    %3662 = vmatprep.subr.mxu0 0.0
    %3663 = vmatpush1.msra.mxu0 0.0
    %3664 = vmatprep.subr.mxu0 0.0
    %3665 = vmatpush1.msra.mxu0 0.0
    %3666 = vmatprep.subr.mxu0 0.0
    %3667 = vmatpush1.msra.mxu0 0.0
    %3668 = vmatprep.subr.mxu0 0.0
    %3669 = vmatpush1.msra.mxu0 0.0
    %3670 = vmatprep.subr.mxu0 0.0
    %3671 = vmatpush1.msra.mxu0 0.0
    %3672 = vmatprep.subr.mxu0 0.0
    %3673 = vmatpush1.msra.mxu0 0.0
    %3674 = vmatprep.subr.mxu0 0.0
    %3675 = vmatpush1.msra.mxu0 0.0
    %3676 = vmatprep.subr.mxu0 0.0
    %3677 = vmatpush1.msra.mxu0 0.0
    %3678 = vmatprep.subr.mxu0 0.0
    %3679 = vmatpush1.msra.mxu0 0.0
    %3680 = vmatprep.subr.mxu0 0.0
    %3681 = vmatpush1.msra.mxu0 0.0
    %3682 = vmatprep.subr.mxu0 0.0
    %3683 = vmatpush1.msra.mxu0 0.0
    %3684 = vmatprep.subr.mxu0 0.0
    %3685 = vmatpush1.msra.mxu0 0.0
    %3686 = vmatprep.subr.mxu0 0.0
    %3687 = vmatpush1.msra.mxu0 0.0
    %3688 = vmatprep.subr.mxu0 0.0
    %3689 = vmatpush1.msra.mxu0 0.0
    %3690 = vmatprep.subr.mxu0 0.0
    %3691 = vmatpush1.msra.mxu0 0.0
    %3692 = vmatprep.subr.mxu0 0.0
    %3693 = vmatpush1.msra.mxu0 0.0
    %3694 = vmatprep.subr.mxu0 0.0
    %3695 = vmatpush1.msra.mxu0 0.0
    %3696 = vmatprep.subr.mxu0 0.0
    %3697 = vmatpush1.msra.mxu0 0.0
    %3698 = vmatprep.subr.mxu0 0.0
    %3699 = vmatpush1.msra.mxu0 0.0
    %3700 = vmatprep.subr.mxu0 0.0
    %3701 = vmatpush1.msra.mxu0 0.0
    %3702 = vmatprep.subr.mxu0 0.0
    %3703 = vmatpush1.msra.mxu0 0.0
    %3704 = vmatprep.subr.mxu0 0.0
    %3705 = vmatpush1.msra.mxu0 0.0
    %3706 = vmatprep.subr.mxu0 0.0
    %3707 = vmatpush1.msra.mxu0 0.0
    %3708 = vmatprep.mubr.f32.mxu0 0.0
    %3709 = vmatmul.mubr.f32.gmra.mrb[0].mxu0 %v3642
    %v3710 = vpop.f32.mrb[0].mxu0
    %v3711 = vadd.f32 0.0, %v3710
    %v3712 = vpop.f32.mrb[0].mxu0
    %3713 = vdwg.mxu0
    %3714 = vrot.lane.b32.xlu0 %v2549, 80
    %v3715 = vpop.permute.xlu0 %3714
    %3716 = vrot.lane.b32.xlu0 %v2554, 80
    %v3717 = vpop.permute.xlu0 %3716
    %3718 = vrot.lane.b32.xlu0 %v2559, 80
    %v3719 = vpop.permute.xlu0 %3718
    %v3724 = vsel %vm464, %v3631, 0
    %3726 = vmatprep.subr.mxu0 0.0
    %3727 = vmatpush1.msra.mxu0 %v3715
    %3728 = vmatprep.subr.mxu0 0.0
    %3729 = vmatpush1.msra.mxu0 %v3717
    %3730 = vmatprep.subr.mxu0 0.0
    %3731 = vmatpush1.msra.mxu0 %v3719
    %3732 = vmatprep.subr.mxu0 0.0
    %3733 = vmatpush1.msra.mxu0 0.0
    %3734 = vmatprep.subr.mxu0 0.0
    %3735 = vmatpush1.msra.mxu0 0.0
    %3736 = vmatprep.subr.mxu0 0.0
    %3737 = vmatpush1.msra.mxu0 0.0
    %3738 = vmatprep.subr.mxu0 0.0
    %3739 = vmatpush1.msra.mxu0 0.0
    %3740 = vmatprep.subr.mxu0 0.0
    %3741 = vmatpush1.msra.mxu0 0.0
    %3742 = vmatprep.subr.mxu0 0.0
    %3743 = vmatpush1.msra.mxu0 0.0
    %3744 = vmatprep.subr.mxu0 0.0
    %3745 = vmatpush1.msra.mxu0 0.0
    %3746 = vmatprep.subr.mxu0 0.0
    %3747 = vmatpush1.msra.mxu0 0.0
    %3748 = vmatprep.subr.mxu0 0.0
    %3749 = vmatpush1.msra.mxu0 0.0
    %3750 = vmatprep.subr.mxu0 0.0
    %3751 = vmatpush1.msra.mxu0 0.0
    %3752 = vmatprep.subr.mxu0 0.0
    %3753 = vmatpush1.msra.mxu0 0.0
    %3754 = vmatprep.subr.mxu0 0.0
    %3755 = vmatpush1.msra.mxu0 0.0
    %3756 = vmatprep.subr.mxu0 0.0
    %3757 = vmatpush1.msra.mxu0 0.0
    %3758 = vmatprep.subr.mxu0 0.0
    %3759 = vmatpush1.msra.mxu0 0.0
    %3760 = vmatprep.subr.mxu0 0.0
    %3761 = vmatpush1.msra.mxu0 0.0
    %3762 = vmatprep.subr.mxu0 0.0
    %3763 = vmatpush1.msra.mxu0 0.0
    %3764 = vmatprep.subr.mxu0 0.0
    %3765 = vmatpush1.msra.mxu0 0.0
    %3766 = vmatprep.subr.mxu0 0.0
    %3767 = vmatpush1.msra.mxu0 0.0
    %3768 = vmatprep.subr.mxu0 0.0
    %3769 = vmatpush1.msra.mxu0 0.0
    %3770 = vmatprep.subr.mxu0 0.0
    %3771 = vmatpush1.msra.mxu0 0.0
    %3772 = vmatprep.subr.mxu0 0.0
    %3773 = vmatpush1.msra.mxu0 0.0
    %3774 = vmatprep.subr.mxu0 0.0
    %3775 = vmatpush1.msra.mxu0 0.0
    %3776 = vmatprep.subr.mxu0 0.0
    %3777 = vmatpush1.msra.mxu0 0.0
    %3778 = vmatprep.subr.mxu0 0.0
    %3779 = vmatpush1.msra.mxu0 0.0
    %3780 = vmatprep.subr.mxu0 0.0
    %3781 = vmatpush1.msra.mxu0 0.0
    %3782 = vmatprep.subr.mxu0 0.0
    %3783 = vmatpush1.msra.mxu0 0.0
    %3784 = vmatprep.subr.mxu0 0.0
    %3785 = vmatpush1.msra.mxu0 0.0
    %3786 = vmatprep.subr.mxu0 0.0
    %3787 = vmatpush1.msra.mxu0 0.0
    %3788 = vmatprep.subr.mxu0 0.0
    %3789 = vmatpush1.msra.mxu0 0.0
    %3790 = vmatprep.mubr.f32.mxu0 0.0
    %3791 = vmatmul.mubr.f32.gmra.mrb[0].mxu0 %v3724
    %v3792 = vpop.f32.mrb[0].mxu0
    %v3793 = vadd.f32 0.0, %v3792
    %v3794 = vpop.f32.mrb[0].mxu0
    %3795 = vdwg.mxu0
    %3796 = vrot.lane.b32.xlu0 %v2346, 32
    %v3797 = vpop.permute.xlu0 %3796
    %v3800 = vsel %vm299, %v3711, 0
    %v3803 = vsel %vm299, %v3793, 0
    %3805 = vmatprep.subr.mxu0 0.0
    %3806 = vmatpush1.msra.mxu0 %v3797
    %3807 = vmatprep.subr.mxu0 0.0
    %3808 = vmatpush1.msra.mxu0 0.0
    %3809 = vmatprep.subr.mxu0 0.0
    %3810 = vmatpush1.msra.mxu0 0.0
    %3811 = vmatprep.subr.mxu0 0.0
    %3812 = vmatpush1.msra.mxu0 0.0
    %3813 = vmatprep.subr.mxu0 0.0
    %3814 = vmatpush1.msra.mxu0 0.0
    %3815 = vmatprep.subr.mxu0 0.0
    %3816 = vmatpush1.msra.mxu0 0.0
    %3817 = vmatprep.subr.mxu0 0.0
    %3818 = vmatpush1.msra.mxu0 0.0
    %3819 = vmatprep.subr.mxu0 0.0
    %3820 = vmatpush1.msra.mxu0 0.0
    %3821 = vmatprep.subr.mxu0 0.0
    %3822 = vmatpush1.msra.mxu0 0.0
    %3823 = vmatprep.subr.mxu0 0.0
    %3824 = vmatpush1.msra.mxu0 0.0
    %3825 = vmatprep.subr.mxu0 0.0
    %3826 = vmatpush1.msra.mxu0 0.0
    %3827 = vmatprep.subr.mxu0 0.0
    %3828 = vmatpush1.msra.mxu0 0.0
    %3829 = vmatprep.subr.mxu0 0.0
    %3830 = vmatpush1.msra.mxu0 0.0
    %3831 = vmatprep.subr.mxu0 0.0
    %3832 = vmatpush1.msra.mxu0 0.0
    %3833 = vmatprep.subr.mxu0 0.0
    %3834 = vmatpush1.msra.mxu0 0.0
    %3835 = vmatprep.subr.mxu0 0.0
    %3836 = vmatpush1.msra.mxu0 0.0
    %3837 = vmatprep.subr.mxu0 0.0
    %3838 = vmatpush1.msra.mxu0 0.0
    %3839 = vmatprep.subr.mxu0 0.0
    %3840 = vmatpush1.msra.mxu0 0.0
    %3841 = vmatprep.subr.mxu0 0.0
    %3842 = vmatpush1.msra.mxu0 0.0
    %3843 = vmatprep.subr.mxu0 0.0
    %3844 = vmatpush1.msra.mxu0 0.0
    %3845 = vmatprep.subr.mxu0 0.0
    %3846 = vmatpush1.msra.mxu0 0.0
    %3847 = vmatprep.subr.mxu0 0.0
    %3848 = vmatpush1.msra.mxu0 0.0
    %3849 = vmatprep.subr.mxu0 0.0
    %3850 = vmatpush1.msra.mxu0 0.0
    %3851 = vmatprep.subr.mxu0 0.0
    %3852 = vmatpush1.msra.mxu0 0.0
    %3853 = vmatprep.subr.mxu0 0.0
    %3854 = vmatpush1.msra.mxu0 0.0
    %3855 = vmatprep.subr.mxu0 0.0
    %3856 = vmatpush1.msra.mxu0 0.0
    %3857 = vmatprep.subr.mxu0 0.0
    %3858 = vmatpush1.msra.mxu0 0.0
    %3859 = vmatprep.subr.mxu0 0.0
    %3860 = vmatpush1.msra.mxu0 0.0
    %3861 = vmatprep.subr.mxu0 0.0
    %3862 = vmatpush1.msra.mxu0 0.0
    %3863 = vmatprep.subr.mxu0 0.0
    %3864 = vmatpush1.msra.mxu0 0.0
    %3865 = vmatprep.subr.mxu0 0.0
    %3866 = vmatpush1.msra.mxu0 0.0
    %3867 = vmatprep.subr.mxu0 0.0
    %3868 = vmatpush1.msra.mxu0 0.0
    %3869 = vmatprep.mubr.f32.mxu0 0.0
    %3870 = vmatmul.mubr.f32.gmra.mrb[0].mxu0 %v3800
    %v3871 = vpop.f32.mrb[0].mxu0
    %v3872 = vadd.f32 0.0, %v3871
    %v3873 = vpop.f32.mrb[0].mxu0
    %3874 = vmatprep.mubr.f32.mxu0 0.0
    %3875 = vmatmul.mubr.f32.gmra.mrb[0].mxu0 %v3803
    %v3876 = vpop.f32.mrb[0].mxu0
    %v3877 = vadd.f32 0.0, %v3876
    %v3878 = vpop.f32.mrb[0].mxu0
    %3879 = vdwg.mxu0
    %v3880 = vadd.f32 %v3430, %v3872
    %v3881 = vadd.f32 %v3435, %v3877
    %3882 = vrot.lane.b32.xlu0 %v2439, 104
    %v3883 = vpop.permute.xlu0 %3882
    %3884 = vrot.lane.b32.xlu0 %v2534, 104
    %v3885 = vpop.permute.xlu0 %3884
    %3886 = vrot.lane.b32.xlu0 %v2539, 104
    %v3887 = vpop.permute.xlu0 %3886
    %3888 = vrot.lane.b32.xlu0 %v2544, 104
    %v3889 = vpop.permute.xlu0 %3888
    %v3890 = vsel %vm299, %v3883, 0
    %v3892 = vsel %vm299, %v3885, 0
    %v3894 = vsel %vm299, %v3887, 0
    %v3896 = vsel %vm299, %v3889, 0
    %3898 = vmatprep.subr.mxu0 0.0
    %3899 = vmatpush1.xpose.msra.mxu0 %v3892
    %3900 = vmatprep.subr.mxu0 0.0
    %3901 = vmatpush1.xpose.msra.mxu0 %v3894
    %3902 = vmatprep.subr.mxu0 0.0
    %3903 = vmatpush1.xpose.msra.mxu0 %v3896
    %3904 = vmatprep.subr.mxu0 0.0
    %3905 = vmatpush1.xpose.msra.mxu0 0.0
    %3906 = vmatprep.subr.mxu0 0.0
    %3907 = vmatpush1.xpose.msra.mxu0 0.0
    %3908 = vmatprep.subr.mxu0 0.0
    %3909 = vmatpush1.xpose.msra.mxu0 0.0
    %3910 = vmatprep.subr.mxu0 0.0
    %3911 = vmatpush1.xpose.msra.mxu0 0.0
    %3912 = vmatprep.subr.mxu0 0.0
    %3913 = vmatpush1.xpose.msra.mxu0 0.0
    %3914 = vmatprep.subr.mxu0 0.0
    %3915 = vmatpush1.xpose.msra.mxu0 0.0
    %3916 = vmatprep.subr.mxu0 0.0
    %3917 = vmatpush1.xpose.msra.mxu0 0.0
    %3918 = vmatprep.subr.mxu0 0.0
    %3919 = vmatpush1.xpose.msra.mxu0 0.0
    %3920 = vmatprep.subr.mxu0 0.0
    %3921 = vmatpush1.xpose.msra.mxu0 0.0
    %3922 = vmatprep.subr.mxu0 0.0
    %3923 = vmatpush1.xpose.msra.mxu0 0.0
    %3924 = vmatprep.subr.mxu0 0.0
    %3925 = vmatpush1.xpose.msra.mxu0 0.0
    %3926 = vmatprep.subr.mxu0 0.0
    %3927 = vmatpush1.xpose.msra.mxu0 0.0
    %3928 = vmatprep.subr.mxu0 0.0
    %3929 = vmatpush1.xpose.msra.mxu0 0.0
    %3930 = vmatprep.subr.mxu0 0.0
    %3931 = vmatpush1.xpose.msra.mxu0 0.0
    %3932 = vmatprep.subr.mxu0 0.0
    %3933 = vmatpush1.xpose.msra.mxu0 0.0
    %3934 = vmatprep.subr.mxu0 0.0
    %3935 = vmatpush1.xpose.msra.mxu0 0.0
    %3936 = vmatprep.subr.mxu0 0.0
    %3937 = vmatpush1.xpose.msra.mxu0 0.0
    %3938 = vmatprep.subr.mxu0 0.0
    %3939 = vmatpush1.xpose.msra.mxu0 0.0
    %3940 = vmatprep.subr.mxu0 0.0
    %3941 = vmatpush1.xpose.msra.mxu0 0.0
    %3942 = vmatprep.subr.mxu0 0.0
    %3943 = vmatpush1.xpose.msra.mxu0 0.0
    %3944 = vmatprep.subr.mxu0 0.0
    %3945 = vmatpush1.xpose.msra.mxu0 0.0
    %3946 = vmatprep.subr.mxu0 0.0
    %3947 = vmatpush1.xpose.msra.mxu0 0.0
    %3948 = vmatprep.subr.mxu0 0.0
    %3949 = vmatpush1.xpose.msra.mxu0 0.0
    %3950 = vmatprep.subr.mxu0 0.0
    %3951 = vmatpush1.xpose.msra.mxu0 0.0
    %3952 = vmatprep.subr.mxu0 0.0
    %3953 = vmatpush1.xpose.msra.mxu0 0.0
    %3954 = vmatprep.subr.mxu0 0.0
    %3955 = vmatpush1.xpose.msra.mxu0 0.0
    %3956 = vmatprep.subr.mxu0 0.0
    %3957 = vmatpush1.xpose.msra.mxu0 0.0
    %3958 = vmatprep.subr.mxu0 0.0
    %3959 = vmatpush1.xpose.msra.mxu0 0.0
    %3960 = vmatprep.subr.mxu0 0.0
    %3961 = vmatpush1.xpose.msra.mxu0 0.0
    %3962 = vmatprep.mubr.f32.mxu0 0.0
    %3963 = vmatmul.mubr.f32.gmra.mrb[0].mxu0 %v3890
    %v3964 = vpop.f32.mrb[0].mxu0
    %v3965 = vadd.f32 %v63, %v3964
    %v3966 = vpop.f32.mrb[0].mxu0
    %3967 = vdwg.mxu0
    %3968 = vrot.lane.b32.xlu0 %v2444, 104
    %v3969 = vpop.permute.xlu0 %3968
    %3970 = vrot.lane.b32.xlu0 %v2549, 104
    %v3971 = vpop.permute.xlu0 %3970
    %3972 = vrot.lane.b32.xlu0 %v2554, 104
    %v3973 = vpop.permute.xlu0 %3972
    %3974 = vrot.lane.b32.xlu0 %v2559, 104
    %v3975 = vpop.permute.xlu0 %3974
    %v3976 = vsel %vm299, %v3969, 0
    %v3978 = vsel %vm299, %v3971, 0
    %v3980 = vsel %vm299, %v3973, 0
    %v3982 = vsel %vm299, %v3975, 0
    %3984 = vmatprep.subr.mxu0 0.0
    %3985 = vmatpush1.xpose.msra.mxu0 %v3978
    %3986 = vmatprep.subr.mxu0 0.0
    %3987 = vmatpush1.xpose.msra.mxu0 %v3980
    %3988 = vmatprep.subr.mxu0 0.0
    %3989 = vmatpush1.xpose.msra.mxu0 %v3982
    %3990 = vmatprep.subr.mxu0 0.0
    %3991 = vmatpush1.xpose.msra.mxu0 0.0
    %3992 = vmatprep.subr.mxu0 0.0
    %3993 = vmatpush1.xpose.msra.mxu0 0.0
    %3994 = vmatprep.subr.mxu0 0.0
    %3995 = vmatpush1.xpose.msra.mxu0 0.0
    %3996 = vmatprep.subr.mxu0 0.0
    %3997 = vmatpush1.xpose.msra.mxu0 0.0
    %3998 = vmatprep.subr.mxu0 0.0
    %3999 = vmatpush1.xpose.msra.mxu0 0.0
    %4000 = vmatprep.subr.mxu0 0.0
    %4001 = vmatpush1.xpose.msra.mxu0 0.0
    %4002 = vmatprep.subr.mxu0 0.0
    %4003 = vmatpush1.xpose.msra.mxu0 0.0
    %4004 = vmatprep.subr.mxu0 0.0
    %4005 = vmatpush1.xpose.msra.mxu0 0.0
    %4006 = vmatprep.subr.mxu0 0.0
    %4007 = vmatpush1.xpose.msra.mxu0 0.0
    %4008 = vmatprep.subr.mxu0 0.0
    %4009 = vmatpush1.xpose.msra.mxu0 0.0
    %4010 = vmatprep.subr.mxu0 0.0
    %4011 = vmatpush1.xpose.msra.mxu0 0.0
    %4012 = vmatprep.subr.mxu0 0.0
    %4013 = vmatpush1.xpose.msra.mxu0 0.0
    %4014 = vmatprep.subr.mxu0 0.0
    %4015 = vmatpush1.xpose.msra.mxu0 0.0
    %4016 = vmatprep.subr.mxu0 0.0
    %4017 = vmatpush1.xpose.msra.mxu0 0.0
    %4018 = vmatprep.subr.mxu0 0.0
    %4019 = vmatpush1.xpose.msra.mxu0 0.0
    %4020 = vmatprep.subr.mxu0 0.0
    %4021 = vmatpush1.xpose.msra.mxu0 0.0
    %4022 = vmatprep.subr.mxu0 0.0
    %4023 = vmatpush1.xpose.msra.mxu0 0.0
    %4024 = vmatprep.subr.mxu0 0.0
    %4025 = vmatpush1.xpose.msra.mxu0 0.0
    %4026 = vmatprep.subr.mxu0 0.0
    %4027 = vmatpush1.xpose.msra.mxu0 0.0
    %4028 = vmatprep.subr.mxu0 0.0
    %4029 = vmatpush1.xpose.msra.mxu0 0.0
    %4030 = vmatprep.subr.mxu0 0.0
    %4031 = vmatpush1.xpose.msra.mxu0 0.0
    %4032 = vmatprep.subr.mxu0 0.0
    %4033 = vmatpush1.xpose.msra.mxu0 0.0
    %4034 = vmatprep.subr.mxu0 0.0
    %4035 = vmatpush1.xpose.msra.mxu0 0.0
    %4036 = vmatprep.subr.mxu0 0.0
    %4037 = vmatpush1.xpose.msra.mxu0 0.0
    %4038 = vmatprep.subr.mxu0 0.0
    %4039 = vmatpush1.xpose.msra.mxu0 0.0
    %4040 = vmatprep.subr.mxu0 0.0
    %4041 = vmatpush1.xpose.msra.mxu0 0.0
    %4042 = vmatprep.subr.mxu0 0.0
    %4043 = vmatpush1.xpose.msra.mxu0 0.0
    %4044 = vmatprep.subr.mxu0 0.0
    %4045 = vmatpush1.xpose.msra.mxu0 0.0
    %4046 = vmatprep.subr.mxu0 0.0
    %4047 = vmatpush1.xpose.msra.mxu0 0.0
    %4048 = vmatprep.mubr.f32.mxu0 0.0
    %4049 = vmatmul.mubr.f32.gmra.mrb[0].mxu0 %v3976
    %v4050 = vpop.f32.mrb[0].mxu0
    %v4051 = vadd.f32 %v64, %v4050
    %v4052 = vpop.f32.mrb[0].mxu0
    %4053 = vdwg.mxu0
    %v4054 = vsel %vm464, %v3965, -inf
    %4055 = vmax.xlane.f32.xlu0 %v4054
    %v4056 = vpop.xlane.xlu0 %4055
    %v4057 = vsel %vm464, %v4051, -inf
    %4058 = vmax.xlane.f32.xlu0 %v4057
    %v4059 = vpop.xlane.xlu0 %4058
    %v4060 = vsub.f32 %v3965, %v4056
    %v4061 = vsub.f32 %v4051, %v4059
    %v4062 = vmul.f32 %v4060, 1.442695
    %v4063 = vpow.pop %v4062
    %v4064 = vmul.f32 %v4061, 1.442695
    %v4065 = vpow.pop %v4064
    %v4066 = vsel %vm464, %v4063, 0.0
    %4067 = vadd.xlane.f32.xlu0 %v4066
    %v4068 = vpop.xlane.xlu0 %4067
    %v4069 = vsel %vm464, %v4065, 0.0
    %4070 = vadd.xlane.f32.xlu0 %v4069
    %v4071 = vpop.xlane.xlu0 %4070
    %v4072 = vrcp.pop %v4068
    %v4073 = vrcp.pop %v4071
    %v4074 = vmul.f32 %v4063, %v4072
    %v4075 = vmul.f32 %v4065, %v4073
    %4076 = vrot.lane.b32.xlu0 %v2534, 72
    %v4077 = vpop.permute.xlu0 %4076
    %4078 = vrot.lane.b32.xlu0 %v2539, 72
    %v4079 = vpop.permute.xlu0 %4078
    %4080 = vrot.lane.b32.xlu0 %v2544, 72
    %v4081 = vpop.permute.xlu0 %4080
    %v4086 = vsel %vm464, %v4074, 0
    %4088 = vmatprep.subr.mxu0 0.0
    %4089 = vmatpush1.msra.mxu0 %v4077
    %4090 = vmatprep.subr.mxu0 0.0
    %4091 = vmatpush1.msra.mxu0 %v4079
    %4092 = vmatprep.subr.mxu0 0.0
    %4093 = vmatpush1.msra.mxu0 %v4081
    %4094 = vmatprep.subr.mxu0 0.0
    %4095 = vmatpush1.msra.mxu0 0.0
    %4096 = vmatprep.subr.mxu0 0.0
    %4097 = vmatpush1.msra.mxu0 0.0
    %4098 = vmatprep.subr.mxu0 0.0
    %4099 = vmatpush1.msra.mxu0 0.0
    %4100 = vmatprep.subr.mxu0 0.0
    %4101 = vmatpush1.msra.mxu0 0.0
    %4102 = vmatprep.subr.mxu0 0.0
    %4103 = vmatpush1.msra.mxu0 0.0
    %4104 = vmatprep.subr.mxu0 0.0
    %4105 = vmatpush1.msra.mxu0 0.0
    %4106 = vmatprep.subr.mxu0 0.0
    %4107 = vmatpush1.msra.mxu0 0.0
    %4108 = vmatprep.subr.mxu0 0.0
    %4109 = vmatpush1.msra.mxu0 0.0
    %4110 = vmatprep.subr.mxu0 0.0
    %4111 = vmatpush1.msra.mxu0 0.0
    %4112 = vmatprep.subr.mxu0 0.0
    %4113 = vmatpush1.msra.mxu0 0.0
    %4114 = vmatprep.subr.mxu0 0.0
    %4115 = vmatpush1.msra.mxu0 0.0
    %4116 = vmatprep.subr.mxu0 0.0
    %4117 = vmatpush1.msra.mxu0 0.0
    %4118 = vmatprep.subr.mxu0 0.0
    %4119 = vmatpush1.msra.mxu0 0.0
    %4120 = vmatprep.subr.mxu0 0.0
    %4121 = vmatpush1.msra.mxu0 0.0
    %4122 = vmatprep.subr.mxu0 0.0
    %4123 = vmatpush1.msra.mxu0 0.0
    %4124 = vmatprep.subr.mxu0 0.0
    %4125 = vmatpush1.msra.mxu0 0.0
    %4126 = vmatprep.subr.mxu0 0.0
    %4127 = vmatpush1.msra.mxu0 0.0
    %4128 = vmatprep.subr.mxu0 0.0
    %4129 = vmatpush1.msra.mxu0 0.0
    %4130 = vmatprep.subr.mxu0 0.0
    %4131 = vmatpush1.msra.mxu0 0.0
    %4132 = vmatprep.subr.mxu0 0.0
    %4133 = vmatpush1.msra.mxu0 0.0
    %4134 = vmatprep.subr.mxu0 0.0
    %4135 = vmatpush1.msra.mxu0 0.0
    %4136 = vmatprep.subr.mxu0 0.0
    %4137 = vmatpush1.msra.mxu0 0.0
    %4138 = vmatprep.subr.mxu0 0.0
    %4139 = vmatpush1.msra.mxu0 0.0
    %4140 = vmatprep.subr.mxu0 0.0
    %4141 = vmatpush1.msra.mxu0 0.0
    %4142 = vmatprep.subr.mxu0 0.0
    %4143 = vmatpush1.msra.mxu0 0.0
    %4144 = vmatprep.subr.mxu0 0.0
    %4145 = vmatpush1.msra.mxu0 0.0
    %4146 = vmatprep.subr.mxu0 0.0
    %4147 = vmatpush1.msra.mxu0 0.0
    %4148 = vmatprep.subr.mxu0 0.0
    %4149 = vmatpush1.msra.mxu0 0.0
    %4150 = vmatprep.subr.mxu0 0.0
    %4151 = vmatpush1.msra.mxu0 0.0
    %4152 = vmatprep.mubr.f32.mxu0 0.0
    %4153 = vmatmul.mubr.f32.gmra.mrb[0].mxu0 %v4086
    %v4154 = vpop.f32.mrb[0].mxu0
    %v4155 = vadd.f32 0.0, %v4154
    %v4156 = vpop.f32.mrb[0].mxu0
    %4157 = vdwg.mxu0
    %4158 = vrot.lane.b32.xlu0 %v2549, 72
    %v4159 = vpop.permute.xlu0 %4158
    %4160 = vrot.lane.b32.xlu0 %v2554, 72
    %v4161 = vpop.permute.xlu0 %4160
    %4162 = vrot.lane.b32.xlu0 %v2559, 72
    %v4163 = vpop.permute.xlu0 %4162
    %v4168 = vsel %vm464, %v4075, 0
    %4170 = vmatprep.subr.mxu0 0.0
    %4171 = vmatpush1.msra.mxu0 %v4159
    %4172 = vmatprep.subr.mxu0 0.0
    %4173 = vmatpush1.msra.mxu0 %v4161
    %4174 = vmatprep.subr.mxu0 0.0
    %4175 = vmatpush1.msra.mxu0 %v4163
    %4176 = vmatprep.subr.mxu0 0.0
    %4177 = vmatpush1.msra.mxu0 0.0
    %4178 = vmatprep.subr.mxu0 0.0
    %4179 = vmatpush1.msra.mxu0 0.0
    %4180 = vmatprep.subr.mxu0 0.0
    %4181 = vmatpush1.msra.mxu0 0.0
    %4182 = vmatprep.subr.mxu0 0.0
    %4183 = vmatpush1.msra.mxu0 0.0
    %4184 = vmatprep.subr.mxu0 0.0
    %4185 = vmatpush1.msra.mxu0 0.0
    %4186 = vmatprep.subr.mxu0 0.0
    %4187 = vmatpush1.msra.mxu0 0.0
    %4188 = vmatprep.subr.mxu0 0.0
    %4189 = vmatpush1.msra.mxu0 0.0
    %4190 = vmatprep.subr.mxu0 0.0
    %4191 = vmatpush1.msra.mxu0 0.0
    %4192 = vmatprep.subr.mxu0 0.0
    %4193 = vmatpush1.msra.mxu0 0.0
    %4194 = vmatprep.subr.mxu0 0.0
    %4195 = vmatpush1.msra.mxu0 0.0
    %4196 = vmatprep.subr.mxu0 0.0
    %4197 = vmatpush1.msra.mxu0 0.0
    %4198 = vmatprep.subr.mxu0 0.0
    %4199 = vmatpush1.msra.mxu0 0.0
    %4200 = vmatprep.subr.mxu0 0.0
    %4201 = vmatpush1.msra.mxu0 0.0
    %4202 = vmatprep.subr.mxu0 0.0
    %4203 = vmatpush1.msra.mxu0 0.0
    %4204 = vmatprep.subr.mxu0 0.0
    %4205 = vmatpush1.msra.mxu0 0.0
    %4206 = vmatprep.subr.mxu0 0.0
    %4207 = vmatpush1.msra.mxu0 0.0
    %4208 = vmatprep.subr.mxu0 0.0
    %4209 = vmatpush1.msra.mxu0 0.0
    %4210 = vmatprep.subr.mxu0 0.0
    %4211 = vmatpush1.msra.mxu0 0.0
    %4212 = vmatprep.subr.mxu0 0.0
    %4213 = vmatpush1.msra.mxu0 0.0
    %4214 = vmatprep.subr.mxu0 0.0
    %4215 = vmatpush1.msra.mxu0 0.0
    %4216 = vmatprep.subr.mxu0 0.0
    %4217 = vmatpush1.msra.mxu0 0.0
    %4218 = vmatprep.subr.mxu0 0.0
    %4219 = vmatpush1.msra.mxu0 0.0
    %4220 = vmatprep.subr.mxu0 0.0
    %4221 = vmatpush1.msra.mxu0 0.0
    %4222 = vmatprep.subr.mxu0 0.0
    %4223 = vmatpush1.msra.mxu0 0.0
    %4224 = vmatprep.subr.mxu0 0.0
    %4225 = vmatpush1.msra.mxu0 0.0
    %4226 = vmatprep.subr.mxu0 0.0
    %4227 = vmatpush1.msra.mxu0 0.0
    %4228 = vmatprep.subr.mxu0 0.0
    %4229 = vmatpush1.msra.mxu0 0.0
    %4230 = vmatprep.subr.mxu0 0.0
    %4231 = vmatpush1.msra.mxu0 0.0
    %4232 = vmatprep.subr.mxu0 0.0
    %4233 = vmatpush1.msra.mxu0 0.0
    %4234 = vmatprep.mubr.f32.mxu0 0.0
    %4235 = vmatmul.mubr.f32.gmra.mrb[0].mxu0 %v4168
    %v4236 = vpop.f32.mrb[0].mxu0
    %v4237 = vadd.f32 0.0, %v4236
    %v4238 = vpop.f32.mrb[0].mxu0
    %4239 = vdwg.mxu0
    %4240 = vrot.lane.b32.xlu0 %v2348, 32
    %v4241 = vpop.permute.xlu0 %4240
    %v4244 = vsel %vm299, %v4155, 0
    %v4247 = vsel %vm299, %v4237, 0
    %4249 = vmatprep.subr.mxu0 0.0
    %4250 = vmatpush1.msra.mxu0 %v4241
    %4251 = vmatprep.subr.mxu0 0.0
    %4252 = vmatpush1.msra.mxu0 0.0
    %4253 = vmatprep.subr.mxu0 0.0
    %4254 = vmatpush1.msra.mxu0 0.0
    %4255 = vmatprep.subr.mxu0 0.0
    %4256 = vmatpush1.msra.mxu0 0.0
    %4257 = vmatprep.subr.mxu0 0.0
    %4258 = vmatpush1.msra.mxu0 0.0
    %4259 = vmatprep.subr.mxu0 0.0
    %4260 = vmatpush1.msra.mxu0 0.0
    %4261 = vmatprep.subr.mxu0 0.0
    %4262 = vmatpush1.msra.mxu0 0.0
    %4263 = vmatprep.subr.mxu0 0.0
    %4264 = vmatpush1.msra.mxu0 0.0
    %4265 = vmatprep.subr.mxu0 0.0
    %4266 = vmatpush1.msra.mxu0 0.0
    %4267 = vmatprep.subr.mxu0 0.0
    %4268 = vmatpush1.msra.mxu0 0.0
    %4269 = vmatprep.subr.mxu0 0.0
    %4270 = vmatpush1.msra.mxu0 0.0
    %4271 = vmatprep.subr.mxu0 0.0
    %4272 = vmatpush1.msra.mxu0 0.0
    %4273 = vmatprep.subr.mxu0 0.0
    %4274 = vmatpush1.msra.mxu0 0.0
    %4275 = vmatprep.subr.mxu0 0.0
    %4276 = vmatpush1.msra.mxu0 0.0
    %4277 = vmatprep.subr.mxu0 0.0
    %4278 = vmatpush1.msra.mxu0 0.0
    %4279 = vmatprep.subr.mxu0 0.0
    %4280 = vmatpush1.msra.mxu0 0.0
    %4281 = vmatprep.subr.mxu0 0.0
    %4282 = vmatpush1.msra.mxu0 0.0
    %4283 = vmatprep.subr.mxu0 0.0
    %4284 = vmatpush1.msra.mxu0 0.0
    %4285 = vmatprep.subr.mxu0 0.0
    %4286 = vmatpush1.msra.mxu0 0.0
    %4287 = vmatprep.subr.mxu0 0.0
    %4288 = vmatpush1.msra.mxu0 0.0
    %4289 = vmatprep.subr.mxu0 0.0
    %4290 = vmatpush1.msra.mxu0 0.0
    %4291 = vmatprep.subr.mxu0 0.0
    %4292 = vmatpush1.msra.mxu0 0.0
    %4293 = vmatprep.subr.mxu0 0.0
    %4294 = vmatpush1.msra.mxu0 0.0
    %4295 = vmatprep.subr.mxu0 0.0
    %4296 = vmatpush1.msra.mxu0 0.0
    %4297 = vmatprep.subr.mxu0 0.0
    %4298 = vmatpush1.msra.mxu0 0.0
    %4299 = vmatprep.subr.mxu0 0.0
    %4300 = vmatpush1.msra.mxu0 0.0
    %4301 = vmatprep.subr.mxu0 0.0
    %4302 = vmatpush1.msra.mxu0 0.0
    %4303 = vmatprep.subr.mxu0 0.0
    %4304 = vmatpush1.msra.mxu0 0.0
    %4305 = vmatprep.subr.mxu0 0.0
    %4306 = vmatpush1.msra.mxu0 0.0
    %4307 = vmatprep.subr.mxu0 0.0
    %4308 = vmatpush1.msra.mxu0 0.0
    %4309 = vmatprep.subr.mxu0 0.0
    %4310 = vmatpush1.msra.mxu0 0.0
    %4311 = vmatprep.subr.mxu0 0.0
    %4312 = vmatpush1.msra.mxu0 0.0
    %4313 = vmatprep.mubr.f32.mxu0 0.0
    %4314 = vmatmul.mubr.f32.gmra.mrb[0].mxu0 %v4244
    %v4315 = vpop.f32.mrb[0].mxu0
    %v4316 = vadd.f32 0.0, %v4315
    %v4317 = vpop.f32.mrb[0].mxu0
    %4318 = vmatprep.mubr.f32.mxu0 0.0
    %4319 = vmatmul.mubr.f32.gmra.mrb[0].mxu0 %v4247
    %v4320 = vpop.f32.mrb[0].mxu0
    %v4321 = vadd.f32 0.0, %v4320
    %v4322 = vpop.f32.mrb[0].mxu0
    %4323 = vdwg.mxu0
    %v4324 = vadd.f32 %v3880, %v4316
    %v4325 = vadd.f32 %v3881, %v4321
    %v4326 = vlaneseq
    %v4327 = vshrl.u32 %v4326, 7
    %v4328 = vsub.s32 2, %v4327
    %v4329 = vrot.slane %v2360, %v4328
    %v4330 = vadd.f32 %v4324, %v4329
    %v4331 = vadd.f32 %v4325, %v4329
    %v4332 = vadd.f32 %v2339, %v4330
    %v4333 = vadd.f32 %v2340, %v4331
    %v4334 = vsel %vm87, %v4332, 0.0
    %4335 = vadd.xlane.f32.xlu0 %v4334
    %v4336 = vpop.xlane.xlu0 %4335
    %v4337 = vsel %vm87, %v4333, 0.0
    %4338 = vadd.xlane.f32.xlu0 %v4337
    %v4339 = vpop.xlane.xlu0 %4338
    %v4340 = vmul.f32 %v4336, %v2079
    %v4341 = vmul.f32 %v4339, %v2079
    %v4342 = vsub.f32 %v4332, %v4340
    %v4343 = vsub.f32 %v4333, %v4341
    %v4344 = vmul.f32 %v4342, %v4342
    %v4345 = vmul.f32 %v4343, %v4343
    %v4346 = vsel %vm87, %v4344, 0.0
    %4347 = vadd.xlane.f32.xlu0 %v4346
    %v4348 = vpop.xlane.xlu0 %4347
    %v4349 = vsel %vm87, %v4345, 0.0
    %4350 = vadd.xlane.f32.xlu0 %v4349
    %v4351 = vpop.xlane.xlu0 %4350
    %v4352 = vmul.f32 %v4348, %v2079
    %v4353 = vmul.f32 %v4351, %v2079
    %v4354 = vadd.f32 %v4352, 1e-05
    %v4355 = vadd.f32 %v4353, 1e-05
    %v4356 = vrsqrt.pop %v4354
    %v4357 = vrsqrt.pop %v4355
    %v4358 = vmul.f32 %v4342, %v4356
    %v4359 = vmul.f32 %v4343, %v4357
    %v4360 = vlaneseq
    %v4361 = vshrl.u32 %v4360, 7
    %v4362 = vsub.s32 3, %v4361
    %v4363 = vrot.slane %v2360, %v4362
    %v4364 = vmul.f32 %v4358, %v4363
    %v4365 = vmul.f32 %v4359, %v4363
    %v4366 = vlaneseq
    %v4367 = vshrl.u32 %v4366, 7
    %v4368 = vsub.s32 4, %v4367
    %v4369 = vrot.slane %v2360, %v4368
    %v4370 = vadd.f32 %v4364, %v4369
    %v4371 = vadd.f32 %v4365, %v4369
    %v4372 = vlaneseq
    %v4373 = vshrl.u32 %v4372, 7
    %v4374 = vsub.s32 5, %v4373
    %v4375 = vrot.slane %v2360, %v4374
    %v4377 = vsel %vm87, %v4370, 0
    %v4380 = vsel %vm87, %v4371, 0
    %4382 = vmatprep.subr.mxu0 0.0
    %4383 = vmatpush1.msra.mxu0 %v2343
    %4384 = vmatprep.subr.mxu0 0.0
    %4385 = vmatpush1.msra.mxu0 %v2345
    %4386 = vmatprep.subr.mxu0 0.0
    %4387 = vmatpush1.msra.mxu0 %v2347
    %4388 = vmatprep.subr.mxu0 0.0
    %4389 = vmatpush1.msra.mxu0 %v2349
    %4390 = vmatprep.subr.mxu0 0.0
    %4391 = vmatpush1.msra.mxu0 0.0
    %4392 = vmatprep.subr.mxu0 0.0
    %4393 = vmatpush1.msra.mxu0 0.0
    %4394 = vmatprep.subr.mxu0 0.0
    %4395 = vmatpush1.msra.mxu0 0.0
    %4396 = vmatprep.subr.mxu0 0.0
    %4397 = vmatpush1.msra.mxu0 0.0
    %4398 = vmatprep.subr.mxu0 0.0
    %4399 = vmatpush1.msra.mxu0 0.0
    %4400 = vmatprep.subr.mxu0 0.0
    %4401 = vmatpush1.msra.mxu0 0.0
    %4402 = vmatprep.subr.mxu0 0.0
    %4403 = vmatpush1.msra.mxu0 0.0
    %4404 = vmatprep.subr.mxu0 0.0
    %4405 = vmatpush1.msra.mxu0 0.0
    %4406 = vmatprep.subr.mxu0 0.0
    %4407 = vmatpush1.msra.mxu0 0.0
    %4408 = vmatprep.subr.mxu0 0.0
    %4409 = vmatpush1.msra.mxu0 0.0
    %4410 = vmatprep.subr.mxu0 0.0
    %4411 = vmatpush1.msra.mxu0 0.0
    %4412 = vmatprep.subr.mxu0 0.0
    %4413 = vmatpush1.msra.mxu0 0.0
    %4414 = vmatprep.subr.mxu0 0.0
    %4415 = vmatpush1.msra.mxu0 0.0
    %4416 = vmatprep.subr.mxu0 0.0
    %4417 = vmatpush1.msra.mxu0 0.0
    %4418 = vmatprep.subr.mxu0 0.0
    %4419 = vmatpush1.msra.mxu0 0.0
    %4420 = vmatprep.subr.mxu0 0.0
    %4421 = vmatpush1.msra.mxu0 0.0
    %4422 = vmatprep.subr.mxu0 0.0
    %4423 = vmatpush1.msra.mxu0 0.0
    %4424 = vmatprep.subr.mxu0 0.0
    %4425 = vmatpush1.msra.mxu0 0.0
    %4426 = vmatprep.subr.mxu0 0.0
    %4427 = vmatpush1.msra.mxu0 0.0
    %4428 = vmatprep.subr.mxu0 0.0
    %4429 = vmatpush1.msra.mxu0 0.0
    %4430 = vmatprep.subr.mxu0 0.0
    %4431 = vmatpush1.msra.mxu0 0.0
    %4432 = vmatprep.subr.mxu0 0.0
    %4433 = vmatpush1.msra.mxu0 0.0
    %4434 = vmatprep.subr.mxu0 0.0
    %4435 = vmatpush1.msra.mxu0 0.0
    %4436 = vmatprep.subr.mxu0 0.0
    %4437 = vmatpush1.msra.mxu0 0.0
    %4438 = vmatprep.subr.mxu0 0.0
    %4439 = vmatpush1.msra.mxu0 0.0
    %4440 = vmatprep.subr.mxu0 0.0
    %4441 = vmatpush1.msra.mxu0 0.0
    %4442 = vmatprep.subr.mxu0 0.0
    %4443 = vmatpush1.msra.mxu0 0.0
    %4444 = vmatprep.subr.mxu0 0.0
    %4445 = vmatpush1.msra.mxu0 0.0
    %4446 = vmatprep.mubr.f32.mxu0 0.0
    %4447 = vmatmul.mubr.f32.gmra.mrb[0].mxu0 %v4377
    %v4448 = vpop.f32.mrb[0].mxu0
    %v4449 = vadd.f32 %v4375, %v4448
    %v4450 = vpop.f32.mrb[0].mxu0
    %4451 = vmatprep.mubr.f32.mxu0 0.0
    %4452 = vmatmul.mubr.f32.gmra.mrb[0].mxu0 %v4380
    %v4453 = vpop.f32.mrb[0].mxu0
    %v4454 = vadd.f32 %v4375, %v4453
    %v4455 = vpop.f32.mrb[0].mxu0
    %4456 = vdwg.mxu0
    %v4457 = vmul.f32 %v4449, %v4449
    %v4458 = vmul.f32 %v4454, %v4454
    %v4459 = vmul.f32 %v4449, %v4457
    %v4460 = vmul.f32 %v4454, %v4458
    %v4461 = vmul.f32 %v4459, 0.044715
    %v4462 = vmul.f32 %v4460, 0.044715
    %v4463 = vadd.f32 %v4449, %v4461
    %v4464 = vadd.f32 %v4454, %v4462
    %v4465 = vmul.f32 %v4463, 0.7978846
    %v4466 = vmul.f32 %v4464, 0.7978846
    %v4467 = vtanh.pop %v4465
    %v4468 = vtanh.pop %v4466
    %v4469 = vadd.f32 %v4467, 1.0
    %v4470 = vadd.f32 %v4468, 1.0
    %v4471 = vmul.f32 %v4469, 0.5
    %v4472 = vmul.f32 %v4470, 0.5
    %v4473 = vmul.f32 %v4449, %v4471
    %v4474 = vmul.f32 %v4454, %v4472
    %v4475 = vlaneseq
    %v4476 = vshrl.u32 %v4475, 7
    %v4477 = vsub.s32 6, %v4476
    %v4478 = vrot.slane %v2360, %v4477
    %v4480 = vsel %vm2219, %v4473, 0
    %v4483 = vsel %vm2219, %v4474, 0
    %4485 = vmatprep.subr.mxu0 0.0
    %4486 = vmatpush1.msra.mxu0 %v2351
    %4487 = vmatprep.subr.mxu0 0.0
    %4488 = vmatpush1.msra.mxu0 %v2352
    %4489 = vmatprep.subr.mxu0 0.0
    %4490 = vmatpush1.msra.mxu0 %v2353
    %4491 = vmatprep.subr.mxu0 0.0
    %4492 = vmatpush1.msra.mxu0 %v2354
    %4493 = vmatprep.subr.mxu0 0.0
    %4494 = vmatpush1.msra.mxu0 %v2355
    %4495 = vmatprep.subr.mxu0 0.0
    %4496 = vmatpush1.msra.mxu0 %v2356
    %4497 = vmatprep.subr.mxu0 0.0
    %4498 = vmatpush1.msra.mxu0 %v2357
    %4499 = vmatprep.subr.mxu0 0.0
    %4500 = vmatpush1.msra.mxu0 %v2358
    %4501 = vmatprep.subr.mxu0 0.0
    %4502 = vmatpush1.msra.mxu0 0.0
    %4503 = vmatprep.subr.mxu0 0.0
    %4504 = vmatpush1.msra.mxu0 0.0
    %4505 = vmatprep.subr.mxu0 0.0
    %4506 = vmatpush1.msra.mxu0 0.0
    %4507 = vmatprep.subr.mxu0 0.0
    %4508 = vmatpush1.msra.mxu0 0.0
    %4509 = vmatprep.subr.mxu0 0.0
    %4510 = vmatpush1.msra.mxu0 0.0
    %4511 = vmatprep.subr.mxu0 0.0
    %4512 = vmatpush1.msra.mxu0 0.0
    %4513 = vmatprep.subr.mxu0 0.0
    %4514 = vmatpush1.msra.mxu0 0.0
    %4515 = vmatprep.subr.mxu0 0.0
    %4516 = vmatpush1.msra.mxu0 0.0
    %4517 = vmatprep.subr.mxu0 0.0
    %4518 = vmatpush1.msra.mxu0 0.0
    %4519 = vmatprep.subr.mxu0 0.0
    %4520 = vmatpush1.msra.mxu0 0.0
    %4521 = vmatprep.subr.mxu0 0.0
    %4522 = vmatpush1.msra.mxu0 0.0
    %4523 = vmatprep.subr.mxu0 0.0
    %4524 = vmatpush1.msra.mxu0 0.0
    %4525 = vmatprep.subr.mxu0 0.0
    %4526 = vmatpush1.msra.mxu0 0.0
    %4527 = vmatprep.subr.mxu0 0.0
    %4528 = vmatpush1.msra.mxu0 0.0
    %4529 = vmatprep.subr.mxu0 0.0
    %4530 = vmatpush1.msra.mxu0 0.0
    %4531 = vmatprep.subr.mxu0 0.0
    %4532 = vmatpush1.msra.mxu0 0.0
    %4533 = vmatprep.subr.mxu0 0.0
    %4534 = vmatpush1.msra.mxu0 0.0
    %4535 = vmatprep.subr.mxu0 0.0
    %4536 = vmatpush1.msra.mxu0 0.0
    %4537 = vmatprep.subr.mxu0 0.0
    %4538 = vmatpush1.msra.mxu0 0.0
    %4539 = vmatprep.subr.mxu0 0.0
    %4540 = vmatpush1.msra.mxu0 0.0
    %4541 = vmatprep.subr.mxu0 0.0
    %4542 = vmatpush1.msra.mxu0 0.0
    %4543 = vmatprep.subr.mxu0 0.0
    %4544 = vmatpush1.msra.mxu0 0.0
    %4545 = vmatprep.subr.mxu0 0.0
    %4546 = vmatpush1.msra.mxu0 0.0
    %4547 = vmatprep.subr.mxu0 0.0
    %4548 = vmatpush1.msra.mxu0 0.0
    %4549 = vmatprep.mubr.f32.mxu0 0.0
    %4550 = vmatmul.mubr.f32.gmra.mrb[0].mxu0 %v4480
    %v4551 = vpop.f32.mrb[0].mxu0
    %v4552 = vadd.f32 %v4478, %v4551
    %v4553 = vpop.f32.mrb[0].mxu0
    %4554 = vmatprep.mubr.f32.mxu0 0.0
    %4555 = vmatmul.mubr.f32.gmra.mrb[0].mxu0 %v4483
    %v4556 = vpop.f32.mrb[0].mxu0
    %v4557 = vadd.f32 %v4478, %v4556
    %v4558 = vpop.f32.mrb[0].mxu0
    %4559 = vdwg.mxu0
    %v4560 = vadd.f32 %v4370, %v4552
    %v4561 = vadd.f32 %v4371, %v4557
    %v4562 = vsel %vm87, %v4560, 0.0
    %4563 = vadd.xlane.f32.xlu0 %v4562
    %v4564 = vpop.xlane.xlu0 %4563
    %v4565 = vsel %vm87, %v4561, 0.0
    %4566 = vadd.xlane.f32.xlu0 %v4565
    %v4567 = vpop.xlane.xlu0 %4566
    %v4568 = vmul.f32 %v4564, %v2079
    %v4569 = vmul.f32 %v4567, %v2079
    %v4570 = vsub.f32 %v4560, %v4568
    %v4571 = vsub.f32 %v4561, %v4569
    %v4572 = vmul.f32 %v4570, %v4570
    %v4573 = vmul.f32 %v4571, %v4571
    %v4574 = vsel %vm87, %v4572, 0.0
    %4575 = vadd.xlane.f32.xlu0 %v4574
    %v4576 = vpop.xlane.xlu0 %4575
    %v4577 = vsel %vm87, %v4573, 0.0
    %4578 = vadd.xlane.f32.xlu0 %v4577
    %v4579 = vpop.xlane.xlu0 %4578
    %v4580 = vmul.f32 %v4576, %v2079
    %v4581 = vmul.f32 %v4579, %v2079
    %v4582 = vadd.f32 %v4580, 1e-05
    %v4583 = vadd.f32 %v4581, 1e-05
    %v4584 = vrsqrt.pop %v4582
    %v4585 = vrsqrt.pop %v4583
    %v4586 = vmul.f32 %v4570, %v4584
    %v4587 = vmul.f32 %v4571, %v4585
    %v4588 = vlaneseq
    %v4589 = vshrl.u32 %v4588, 7
    %v4590 = vsub.s32 7, %v4589
    %v4591 = vrot.slane %v2360, %v4590
    %v4592 = vmul.f32 %v4586, %v4591
    %v4593 = vmul.f32 %v4587, %v4591
    %v4594 = vlaneseq
    %v4595 = vshrl.u32 %v4594, 7
    %v4596 = vsub.s32 0, %v4595
    %v4597 = vrot.slane %v2361, %v4596
    %v4598 = vadd.f32 %v4592, %v4597
    %v4599 = vadd.f32 %v4593, %v4597
    %v4600 = vadd.f32 %v56, %v4598
    %v4601 = vadd.f32 %v56, %v4599
    %v4602 = vld [vmem:[#allocation5] sm:$0xff]
    %v4603 = vld [vmem:[#allocation5 + $0x8] sm:$0xff]
    %v4604 = vld [vmem:[#allocation5 + $0x10] sm:$0xff]
    %v4605 = vld [vmem:[#allocation5 + $0x18] sm:$0xff]
    %v4606 = vld [vmem:[%s7] sm:$0x1]
    %v4608 = vlaneseq
    %v4609 = vshrl.u32 %v4608, 7
    %v4610 = vsub.s32 0, %v4609
    %v4611 = vrot.slane %v4606, %v4610
    %v4614 = vsel %vm87, %v4600, 0
    %v4617 = vsel %vm87, %v4601, 0
    %4619 = vmatprep.subr.mxu0 0.0
    %4620 = vmatpush1.msra.mxu0 %v4602
    %4621 = vmatprep.subr.mxu0 0.0
    %4622 = vmatpush1.msra.mxu0 %v4603
    %4623 = vmatprep.subr.mxu0 0.0
    %4624 = vmatpush1.msra.mxu0 %v4604
    %4625 = vmatprep.subr.mxu0 0.0
    %4626 = vmatpush1.msra.mxu0 %v4605
    %4627 = vmatprep.subr.mxu0 0.0
    %4628 = vmatpush1.msra.mxu0 0.0
    %4629 = vmatprep.subr.mxu0 0.0
    %4630 = vmatpush1.msra.mxu0 0.0
    %4631 = vmatprep.subr.mxu0 0.0
    %4632 = vmatpush1.msra.mxu0 0.0
    %4633 = vmatprep.subr.mxu0 0.0
    %4634 = vmatpush1.msra.mxu0 0.0
    %4635 = vmatprep.subr.mxu0 0.0
    %4636 = vmatpush1.msra.mxu0 0.0
    %4637 = vmatprep.subr.mxu0 0.0
    %4638 = vmatpush1.msra.mxu0 0.0
    %4639 = vmatprep.subr.mxu0 0.0
    %4640 = vmatpush1.msra.mxu0 0.0
    %4641 = vmatprep.subr.mxu0 0.0
    %4642 = vmatpush1.msra.mxu0 0.0
    %4643 = vmatprep.subr.mxu0 0.0
    %4644 = vmatpush1.msra.mxu0 0.0
    %4645 = vmatprep.subr.mxu0 0.0
    %4646 = vmatpush1.msra.mxu0 0.0
    %4647 = vmatprep.subr.mxu0 0.0
    %4648 = vmatpush1.msra.mxu0 0.0
    %4649 = vmatprep.subr.mxu0 0.0
    %4650 = vmatpush1.msra.mxu0 0.0
    %4651 = vmatprep.subr.mxu0 0.0
    %4652 = vmatpush1.msra.mxu0 0.0
    %4653 = vmatprep.subr.mxu0 0.0
    %4654 = vmatpush1.msra.mxu0 0.0
    %4655 = vmatprep.subr.mxu0 0.0
    %4656 = vmatpush1.msra.mxu0 0.0
    %4657 = vmatprep.subr.mxu0 0.0
    %4658 = vmatpush1.msra.mxu0 0.0
    %4659 = vmatprep.subr.mxu0 0.0
    %4660 = vmatpush1.msra.mxu0 0.0
    %4661 = vmatprep.subr.mxu0 0.0
    %4662 = vmatpush1.msra.mxu0 0.0
    %4663 = vmatprep.subr.mxu0 0.0
    %4664 = vmatpush1.msra.mxu0 0.0
    %4665 = vmatprep.subr.mxu0 0.0
    %4666 = vmatpush1.msra.mxu0 0.0
    %4667 = vmatprep.subr.mxu0 0.0
    %4668 = vmatpush1.msra.mxu0 0.0
    %4669 = vmatprep.subr.mxu0 0.0
    %4670 = vmatpush1.msra.mxu0 0.0
    %4671 = vmatprep.subr.mxu0 0.0
    %4672 = vmatpush1.msra.mxu0 0.0
    %4673 = vmatprep.subr.mxu0 0.0
    %4674 = vmatpush1.msra.mxu0 0.0
    %4675 = vmatprep.subr.mxu0 0.0
    %4676 = vmatpush1.msra.mxu0 0.0
    %4677 = vmatprep.subr.mxu0 0.0
    %4678 = vmatpush1.msra.mxu0 0.0
    %4679 = vmatprep.subr.mxu0 0.0
    %4680 = vmatpush1.msra.mxu0 0.0
    %4681 = vmatprep.subr.mxu0 0.0
    %4682 = vmatpush1.msra.mxu0 0.0
    %4683 = vmatprep.mubr.f32.mxu0 0.0
    %4684 = vmatmul.mubr.f32.gmra.mrb[0].mxu0 %v4614
    %v4685 = vpop.f32.mrb[0].mxu0
    %v4686 = vadd.f32 %v4611, %v4685
    %v4687 = vpop.f32.mrb[0].mxu0
    %4688 = vmatprep.mubr.f32.mxu0 0.0
    %4689 = vmatmul.mubr.f32.gmra.mrb[0].mxu0 %v4617
    %v4690 = vpop.f32.mrb[0].mxu0
    %v4691 = vadd.f32 %v4611, %v4690
    %v4692 = vpop.f32.mrb[0].mxu0
    %4693 = vdwg.mxu0
    %4694 = vst [vmem:[#allocation7] sm:$0xff] %v4686
    %4695 = vst [vmem:[#allocation7 + $0x8] sm:$0xff] %v4691
    // Predicated region
    $region42: #{tpu_custom_call.1} parent=1 // pred_check
      _
    $region43: #{tpu_custom_call.1} parent=1 // pred_check_branch
      %4697 = sbr.rel (0) target = $region45
    $region44: #{tpu_custom_call.1} parent=1 // pred_region
      %s4699 = ssub.s32 256, 256
      %4700 = vsyncadd [#allocation4], %s4699
      %s4701 = sshll.u32 [#allocation7], 4
      %s4702 = int_to_ptr.vmem [resolvable:$true] %s4701
      %4707 = dma.vmem_to_hbm [thread:$0]  %s4702, 256, %s8, [#allocation4], 128, 128, 8
    $region45: #{tpu_custom_call.1} parent=1 // pred_fallthru
      _
    // Predicated region
    $region46: #{tpu_custom_call.1} parent=1 // pred_check
      _
    $region47: #{tpu_custom_call.1} parent=1 // pred_check_branch
      %4709 = sbr.rel (0) target = $region49
    $region48: #{tpu_custom_call.1} parent=1 // pred_region
      %4710 = dma.done [#allocation4], 256
    $region49: #{tpu_custom_call.1} parent=1 // pred_fallthru
      _
    %4711 = vsyncpa [#allocation3], 1
    %4712 = vsyncpa [#allocation6], 1
    %4713 = vsyncpa [#allocation4], 1

</llo_original>
